<compile_context>
chip_gen: v5e
topology: v5e:2x2
jax: 0.10.0
libtpu: 0.0.40
codegen_flags: <defaults>
</compile_context>

<pallas_src>
import functools

import jax
import jax.numpy as jnp
from jax.experimental import pallas as pl
from jax.experimental.pallas import tpu as pltpu

INPUT_SIZE = 10
HIDDEN = 64
HIDDEN_PAD = 128      # pad hidden to one full 128-lane tile
FC_HID = 32


def _gates_combine(gates, c):
    """PyTorch gate order i, f, g, o; each gate is one full 128-lane tile."""
    HP = HIDDEN_PAD
    i = jax.nn.sigmoid(gates[:, 0 * HP:1 * HP])
    f = jax.nn.sigmoid(gates[:, 1 * HP:2 * HP])
    g = jnp.tanh(gates[:, 2 * HP:3 * HP])
    o = jax.nn.sigmoid(gates[:, 3 * HP:4 * HP])
    c_new = f * c + i * g
    h_new = o * jnp.tanh(c_new)
    return h_new, c_new


def tool_wear_kernel(x_ref, w0_ref, b0_ref, whh0_ref, w1_ref, b1_ref,
                     out_ref, cat_ref, *, T, BP):
    HP = HIDDEN_PAD

    # Layer-0 input projection (+ folded biases) for ALL timesteps in one
    # batched MXU pass: (T*BP, F) @ (F, 4*HP).
    xg = (jnp.dot(x_ref[...], w0_ref[...], preferred_element_type=jnp.float32)
          + b0_ref[...])

    whh0 = whh0_ref[...]          # (HP, 4HP)
    w1 = w1_ref[...]              # (2HP, 4HP)  = [W_ih1 ; W_hh1] pre-fused
    b1 = b1_ref[...]              # (1, 4HP)

    zeros = jnp.zeros((BP, HP), jnp.float32)
    h1, c1, h2, c2 = zeros, zeros, zeros, zeros

    # Stage h2_{t-1} in the upper half of the fused-input scratch.
    cat_ref[:, HP:] = h2

    # Fully unrolled recurrence: T is small and static, which gives the LLO
    # scheduler a visible window to interleave layer-0 step t+1 with
    # layer-1 step t.
    for t in range(T):
        # Layer 0: precomputed input projection + recurrent matmul.
        g0 = xg[t * BP:(t + 1) * BP, :] + jnp.dot(
            h1, whh0, preferred_element_type=jnp.float32)
        h1, c1 = _gates_combine(g0, c1)

        # Layer 1: fused [h1_t | h2_{t-1}] @ W1 (single MXU push, K = 256).
        cat_ref[:, :HP] = h1
        g1 = jnp.dot(cat_ref[...], w1, preferred_element_type=jnp.float32) + b1
        h2, c2 = _gates_combine(g1, c2)
        cat_ref[:, HP:] = h2

    out_ref[...] = h2


# ---------------------------------------------------------------------------
# Weight packing: pad each gate block 64 -> 128 lanes (zeros), pad recurrent
# input rows 64 -> 128 (zeros), and fuse layer-1's two weights row-wise.
# Padded lanes of h/c provably stay exactly zero, so results are unchanged.
# ---------------------------------------------------------------------------
def _pad_gate_cols(w_t):
    """(in_dim, 4H) -> (in_dim, 4*HP), zero-padding each gate block."""
    n = w_t.shape[0]
    w4 = w_t.reshape(n, 4, HIDDEN)
    return jnp.pad(w4, ((0, 0), (0, 0), (0, HIDDEN_PAD - HIDDEN))).reshape(
        n, 4 * HIDDEN_PAD)


def _pad_gate_bias(b):
    return jnp.pad(b.reshape(4, HIDDEN),
                   ((0, 0), (0, HIDDEN_PAD - HIDDEN))).reshape(1, 4 * HIDDEN_PAD)


def _pad_rows(w):
    return jnp.pad(w, ((0, HIDDEN_PAD - HIDDEN), (0, 0)))


def prepare_kernel_params(p):
    w0 = _pad_gate_cols(p["wih0"].T)                      # (F, 4HP)
    b0 = _pad_gate_bias(p["b_ih0"] + p["b_hh0"])          # (1, 4HP)
    whh0 = _pad_rows(_pad_gate_cols(p["whh0"].T))         # (HP, 4HP)
    wih1 = _pad_rows(_pad_gate_cols(p["wih1"].T))         # (HP, 4HP)
    whh1 = _pad_rows(_pad_gate_cols(p["whh1"].T))         # (HP, 4HP)
    w1 = jnp.concatenate([wih1, whh1], axis=0)            # (2HP, 4HP)
    b1 = _pad_gate_bias(p["b_ih1"] + p["b_hh1"])          # (1, 4HP)
    return {"w0": w0, "b0": b0, "whh0": whh0, "w1": w1, "b1": b1}


def tool_wear_predictor(x, params):
    """x: (B, T, INPUT_SIZE) float32 -> (B, 1) float32."""
    B, T, F = x.shape
    BP = ((B + 7) // 8) * 8                               # sublane-aligned batch
    kp = prepare_kernel_params(params)

    x_tbf = jnp.transpose(x, (1, 0, 2))                   # time-major (T, B, F)
    x_pad = jnp.pad(x_tbf, ((0, 0), (0, BP - B), (0, 0))) # (T, BP, F)
    x2d = x_pad.reshape(T * BP, F)

    args = (x2d, kp["w0"], kp["b0"], kp["whh0"], kp["w1"], kp["b1"])

    def full_spec(arr):
        nd = arr.ndim
        return pl.BlockSpec(arr.shape, lambda i, _nd=nd: (0,) * _nd)

    h_last_pad = pl.pallas_call(
        functools.partial(tool_wear_kernel, T=T, BP=BP),
        out_shape=jax.ShapeDtypeStruct((BP, HIDDEN_PAD), jnp.float32),
        grid_spec=pltpu.PrefetchScalarGridSpec(
            num_scalar_prefetch=0,
            grid=(1,),
            in_specs=[full_spec(a) for a in args],
            out_specs=pl.BlockSpec((BP, HIDDEN_PAD), lambda i: (0, 0)),
            scratch_shapes=[
                pltpu.VMEM((BP, 2 * HIDDEN_PAD), jnp.float32),  # fused L1 input
            ],
        ),
        compiler_params=pltpu.CompilerParams(
            dimension_semantics=("arbitrary",)),
    )(*args)

    # FC head runs once on the last hidden state; kept in XLA so the kernel
    # output stays lane-dense (no 1-lane masked stores in the kernel).
    h_last = h_last_pad[:B, :HIDDEN]
    z = jnp.maximum(h_last @ params["fc1w"].T + params["fc1b"], 0.0)  # ReLU
    # Dropout(0.2): eval-mode identity.
    return z @ params["fc2w"].T + params["fc2b"]


# ---------------------------------------------------------------------------
# Parameters + pure-JAX reference (mirrors PyTorch nn.LSTM(2 layers) + FC).
# ---------------------------------------------------------------------------
def init_params(key):
    ks = jax.random.split(key, 14)
    k_lstm = 1.0 / jnp.sqrt(jnp.float32(HIDDEN))

    def unif(k, shape, bound):
        return jax.random.uniform(k, shape, jnp.float32, -bound, bound)

    p = {
        "wih0": unif(ks[0], (4 * HIDDEN, INPUT_SIZE), k_lstm),
        "whh0": unif(ks[1], (4 * HIDDEN, HIDDEN), k_lstm),
        "b_ih0": unif(ks[2], (4 * HIDDEN,), k_lstm),
        "b_hh0": unif(ks[3], (4 * HIDDEN,), k_lstm),
        "wih1": unif(ks[4], (4 * HIDDEN, HIDDEN), k_lstm),
        "whh1": unif(ks[5], (4 * HIDDEN, HIDDEN), k_lstm),
        "b_ih1": unif(ks[6], (4 * HIDDEN,), k_lstm),
        "b_hh1": unif(ks[7], (4 * HIDDEN,), k_lstm),
    }
    k1 = 1.0 / jnp.sqrt(jnp.float32(HIDDEN))
    k2 = 1.0 / jnp.sqrt(jnp.float32(FC_HID))
    p["fc1w"] = unif(ks[8], (FC_HID, HIDDEN), k1)
    p["fc1b"] = unif(ks[9], (FC_HID,), k1)
    p["fc2w"] = unif(ks[10], (1, FC_HID), k2)
    p["fc2b"] = unif(ks[11], (1,), k2)
    return p


def reference_forward(x, p):
    B, H = x.shape[0], HIDDEN
    wih0_t, whh0_t = p["wih0"].T, p["whh0"].T
    wih1_t, whh1_t = p["wih1"].T, p["whh1"].T
    b0 = (p["b_ih0"] + p["b_hh0"])[None, :]
    b1 = (p["b_ih1"] + p["b_hh1"])[None, :]

    def cell(x_t, h, c, w_ih_t, w_hh_t, b):
        g = x_t @ w_ih_t + h @ w_hh_t + b
        i = jax.nn.sigmoid(g[:, 0 * H:1 * H])
        f = jax.nn.sigmoid(g[:, 1 * H:2 * H])
        gg = jnp.tanh(g[:, 2 * H:3 * H])
        o = jax.nn.sigmoid(g[:, 3 * H:4 * H])
        c_new = f * c + i * gg
        return o * jnp.tanh(c_new), c_new

    def step(carry, x_t):
        h1, c1, h2, c2 = carry
        h1, c1 = cell(x_t, h1, c1, wih0_t, whh0_t, b0)
        h2, c2 = cell(h1, h2, c2, wih1_t, whh1_t, b1)
        return (h1, c1, h2, c2), None

    z0 = jnp.zeros((B, H), jnp.float32)
    (_, _, h2, _), _ = jax.lax.scan(step, (z0, z0, z0, z0),
                                    jnp.transpose(x, (1, 0, 2)))
    z = jnp.maximum(h2 @ p["fc1w"].T + p["fc1b"], 0.0)
    return z @ p["fc2w"].T + p["fc2b"]


if __name__ == "__main__":
    key = jax.random.PRNGKey(0)
    k_x, k_p = jax.random.split(key)

    B, T = 2, 8
    x = jax.random.normal(k_x, (B, T, INPUT_SIZE), jnp.float32)
    params = init_params(k_p)

    out = tool_wear_predictor(x, params)
    out = jax.block_until_ready(out)

    ref = reference_forward(x, params)
    assert out.shape == (B, 1)
    assert jnp.allclose(out, ref, atol=1e-5, rtol=1e-5), (out, ref)

    print("KERNEL_OK")
</pallas_src>

<mosaic_0001>
module attributes {stable_mosaic.version = 11 : i64} {
  func.func @tool_wear_kernel(%arg0: i32, %arg1: memref<64x10xf32, #tpu.memory_space<vmem>>, %arg2: memref<10x512xf32, #tpu.memory_space<vmem>>, %arg3: memref<1x512xf32, #tpu.memory_space<vmem>>, %arg4: memref<128x512xf32, #tpu.memory_space<vmem>>, %arg5: memref<256x512xf32, #tpu.memory_space<vmem>>, %arg6: memref<1x512xf32, #tpu.memory_space<vmem>>, %arg7: memref<8x128xf32, #tpu.memory_space<vmem>>, %arg8: memref<8x256xf32, #tpu.memory_space<vmem>>) attributes {dimension_semantics = [#tpu.dimension_semantics<arbitrary>], iteration_bounds = array<i64: 1>, scalar_prefetch = 0 : i64, scratch_operands = 1 : i64, tpu.core_type = #tpu.core_type<tc>, window_params = [{pipeline_mode = #tpu.pipeline_mode<synchronous>, transform_indices = @transform_0, window_bounds = array<i64: 64, 10>}, {pipeline_mode = #tpu.pipeline_mode<synchronous>, transform_indices = @transform_1, window_bounds = array<i64: 10, 512>}, {pipeline_mode = #tpu.pipeline_mode<synchronous>, transform_indices = @transform_2, window_bounds = array<i64: 1, 512>}, {pipeline_mode = #tpu.pipeline_mode<synchronous>, transform_indices = @transform_3, window_bounds = array<i64: 128, 512>}, {pipeline_mode = #tpu.pipeline_mode<synchronous>, transform_indices = @transform_4, window_bounds = array<i64: 256, 512>}, {pipeline_mode = #tpu.pipeline_mode<synchronous>, transform_indices = @transform_5, window_bounds = array<i64: 1, 512>}, {pipeline_mode = #tpu.pipeline_mode<synchronous>, transform_indices = @transform_6, window_bounds = array<i64: 8, 128>}]} {
    %c0 = arith.constant 0 : index
    %c0_0 = arith.constant 0 : index
    %0 = vector.load %arg1[%c0, %c0_0] : memref<64x10xf32, #tpu.memory_space<vmem>>, vector<64x10xf32>
    %c0_1 = arith.constant 0 : index
    %c0_2 = arith.constant 0 : index
    %1 = vector.load %arg2[%c0_1, %c0_2] : memref<10x512xf32, #tpu.memory_space<vmem>>, vector<10x512xf32>
    %cst = arith.constant dense<0.000000e+00> : vector<64x512xf32>
    %2 = tpu.matmul %0, %1, %cst {dimension_numbers = #tpu.dot_dimension_numbers<[1], [0], [0], [1], [0, 0, 1, 1], [], []>} : vector<64x10xf32>, vector<10x512xf32>, vector<64x512xf32> -> vector<64x512xf32>
    %c0_3 = arith.constant 0 : index
    %c0_4 = arith.constant 0 : index
    %3 = vector.load %arg3[%c0_3, %c0_4] : memref<1x512xf32, #tpu.memory_space<vmem>>, vector<1x512xf32>
    %4 = vector.broadcast %3 : vector<1x512xf32> to vector<64x512xf32>
    %5 = arith.addf %2, %4 : vector<64x512xf32>
    %c0_5 = arith.constant 0 : index
    %c0_6 = arith.constant 0 : index
    %6 = vector.load %arg4[%c0_5, %c0_6] : memref<128x512xf32, #tpu.memory_space<vmem>>, vector<128x512xf32>
    %c0_7 = arith.constant 0 : index
    %c0_8 = arith.constant 0 : index
    %7 = vector.load %arg5[%c0_7, %c0_8] : memref<256x512xf32, #tpu.memory_space<vmem>>, vector<256x512xf32>
    %c0_9 = arith.constant 0 : index
    %c0_10 = arith.constant 0 : index
    %8 = vector.load %arg6[%c0_9, %c0_10] : memref<1x512xf32, #tpu.memory_space<vmem>>, vector<1x512xf32>
    %cst_11 = arith.constant 0.000000e+00 : f32
    %9 = vector.broadcast %cst_11 : f32 to vector<8x128xf32>
    %c0_12 = arith.constant 0 : index
    %c128 = arith.constant 128 : index
    %10 = vector.load %arg8[%c0_12, %c128] : memref<8x256xf32, #tpu.memory_space<vmem>>, vector<8x128xf32>
    tpu.vector_store %arg8[%c0_12, %c128], %9 {strides = array<i32>} : memref<8x256xf32, #tpu.memory_space<vmem>>, vector<8x128xf32>,
    %11 = vector.extract_strided_slice %5 {offsets = [0, 0], sizes = [8, 512], strides = [1, 1]} : vector<64x512xf32> to vector<8x512xf32>
    %cst_13 = arith.constant dense<0.000000e+00> : vector<8x512xf32>
    %12 = tpu.matmul %9, %6, %cst_13 {dimension_numbers = #tpu.dot_dimension_numbers<[1], [0], [0], [1], [0, 0, 1, 1], [], []>} : vector<8x128xf32>, vector<128x512xf32>, vector<8x512xf32> -> vector<8x512xf32>
    %13 = arith.addf %11, %12 : vector<8x512xf32>
    %14 = vector.extract_strided_slice %13 {offsets = [0, 0], sizes = [8, 128], strides = [1, 1]} : vector<8x512xf32> to vector<8x128xf32>
    %15 = arith.negf %14 : vector<8x128xf32>
    %16 = math.exp %15 : vector<8x128xf32>
    %cst_14 = arith.constant 1.000000e+00 : f32
    %17 = vector.broadcast %cst_14 : f32 to vector<8x128xf32>
    %18 = arith.addf %17, %16 : vector<8x128xf32>
    %19 = arith.divf %17, %18 : vector<8x128xf32>
    %20 = vector.extract_strided_slice %13 {offsets = [0, 128], sizes = [8, 128], strides = [1, 1]} : vector<8x512xf32> to vector<8x128xf32>
    %21 = arith.negf %20 : vector<8x128xf32>
    %22 = math.exp %21 : vector<8x128xf32>
    %cst_15 = arith.constant 1.000000e+00 : f32
    %23 = vector.broadcast %cst_15 : f32 to vector<8x128xf32>
    %24 = arith.addf %23, %22 : vector<8x128xf32>
    %25 = arith.divf %23, %24 : vector<8x128xf32>
    %26 = vector.extract_strided_slice %13 {offsets = [0, 256], sizes = [8, 128], strides = [1, 1]} : vector<8x512xf32> to vector<8x128xf32>
    %27 = math.tanh %26 : vector<8x128xf32>
    %28 = vector.extract_strided_slice %13 {offsets = [0, 384], sizes = [8, 128], strides = [1, 1]} : vector<8x512xf32> to vector<8x128xf32>
    %29 = arith.negf %28 : vector<8x128xf32>
    %30 = math.exp %29 : vector<8x128xf32>
    %cst_16 = arith.constant 1.000000e+00 : f32
    %31 = vector.broadcast %cst_16 : f32 to vector<8x128xf32>
    %32 = arith.addf %31, %30 : vector<8x128xf32>
    %33 = arith.divf %31, %32 : vector<8x128xf32>
    %34 = arith.mulf %25, %9 : vector<8x128xf32>
    %35 = arith.mulf %19, %27 : vector<8x128xf32>
    %36 = arith.addf %34, %35 : vector<8x128xf32>
    %37 = math.tanh %36 : vector<8x128xf32>
    %38 = arith.mulf %33, %37 : vector<8x128xf32>
    %c0_17 = arith.constant 0 : index
    %c0_18 = arith.constant 0 : index
    %39 = vector.load %arg8[%c0_17, %c0_18] : memref<8x256xf32, #tpu.memory_space<vmem>>, vector<8x128xf32>
    tpu.vector_store %arg8[%c0_17, %c0_18], %38 {strides = array<i32>} : memref<8x256xf32, #tpu.memory_space<vmem>>, vector<8x128xf32>,
    %c0_19 = arith.constant 0 : index
    %c0_20 = arith.constant 0 : index
    %40 = vector.load %arg8[%c0_19, %c0_20] : memref<8x256xf32, #tpu.memory_space<vmem>>, vector<8x256xf32>
    %cst_21 = arith.constant dense<0.000000e+00> : vector<8x512xf32>
    %41 = tpu.matmul %40, %7, %cst_21 {dimension_numbers = #tpu.dot_dimension_numbers<[1], [0], [0], [1], [0, 0, 1, 1], [], []>} : vector<8x256xf32>, vector<256x512xf32>, vector<8x512xf32> -> vector<8x512xf32>
    %42 = vector.broadcast %8 : vector<1x512xf32> to vector<8x512xf32>
    %43 = arith.addf %41, %42 : vector<8x512xf32>
    %44 = vector.extract_strided_slice %43 {offsets = [0, 0], sizes = [8, 128], strides = [1, 1]} : vector<8x512xf32> to vector<8x128xf32>
    %45 = arith.negf %44 : vector<8x128xf32>
    %46 = math.exp %45 : vector<8x128xf32>
    %cst_22 = arith.constant 1.000000e+00 : f32
    %47 = vector.broadcast %cst_22 : f32 to vector<8x128xf32>
    %48 = arith.addf %47, %46 : vector<8x128xf32>
    %49 = arith.divf %47, %48 : vector<8x128xf32>
    %50 = vector.extract_strided_slice %43 {offsets = [0, 128], sizes = [8, 128], strides = [1, 1]} : vector<8x512xf32> to vector<8x128xf32>
    %51 = arith.negf %50 : vector<8x128xf32>
    %52 = math.exp %51 : vector<8x128xf32>
    %cst_23 = arith.constant 1.000000e+00 : f32
    %53 = vector.broadcast %cst_23 : f32 to vector<8x128xf32>
    %54 = arith.addf %53, %52 : vector<8x128xf32>
    %55 = arith.divf %53, %54 : vector<8x128xf32>
    %56 = vector.extract_strided_slice %43 {offsets = [0, 256], sizes = [8, 128], strides = [1, 1]} : vector<8x512xf32> to vector<8x128xf32>
    %57 = math.tanh %56 : vector<8x128xf32>
    %58 = vector.extract_strided_slice %43 {offsets = [0, 384], sizes = [8, 128], strides = [1, 1]} : vector<8x512xf32> to vector<8x128xf32>
    %59 = arith.negf %58 : vector<8x128xf32>
    %60 = math.exp %59 : vector<8x128xf32>
    %cst_24 = arith.constant 1.000000e+00 : f32
    %61 = vector.broadcast %cst_24 : f32 to vector<8x128xf32>
    %62 = arith.addf %61, %60 : vector<8x128xf32>
    %63 = arith.divf %61, %62 : vector<8x128xf32>
    %64 = arith.mulf %55, %9 : vector<8x128xf32>
    %65 = arith.mulf %49, %57 : vector<8x128xf32>
    %66 = arith.addf %64, %65 : vector<8x128xf32>
    %67 = math.tanh %66 : vector<8x128xf32>
    %68 = arith.mulf %63, %67 : vector<8x128xf32>
    %c0_25 = arith.constant 0 : index
    %c128_26 = arith.constant 128 : index
    %69 = vector.load %arg8[%c0_25, %c128_26] : memref<8x256xf32, #tpu.memory_space<vmem>>, vector<8x128xf32>
    tpu.vector_store %arg8[%c0_25, %c128_26], %68 {strides = array<i32>} : memref<8x256xf32, #tpu.memory_space<vmem>>, vector<8x128xf32>,
    %70 = vector.extract_strided_slice %5 {offsets = [8, 0], sizes = [8, 512], strides = [1, 1]} : vector<64x512xf32> to vector<8x512xf32>
    %cst_27 = arith.constant dense<0.000000e+00> : vector<8x512xf32>
    %71 = tpu.matmul %38, %6, %cst_27 {dimension_numbers = #tpu.dot_dimension_numbers<[1], [0], [0], [1], [0, 0, 1, 1], [], []>} : vector<8x128xf32>, vector<128x512xf32>, vector<8x512xf32> -> vector<8x512xf32>
    %72 = arith.addf %70, %71 : vector<8x512xf32>
    %73 = vector.extract_strided_slice %72 {offsets = [0, 0], sizes = [8, 128], strides = [1, 1]} : vector<8x512xf32> to vector<8x128xf32>
    %74 = arith.negf %73 : vector<8x128xf32>
    %75 = math.exp %74 : vector<8x128xf32>
    %cst_28 = arith.constant 1.000000e+00 : f32
    %76 = vector.broadcast %cst_28 : f32 to vector<8x128xf32>
    %77 = arith.addf %76, %75 : vector<8x128xf32>
    %78 = arith.divf %76, %77 : vector<8x128xf32>
    %79 = vector.extract_strided_slice %72 {offsets = [0, 128], sizes = [8, 128], strides = [1, 1]} : vector<8x512xf32> to vector<8x128xf32>
    %80 = arith.negf %79 : vector<8x128xf32>
    %81 = math.exp %80 : vector<8x128xf32>
    %cst_29 = arith.constant 1.000000e+00 : f32
    %82 = vector.broadcast %cst_29 : f32 to vector<8x128xf32>
    %83 = arith.addf %82, %81 : vector<8x128xf32>
    %84 = arith.divf %82, %83 : vector<8x128xf32>
    %85 = vector.extract_strided_slice %72 {offsets = [0, 256], sizes = [8, 128], strides = [1, 1]} : vector<8x512xf32> to vector<8x128xf32>
    %86 = math.tanh %85 : vector<8x128xf32>
    %87 = vector.extract_strided_slice %72 {offsets = [0, 384], sizes = [8, 128], strides = [1, 1]} : vector<8x512xf32> to vector<8x128xf32>
    %88 = arith.negf %87 : vector<8x128xf32>
    %89 = math.exp %88 : vector<8x128xf32>
    %cst_30 = arith.constant 1.000000e+00 : f32
    %90 = vector.broadcast %cst_30 : f32 to vector<8x128xf32>
    %91 = arith.addf %90, %89 : vector<8x128xf32>
    %92 = arith.divf %90, %91 : vector<8x128xf32>
    %93 = arith.mulf %84, %36 : vector<8x128xf32>
    %94 = arith.mulf %78, %86 : vector<8x128xf32>
    %95 = arith.addf %93, %94 : vector<8x128xf32>
    %96 = math.tanh %95 : vector<8x128xf32>
    %97 = arith.mulf %92, %96 : vector<8x128xf32>
    %c0_31 = arith.constant 0 : index
    %c0_32 = arith.constant 0 : index
    %98 = vector.load %arg8[%c0_31, %c0_32] : memref<8x256xf32, #tpu.memory_space<vmem>>, vector<8x128xf32>
    tpu.vector_store %arg8[%c0_31, %c0_32], %97 {strides = array<i32>} : memref<8x256xf32, #tpu.memory_space<vmem>>, vector<8x128xf32>,
    %c0_33 = arith.constant 0 : index
    %c0_34 = arith.constant 0 : index
    %99 = vector.load %arg8[%c0_33, %c0_34] : memref<8x256xf32, #tpu.memory_space<vmem>>, vector<8x256xf32>
    %cst_35 = arith.constant dense<0.000000e+00> : vector<8x512xf32>
    %100 = tpu.matmul %99, %7, %cst_35 {dimension_numbers = #tpu.dot_dimension_numbers<[1], [0], [0], [1], [0, 0, 1, 1], [], []>} : vector<8x256xf32>, vector<256x512xf32>, vector<8x512xf32> -> vector<8x512xf32>
    %101 = vector.broadcast %8 : vector<1x512xf32> to vector<8x512xf32>
    %102 = arith.addf %100, %101 : vector<8x512xf32>
    %103 = vector.extract_strided_slice %102 {offsets = [0, 0], sizes = [8, 128], strides = [1, 1]} : vector<8x512xf32> to vector<8x128xf32>
    %104 = arith.negf %103 : vector<8x128xf32>
    %105 = math.exp %104 : vector<8x128xf32>
    %cst_36 = arith.constant 1.000000e+00 : f32
    %106 = vector.broadcast %cst_36 : f32 to vector<8x128xf32>
    %107 = arith.addf %106, %105 : vector<8x128xf32>
    %108 = arith.divf %106, %107 : vector<8x128xf32>
    %109 = vector.extract_strided_slice %102 {offsets = [0, 128], sizes = [8, 128], strides = [1, 1]} : vector<8x512xf32> to vector<8x128xf32>
    %110 = arith.negf %109 : vector<8x128xf32>
    %111 = math.exp %110 : vector<8x128xf32>
    %cst_37 = arith.constant 1.000000e+00 : f32
    %112 = vector.broadcast %cst_37 : f32 to vector<8x128xf32>
    %113 = arith.addf %112, %111 : vector<8x128xf32>
    %114 = arith.divf %112, %113 : vector<8x128xf32>
    %115 = vector.extract_strided_slice %102 {offsets = [0, 256], sizes = [8, 128], strides = [1, 1]} : vector<8x512xf32> to vector<8x128xf32>
    %116 = math.tanh %115 : vector<8x128xf32>
    %117 = vector.extract_strided_slice %102 {offsets = [0, 384], sizes = [8, 128], strides = [1, 1]} : vector<8x512xf32> to vector<8x128xf32>
    %118 = arith.negf %117 : vector<8x128xf32>
    %119 = math.exp %118 : vector<8x128xf32>
    %cst_38 = arith.constant 1.000000e+00 : f32
    %120 = vector.broadcast %cst_38 : f32 to vector<8x128xf32>
    %121 = arith.addf %120, %119 : vector<8x128xf32>
    %122 = arith.divf %120, %121 : vector<8x128xf32>
    %123 = arith.mulf %114, %66 : vector<8x128xf32>
    %124 = arith.mulf %108, %116 : vector<8x128xf32>
    %125 = arith.addf %123, %124 : vector<8x128xf32>
    %126 = math.tanh %125 : vector<8x128xf32>
    %127 = arith.mulf %122, %126 : vector<8x128xf32>
    %c0_39 = arith.constant 0 : index
    %c128_40 = arith.constant 128 : index
    %128 = vector.load %arg8[%c0_39, %c128_40] : memref<8x256xf32, #tpu.memory_space<vmem>>, vector<8x128xf32>
    tpu.vector_store %arg8[%c0_39, %c128_40], %127 {strides = array<i32>} : memref<8x256xf32, #tpu.memory_space<vmem>>, vector<8x128xf32>,
    %129 = vector.extract_strided_slice %5 {offsets = [16, 0], sizes = [8, 512], strides = [1, 1]} : vector<64x512xf32> to vector<8x512xf32>
    %cst_41 = arith.constant dense<0.000000e+00> : vector<8x512xf32>
    %130 = tpu.matmul %97, %6, %cst_41 {dimension_numbers = #tpu.dot_dimension_numbers<[1], [0], [0], [1], [0, 0, 1, 1], [], []>} : vector<8x128xf32>, vector<128x512xf32>, vector<8x512xf32> -> vector<8x512xf32>
    %131 = arith.addf %129, %130 : vector<8x512xf32>
    %132 = vector.extract_strided_slice %131 {offsets = [0, 0], sizes = [8, 128], strides = [1, 1]} : vector<8x512xf32> to vector<8x128xf32>
    %133 = arith.negf %132 : vector<8x128xf32>
    %134 = math.exp %133 : vector<8x128xf32>
    %cst_42 = arith.constant 1.000000e+00 : f32
    %135 = vector.broadcast %cst_42 : f32 to vector<8x128xf32>
    %136 = arith.addf %135, %134 : vector<8x128xf32>
    %137 = arith.divf %135, %136 : vector<8x128xf32>
    %138 = vector.extract_strided_slice %131 {offsets = [0, 128], sizes = [8, 128], strides = [1, 1]} : vector<8x512xf32> to vector<8x128xf32>
    %139 = arith.negf %138 : vector<8x128xf32>
    %140 = math.exp %139 : vector<8x128xf32>
    %cst_43 = arith.constant 1.000000e+00 : f32
    %141 = vector.broadcast %cst_43 : f32 to vector<8x128xf32>
    %142 = arith.addf %141, %140 : vector<8x128xf32>
    %143 = arith.divf %141, %142 : vector<8x128xf32>
    %144 = vector.extract_strided_slice %131 {offsets = [0, 256], sizes = [8, 128], strides = [1, 1]} : vector<8x512xf32> to vector<8x128xf32>
    %145 = math.tanh %144 : vector<8x128xf32>
    %146 = vector.extract_strided_slice %131 {offsets = [0, 384], sizes = [8, 128], strides = [1, 1]} : vector<8x512xf32> to vector<8x128xf32>
    %147 = arith.negf %146 : vector<8x128xf32>
    %148 = math.exp %147 : vector<8x128xf32>
    %cst_44 = arith.constant 1.000000e+00 : f32
    %149 = vector.broadcast %cst_44 : f32 to vector<8x128xf32>
    %150 = arith.addf %149, %148 : vector<8x128xf32>
    %151 = arith.divf %149, %150 : vector<8x128xf32>
    %152 = arith.mulf %143, %95 : vector<8x128xf32>
    %153 = arith.mulf %137, %145 : vector<8x128xf32>
    %154 = arith.addf %152, %153 : vector<8x128xf32>
    %155 = math.tanh %154 : vector<8x128xf32>
    %156 = arith.mulf %151, %155 : vector<8x128xf32>
    %c0_45 = arith.constant 0 : index
    %c0_46 = arith.constant 0 : index
    %157 = vector.load %arg8[%c0_45, %c0_46] : memref<8x256xf32, #tpu.memory_space<vmem>>, vector<8x128xf32>
    tpu.vector_store %arg8[%c0_45, %c0_46], %156 {strides = array<i32>} : memref<8x256xf32, #tpu.memory_space<vmem>>, vector<8x128xf32>,
    %c0_47 = arith.constant 0 : index
    %c0_48 = arith.constant 0 : index
    %158 = vector.load %arg8[%c0_47, %c0_48] : memref<8x256xf32, #tpu.memory_space<vmem>>, vector<8x256xf32>
    %cst_49 = arith.constant dense<0.000000e+00> : vector<8x512xf32>
    %159 = tpu.matmul %158, %7, %cst_49 {dimension_numbers = #tpu.dot_dimension_numbers<[1], [0], [0], [1], [0, 0, 1, 1], [], []>} : vector<8x256xf32>, vector<256x512xf32>, vector<8x512xf32> -> vector<8x512xf32>
    %160 = vector.broadcast %8 : vector<1x512xf32> to vector<8x512xf32>
    %161 = arith.addf %159, %160 : vector<8x512xf32>
    %162 = vector.extract_strided_slice %161 {offsets = [0, 0], sizes = [8, 128], strides = [1, 1]} : vector<8x512xf32> to vector<8x128xf32>
    %163 = arith.negf %162 : vector<8x128xf32>
    %164 = math.exp %163 : vector<8x128xf32>
    %cst_50 = arith.constant 1.000000e+00 : f32
    %165 = vector.broadcast %cst_50 : f32 to vector<8x128xf32>
    %166 = arith.addf %165, %164 : vector<8x128xf32>
    %167 = arith.divf %165, %166 : vector<8x128xf32>
    %168 = vector.extract_strided_slice %161 {offsets = [0, 128], sizes = [8, 128], strides = [1, 1]} : vector<8x512xf32> to vector<8x128xf32>
    %169 = arith.negf %168 : vector<8x128xf32>
    %170 = math.exp %169 : vector<8x128xf32>
    %cst_51 = arith.constant 1.000000e+00 : f32
    %171 = vector.broadcast %cst_51 : f32 to vector<8x128xf32>
    %172 = arith.addf %171, %170 : vector<8x128xf32>
    %173 = arith.divf %171, %172 : vector<8x128xf32>
    %174 = vector.extract_strided_slice %161 {offsets = [0, 256], sizes = [8, 128], strides = [1, 1]} : vector<8x512xf32> to vector<8x128xf32>
    %175 = math.tanh %174 : vector<8x128xf32>
    %176 = vector.extract_strided_slice %161 {offsets = [0, 384], sizes = [8, 128], strides = [1, 1]} : vector<8x512xf32> to vector<8x128xf32>
    %177 = arith.negf %176 : vector<8x128xf32>
    %178 = math.exp %177 : vector<8x128xf32>
    %cst_52 = arith.constant 1.000000e+00 : f32
    %179 = vector.broadcast %cst_52 : f32 to vector<8x128xf32>
    %180 = arith.addf %179, %178 : vector<8x128xf32>
    %181 = arith.divf %179, %180 : vector<8x128xf32>
    %182 = arith.mulf %173, %125 : vector<8x128xf32>
    %183 = arith.mulf %167, %175 : vector<8x128xf32>
    %184 = arith.addf %182, %183 : vector<8x128xf32>
    %185 = math.tanh %184 : vector<8x128xf32>
    %186 = arith.mulf %181, %185 : vector<8x128xf32>
    %c0_53 = arith.constant 0 : index
    %c128_54 = arith.constant 128 : index
    %187 = vector.load %arg8[%c0_53, %c128_54] : memref<8x256xf32, #tpu.memory_space<vmem>>, vector<8x128xf32>
    tpu.vector_store %arg8[%c0_53, %c128_54], %186 {strides = array<i32>} : memref<8x256xf32, #tpu.memory_space<vmem>>, vector<8x128xf32>,
    %188 = vector.extract_strided_slice %5 {offsets = [24, 0], sizes = [8, 512], strides = [1, 1]} : vector<64x512xf32> to vector<8x512xf32>
    %cst_55 = arith.constant dense<0.000000e+00> : vector<8x512xf32>
    %189 = tpu.matmul %156, %6, %cst_55 {dimension_numbers = #tpu.dot_dimension_numbers<[1], [0], [0], [1], [0, 0, 1, 1], [], []>} : vector<8x128xf32>, vector<128x512xf32>, vector<8x512xf32> -> vector<8x512xf32>
    %190 = arith.addf %188, %189 : vector<8x512xf32>
    %191 = vector.extract_strided_slice %190 {offsets = [0, 0], sizes = [8, 128], strides = [1, 1]} : vector<8x512xf32> to vector<8x128xf32>
    %192 = arith.negf %191 : vector<8x128xf32>
    %193 = math.exp %192 : vector<8x128xf32>
    %cst_56 = arith.constant 1.000000e+00 : f32
    %194 = vector.broadcast %cst_56 : f32 to vector<8x128xf32>
    %195 = arith.addf %194, %193 : vector<8x128xf32>
    %196 = arith.divf %194, %195 : vector<8x128xf32>
    %197 = vector.extract_strided_slice %190 {offsets = [0, 128], sizes = [8, 128], strides = [1, 1]} : vector<8x512xf32> to vector<8x128xf32>
    %198 = arith.negf %197 : vector<8x128xf32>
    %199 = math.exp %198 : vector<8x128xf32>
    %cst_57 = arith.constant 1.000000e+00 : f32
    %200 = vector.broadcast %cst_57 : f32 to vector<8x128xf32>
    %201 = arith.addf %200, %199 : vector<8x128xf32>
    %202 = arith.divf %200, %201 : vector<8x128xf32>
    %203 = vector.extract_strided_slice %190 {offsets = [0, 256], sizes = [8, 128], strides = [1, 1]} : vector<8x512xf32> to vector<8x128xf32>
    %204 = math.tanh %203 : vector<8x128xf32>
    %205 = vector.extract_strided_slice %190 {offsets = [0, 384], sizes = [8, 128], strides = [1, 1]} : vector<8x512xf32> to vector<8x128xf32>
    %206 = arith.negf %205 : vector<8x128xf32>
    %207 = math.exp %206 : vector<8x128xf32>
    %cst_58 = arith.constant 1.000000e+00 : f32
    %208 = vector.broadcast %cst_58 : f32 to vector<8x128xf32>
    %209 = arith.addf %208, %207 : vector<8x128xf32>
    %210 = arith.divf %208, %209 : vector<8x128xf32>
    %211 = arith.mulf %202, %154 : vector<8x128xf32>
    %212 = arith.mulf %196, %204 : vector<8x128xf32>
    %213 = arith.addf %211, %212 : vector<8x128xf32>
    %214 = math.tanh %213 : vector<8x128xf32>
    %215 = arith.mulf %210, %214 : vector<8x128xf32>
    %c0_59 = arith.constant 0 : index
    %c0_60 = arith.constant 0 : index
    %216 = vector.load %arg8[%c0_59, %c0_60] : memref<8x256xf32, #tpu.memory_space<vmem>>, vector<8x128xf32>
    tpu.vector_store %arg8[%c0_59, %c0_60], %215 {strides = array<i32>} : memref<8x256xf32, #tpu.memory_space<vmem>>, vector<8x128xf32>,
    %c0_61 = arith.constant 0 : index
    %c0_62 = arith.constant 0 : index
    %217 = vector.load %arg8[%c0_61, %c0_62] : memref<8x256xf32, #tpu.memory_space<vmem>>, vector<8x256xf32>
    %cst_63 = arith.constant dense<0.000000e+00> : vector<8x512xf32>
    %218 = tpu.matmul %217, %7, %cst_63 {dimension_numbers = #tpu.dot_dimension_numbers<[1], [0], [0], [1], [0, 0, 1, 1], [], []>} : vector<8x256xf32>, vector<256x512xf32>, vector<8x512xf32> -> vector<8x512xf32>
    %219 = vector.broadcast %8 : vector<1x512xf32> to vector<8x512xf32>
    %220 = arith.addf %218, %219 : vector<8x512xf32>
    %221 = vector.extract_strided_slice %220 {offsets = [0, 0], sizes = [8, 128], strides = [1, 1]} : vector<8x512xf32> to vector<8x128xf32>
    %222 = arith.negf %221 : vector<8x128xf32>
    %223 = math.exp %222 : vector<8x128xf32>
    %cst_64 = arith.constant 1.000000e+00 : f32
    %224 = vector.broadcast %cst_64 : f32 to vector<8x128xf32>
    %225 = arith.addf %224, %223 : vector<8x128xf32>
    %226 = arith.divf %224, %225 : vector<8x128xf32>
    %227 = vector.extract_strided_slice %220 {offsets = [0, 128], sizes = [8, 128], strides = [1, 1]} : vector<8x512xf32> to vector<8x128xf32>
    %228 = arith.negf %227 : vector<8x128xf32>
    %229 = math.exp %228 : vector<8x128xf32>
    %cst_65 = arith.constant 1.000000e+00 : f32
    %230 = vector.broadcast %cst_65 : f32 to vector<8x128xf32>
    %231 = arith.addf %230, %229 : vector<8x128xf32>
    %232 = arith.divf %230, %231 : vector<8x128xf32>
    %233 = vector.extract_strided_slice %220 {offsets = [0, 256], sizes = [8, 128], strides = [1, 1]} : vector<8x512xf32> to vector<8x128xf32>
    %234 = math.tanh %233 : vector<8x128xf32>
    %235 = vector.extract_strided_slice %220 {offsets = [0, 384], sizes = [8, 128], strides = [1, 1]} : vector<8x512xf32> to vector<8x128xf32>
    %236 = arith.negf %235 : vector<8x128xf32>
    %237 = math.exp %236 : vector<8x128xf32>
    %cst_66 = arith.constant 1.000000e+00 : f32
    %238 = vector.broadcast %cst_66 : f32 to vector<8x128xf32>
    %239 = arith.addf %238, %237 : vector<8x128xf32>
    %240 = arith.divf %238, %239 : vector<8x128xf32>
    %241 = arith.mulf %232, %184 : vector<8x128xf32>
    %242 = arith.mulf %226, %234 : vector<8x128xf32>
    %243 = arith.addf %241, %242 : vector<8x128xf32>
    %244 = math.tanh %243 : vector<8x128xf32>
    %245 = arith.mulf %240, %244 : vector<8x128xf32>
    %c0_67 = arith.constant 0 : index
    %c128_68 = arith.constant 128 : index
    %246 = vector.load %arg8[%c0_67, %c128_68] : memref<8x256xf32, #tpu.memory_space<vmem>>, vector<8x128xf32>
    tpu.vector_store %arg8[%c0_67, %c128_68], %245 {strides = array<i32>} : memref<8x256xf32, #tpu.memory_space<vmem>>, vector<8x128xf32>,
    %247 = vector.extract_strided_slice %5 {offsets = [32, 0], sizes = [8, 512], strides = [1, 1]} : vector<64x512xf32> to vector<8x512xf32>
    %cst_69 = arith.constant dense<0.000000e+00> : vector<8x512xf32>
    %248 = tpu.matmul %215, %6, %cst_69 {dimension_numbers = #tpu.dot_dimension_numbers<[1], [0], [0], [1], [0, 0, 1, 1], [], []>} : vector<8x128xf32>, vector<128x512xf32>, vector<8x512xf32> -> vector<8x512xf32>
    %249 = arith.addf %247, %248 : vector<8x512xf32>
    %250 = vector.extract_strided_slice %249 {offsets = [0, 0], sizes = [8, 128], strides = [1, 1]} : vector<8x512xf32> to vector<8x128xf32>
    %251 = arith.negf %250 : vector<8x128xf32>
    %252 = math.exp %251 : vector<8x128xf32>
    %cst_70 = arith.constant 1.000000e+00 : f32
    %253 = vector.broadcast %cst_70 : f32 to vector<8x128xf32>
    %254 = arith.addf %253, %252 : vector<8x128xf32>
    %255 = arith.divf %253, %254 : vector<8x128xf32>
    %256 = vector.extract_strided_slice %249 {offsets = [0, 128], sizes = [8, 128], strides = [1, 1]} : vector<8x512xf32> to vector<8x128xf32>
    %257 = arith.negf %256 : vector<8x128xf32>
    %258 = math.exp %257 : vector<8x128xf32>
    %cst_71 = arith.constant 1.000000e+00 : f32
    %259 = vector.broadcast %cst_71 : f32 to vector<8x128xf32>
    %260 = arith.addf %259, %258 : vector<8x128xf32>
    %261 = arith.divf %259, %260 : vector<8x128xf32>
    %262 = vector.extract_strided_slice %249 {offsets = [0, 256], sizes = [8, 128], strides = [1, 1]} : vector<8x512xf32> to vector<8x128xf32>
    %263 = math.tanh %262 : vector<8x128xf32>
    %264 = vector.extract_strided_slice %249 {offsets = [0, 384], sizes = [8, 128], strides = [1, 1]} : vector<8x512xf32> to vector<8x128xf32>
    %265 = arith.negf %264 : vector<8x128xf32>
    %266 = math.exp %265 : vector<8x128xf32>
    %cst_72 = arith.constant 1.000000e+00 : f32
    %267 = vector.broadcast %cst_72 : f32 to vector<8x128xf32>
    %268 = arith.addf %267, %266 : vector<8x128xf32>
    %269 = arith.divf %267, %268 : vector<8x128xf32>
    %270 = arith.mulf %261, %213 : vector<8x128xf32>
    %271 = arith.mulf %255, %263 : vector<8x128xf32>
    %272 = arith.addf %270, %271 : vector<8x128xf32>
    %273 = math.tanh %272 : vector<8x128xf32>
    %274 = arith.mulf %269, %273 : vector<8x128xf32>
    %c0_73 = arith.constant 0 : index
    %c0_74 = arith.constant 0 : index
    %275 = vector.load %arg8[%c0_73, %c0_74] : memref<8x256xf32, #tpu.memory_space<vmem>>, vector<8x128xf32>
    tpu.vector_store %arg8[%c0_73, %c0_74], %274 {strides = array<i32>} : memref<8x256xf32, #tpu.memory_space<vmem>>, vector<8x128xf32>,
    %c0_75 = arith.constant 0 : index
    %c0_76 = arith.constant 0 : index
    %276 = vector.load %arg8[%c0_75, %c0_76] : memref<8x256xf32, #tpu.memory_space<vmem>>, vector<8x256xf32>
    %cst_77 = arith.constant dense<0.000000e+00> : vector<8x512xf32>
    %277 = tpu.matmul %276, %7, %cst_77 {dimension_numbers = #tpu.dot_dimension_numbers<[1], [0], [0], [1], [0, 0, 1, 1], [], []>} : vector<8x256xf32>, vector<256x512xf32>, vector<8x512xf32> -> vector<8x512xf32>
    %278 = vector.broadcast %8 : vector<1x512xf32> to vector<8x512xf32>
    %279 = arith.addf %277, %278 : vector<8x512xf32>
    %280 = vector.extract_strided_slice %279 {offsets = [0, 0], sizes = [8, 128], strides = [1, 1]} : vector<8x512xf32> to vector<8x128xf32>
    %281 = arith.negf %280 : vector<8x128xf32>
    %282 = math.exp %281 : vector<8x128xf32>
    %cst_78 = arith.constant 1.000000e+00 : f32
    %283 = vector.broadcast %cst_78 : f32 to vector<8x128xf32>
    %284 = arith.addf %283, %282 : vector<8x128xf32>
    %285 = arith.divf %283, %284 : vector<8x128xf32>
    %286 = vector.extract_strided_slice %279 {offsets = [0, 128], sizes = [8, 128], strides = [1, 1]} : vector<8x512xf32> to vector<8x128xf32>
    %287 = arith.negf %286 : vector<8x128xf32>
    %288 = math.exp %287 : vector<8x128xf32>
    %cst_79 = arith.constant 1.000000e+00 : f32
    %289 = vector.broadcast %cst_79 : f32 to vector<8x128xf32>
    %290 = arith.addf %289, %288 : vector<8x128xf32>
    %291 = arith.divf %289, %290 : vector<8x128xf32>
    %292 = vector.extract_strided_slice %279 {offsets = [0, 256], sizes = [8, 128], strides = [1, 1]} : vector<8x512xf32> to vector<8x128xf32>
    %293 = math.tanh %292 : vector<8x128xf32>
    %294 = vector.extract_strided_slice %279 {offsets = [0, 384], sizes = [8, 128], strides = [1, 1]} : vector<8x512xf32> to vector<8x128xf32>
    %295 = arith.negf %294 : vector<8x128xf32>
    %296 = math.exp %295 : vector<8x128xf32>
    %cst_80 = arith.constant 1.000000e+00 : f32
    %297 = vector.broadcast %cst_80 : f32 to vector<8x128xf32>
    %298 = arith.addf %297, %296 : vector<8x128xf32>
    %299 = arith.divf %297, %298 : vector<8x128xf32>
    %300 = arith.mulf %291, %243 : vector<8x128xf32>
    %301 = arith.mulf %285, %293 : vector<8x128xf32>
    %302 = arith.addf %300, %301 : vector<8x128xf32>
    %303 = math.tanh %302 : vector<8x128xf32>
    %304 = arith.mulf %299, %303 : vector<8x128xf32>
    %c0_81 = arith.constant 0 : index
    %c128_82 = arith.constant 128 : index
    %305 = vector.load %arg8[%c0_81, %c128_82] : memref<8x256xf32, #tpu.memory_space<vmem>>, vector<8x128xf32>
    tpu.vector_store %arg8[%c0_81, %c128_82], %304 {strides = array<i32>} : memref<8x256xf32, #tpu.memory_space<vmem>>, vector<8x128xf32>,
    %306 = vector.extract_strided_slice %5 {offsets = [40, 0], sizes = [8, 512], strides = [1, 1]} : vector<64x512xf32> to vector<8x512xf32>
    %cst_83 = arith.constant dense<0.000000e+00> : vector<8x512xf32>
    %307 = tpu.matmul %274, %6, %cst_83 {dimension_numbers = #tpu.dot_dimension_numbers<[1], [0], [0], [1], [0, 0, 1, 1], [], []>} : vector<8x128xf32>, vector<128x512xf32>, vector<8x512xf32> -> vector<8x512xf32>
    %308 = arith.addf %306, %307 : vector<8x512xf32>
    %309 = vector.extract_strided_slice %308 {offsets = [0, 0], sizes = [8, 128], strides = [1, 1]} : vector<8x512xf32> to vector<8x128xf32>
    %310 = arith.negf %309 : vector<8x128xf32>
    %311 = math.exp %310 : vector<8x128xf32>
    %cst_84 = arith.constant 1.000000e+00 : f32
    %312 = vector.broadcast %cst_84 : f32 to vector<8x128xf32>
    %313 = arith.addf %312, %311 : vector<8x128xf32>
    %314 = arith.divf %312, %313 : vector<8x128xf32>
    %315 = vector.extract_strided_slice %308 {offsets = [0, 128], sizes = [8, 128], strides = [1, 1]} : vector<8x512xf32> to vector<8x128xf32>
    %316 = arith.negf %315 : vector<8x128xf32>
    %317 = math.exp %316 : vector<8x128xf32>
    %cst_85 = arith.constant 1.000000e+00 : f32
    %318 = vector.broadcast %cst_85 : f32 to vector<8x128xf32>
    %319 = arith.addf %318, %317 : vector<8x128xf32>
    %320 = arith.divf %318, %319 : vector<8x128xf32>
    %321 = vector.extract_strided_slice %308 {offsets = [0, 256], sizes = [8, 128], strides = [1, 1]} : vector<8x512xf32> to vector<8x128xf32>
    %322 = math.tanh %321 : vector<8x128xf32>
    %323 = vector.extract_strided_slice %308 {offsets = [0, 384], sizes = [8, 128], strides = [1, 1]} : vector<8x512xf32> to vector<8x128xf32>
    %324 = arith.negf %323 : vector<8x128xf32>
    %325 = math.exp %324 : vector<8x128xf32>
    %cst_86 = arith.constant 1.000000e+00 : f32
    %326 = vector.broadcast %cst_86 : f32 to vector<8x128xf32>
    %327 = arith.addf %326, %325 : vector<8x128xf32>
    %328 = arith.divf %326, %327 : vector<8x128xf32>
    %329 = arith.mulf %320, %272 : vector<8x128xf32>
    %330 = arith.mulf %314, %322 : vector<8x128xf32>
    %331 = arith.addf %329, %330 : vector<8x128xf32>
    %332 = math.tanh %331 : vector<8x128xf32>
    %333 = arith.mulf %328, %332 : vector<8x128xf32>
    %c0_87 = arith.constant 0 : index
    %c0_88 = arith.constant 0 : index
    %334 = vector.load %arg8[%c0_87, %c0_88] : memref<8x256xf32, #tpu.memory_space<vmem>>, vector<8x128xf32>
    tpu.vector_store %arg8[%c0_87, %c0_88], %333 {strides = array<i32>} : memref<8x256xf32, #tpu.memory_space<vmem>>, vector<8x128xf32>,
    %c0_89 = arith.constant 0 : index
    %c0_90 = arith.constant 0 : index
    %335 = vector.load %arg8[%c0_89, %c0_90] : memref<8x256xf32, #tpu.memory_space<vmem>>, vector<8x256xf32>
    %cst_91 = arith.constant dense<0.000000e+00> : vector<8x512xf32>
    %336 = tpu.matmul %335, %7, %cst_91 {dimension_numbers = #tpu.dot_dimension_numbers<[1], [0], [0], [1], [0, 0, 1, 1], [], []>} : vector<8x256xf32>, vector<256x512xf32>, vector<8x512xf32> -> vector<8x512xf32>
    %337 = vector.broadcast %8 : vector<1x512xf32> to vector<8x512xf32>
    %338 = arith.addf %336, %337 : vector<8x512xf32>
    %339 = vector.extract_strided_slice %338 {offsets = [0, 0], sizes = [8, 128], strides = [1, 1]} : vector<8x512xf32> to vector<8x128xf32>
    %340 = arith.negf %339 : vector<8x128xf32>
    %341 = math.exp %340 : vector<8x128xf32>
    %cst_92 = arith.constant 1.000000e+00 : f32
    %342 = vector.broadcast %cst_92 : f32 to vector<8x128xf32>
    %343 = arith.addf %342, %341 : vector<8x128xf32>
    %344 = arith.divf %342, %343 : vector<8x128xf32>
    %345 = vector.extract_strided_slice %338 {offsets = [0, 128], sizes = [8, 128], strides = [1, 1]} : vector<8x512xf32> to vector<8x128xf32>
    %346 = arith.negf %345 : vector<8x128xf32>
    %347 = math.exp %346 : vector<8x128xf32>
    %cst_93 = arith.constant 1.000000e+00 : f32
    %348 = vector.broadcast %cst_93 : f32 to vector<8x128xf32>
    %349 = arith.addf %348, %347 : vector<8x128xf32>
    %350 = arith.divf %348, %349 : vector<8x128xf32>
    %351 = vector.extract_strided_slice %338 {offsets = [0, 256], sizes = [8, 128], strides = [1, 1]} : vector<8x512xf32> to vector<8x128xf32>
    %352 = math.tanh %351 : vector<8x128xf32>
    %353 = vector.extract_strided_slice %338 {offsets = [0, 384], sizes = [8, 128], strides = [1, 1]} : vector<8x512xf32> to vector<8x128xf32>
    %354 = arith.negf %353 : vector<8x128xf32>
    %355 = math.exp %354 : vector<8x128xf32>
    %cst_94 = arith.constant 1.000000e+00 : f32
    %356 = vector.broadcast %cst_94 : f32 to vector<8x128xf32>
    %357 = arith.addf %356, %355 : vector<8x128xf32>
    %358 = arith.divf %356, %357 : vector<8x128xf32>
    %359 = arith.mulf %350, %302 : vector<8x128xf32>
    %360 = arith.mulf %344, %352 : vector<8x128xf32>
    %361 = arith.addf %359, %360 : vector<8x128xf32>
    %362 = math.tanh %361 : vector<8x128xf32>
    %363 = arith.mulf %358, %362 : vector<8x128xf32>
    %c0_95 = arith.constant 0 : index
    %c128_96 = arith.constant 128 : index
    %364 = vector.load %arg8[%c0_95, %c128_96] : memref<8x256xf32, #tpu.memory_space<vmem>>, vector<8x128xf32>
    tpu.vector_store %arg8[%c0_95, %c128_96], %363 {strides = array<i32>} : memref<8x256xf32, #tpu.memory_space<vmem>>, vector<8x128xf32>,
    %365 = vector.extract_strided_slice %5 {offsets = [48, 0], sizes = [8, 512], strides = [1, 1]} : vector<64x512xf32> to vector<8x512xf32>
    %cst_97 = arith.constant dense<0.000000e+00> : vector<8x512xf32>
    %366 = tpu.matmul %333, %6, %cst_97 {dimension_numbers = #tpu.dot_dimension_numbers<[1], [0], [0], [1], [0, 0, 1, 1], [], []>} : vector<8x128xf32>, vector<128x512xf32>, vector<8x512xf32> -> vector<8x512xf32>
    %367 = arith.addf %365, %366 : vector<8x512xf32>
    %368 = vector.extract_strided_slice %367 {offsets = [0, 0], sizes = [8, 128], strides = [1, 1]} : vector<8x512xf32> to vector<8x128xf32>
    %369 = arith.negf %368 : vector<8x128xf32>
    %370 = math.exp %369 : vector<8x128xf32>
    %cst_98 = arith.constant 1.000000e+00 : f32
    %371 = vector.broadcast %cst_98 : f32 to vector<8x128xf32>
    %372 = arith.addf %371, %370 : vector<8x128xf32>
    %373 = arith.divf %371, %372 : vector<8x128xf32>
    %374 = vector.extract_strided_slice %367 {offsets = [0, 128], sizes = [8, 128], strides = [1, 1]} : vector<8x512xf32> to vector<8x128xf32>
    %375 = arith.negf %374 : vector<8x128xf32>
    %376 = math.exp %375 : vector<8x128xf32>
    %cst_99 = arith.constant 1.000000e+00 : f32
    %377 = vector.broadcast %cst_99 : f32 to vector<8x128xf32>
    %378 = arith.addf %377, %376 : vector<8x128xf32>
    %379 = arith.divf %377, %378 : vector<8x128xf32>
    %380 = vector.extract_strided_slice %367 {offsets = [0, 256], sizes = [8, 128], strides = [1, 1]} : vector<8x512xf32> to vector<8x128xf32>
    %381 = math.tanh %380 : vector<8x128xf32>
    %382 = vector.extract_strided_slice %367 {offsets = [0, 384], sizes = [8, 128], strides = [1, 1]} : vector<8x512xf32> to vector<8x128xf32>
    %383 = arith.negf %382 : vector<8x128xf32>
    %384 = math.exp %383 : vector<8x128xf32>
    %cst_100 = arith.constant 1.000000e+00 : f32
    %385 = vector.broadcast %cst_100 : f32 to vector<8x128xf32>
    %386 = arith.addf %385, %384 : vector<8x128xf32>
    %387 = arith.divf %385, %386 : vector<8x128xf32>
    %388 = arith.mulf %379, %331 : vector<8x128xf32>
    %389 = arith.mulf %373, %381 : vector<8x128xf32>
    %390 = arith.addf %388, %389 : vector<8x128xf32>
    %391 = math.tanh %390 : vector<8x128xf32>
    %392 = arith.mulf %387, %391 : vector<8x128xf32>
    %c0_101 = arith.constant 0 : index
    %c0_102 = arith.constant 0 : index
    %393 = vector.load %arg8[%c0_101, %c0_102] : memref<8x256xf32, #tpu.memory_space<vmem>>, vector<8x128xf32>
    tpu.vector_store %arg8[%c0_101, %c0_102], %392 {strides = array<i32>} : memref<8x256xf32, #tpu.memory_space<vmem>>, vector<8x128xf32>,
    %c0_103 = arith.constant 0 : index
    %c0_104 = arith.constant 0 : index
    %394 = vector.load %arg8[%c0_103, %c0_104] : memref<8x256xf32, #tpu.memory_space<vmem>>, vector<8x256xf32>
    %cst_105 = arith.constant dense<0.000000e+00> : vector<8x512xf32>
    %395 = tpu.matmul %394, %7, %cst_105 {dimension_numbers = #tpu.dot_dimension_numbers<[1], [0], [0], [1], [0, 0, 1, 1], [], []>} : vector<8x256xf32>, vector<256x512xf32>, vector<8x512xf32> -> vector<8x512xf32>
    %396 = vector.broadcast %8 : vector<1x512xf32> to vector<8x512xf32>
    %397 = arith.addf %395, %396 : vector<8x512xf32>
    %398 = vector.extract_strided_slice %397 {offsets = [0, 0], sizes = [8, 128], strides = [1, 1]} : vector<8x512xf32> to vector<8x128xf32>
    %399 = arith.negf %398 : vector<8x128xf32>
    %400 = math.exp %399 : vector<8x128xf32>
    %cst_106 = arith.constant 1.000000e+00 : f32
    %401 = vector.broadcast %cst_106 : f32 to vector<8x128xf32>
    %402 = arith.addf %401, %400 : vector<8x128xf32>
    %403 = arith.divf %401, %402 : vector<8x128xf32>
    %404 = vector.extract_strided_slice %397 {offsets = [0, 128], sizes = [8, 128], strides = [1, 1]} : vector<8x512xf32> to vector<8x128xf32>
    %405 = arith.negf %404 : vector<8x128xf32>
    %406 = math.exp %405 : vector<8x128xf32>
    %cst_107 = arith.constant 1.000000e+00 : f32
    %407 = vector.broadcast %cst_107 : f32 to vector<8x128xf32>
    %408 = arith.addf %407, %406 : vector<8x128xf32>
    %409 = arith.divf %407, %408 : vector<8x128xf32>
    %410 = vector.extract_strided_slice %397 {offsets = [0, 256], sizes = [8, 128], strides = [1, 1]} : vector<8x512xf32> to vector<8x128xf32>
    %411 = math.tanh %410 : vector<8x128xf32>
    %412 = vector.extract_strided_slice %397 {offsets = [0, 384], sizes = [8, 128], strides = [1, 1]} : vector<8x512xf32> to vector<8x128xf32>
    %413 = arith.negf %412 : vector<8x128xf32>
    %414 = math.exp %413 : vector<8x128xf32>
    %cst_108 = arith.constant 1.000000e+00 : f32
    %415 = vector.broadcast %cst_108 : f32 to vector<8x128xf32>
    %416 = arith.addf %415, %414 : vector<8x128xf32>
    %417 = arith.divf %415, %416 : vector<8x128xf32>
    %418 = arith.mulf %409, %361 : vector<8x128xf32>
    %419 = arith.mulf %403, %411 : vector<8x128xf32>
    %420 = arith.addf %418, %419 : vector<8x128xf32>
    %421 = math.tanh %420 : vector<8x128xf32>
    %422 = arith.mulf %417, %421 : vector<8x128xf32>
    %c0_109 = arith.constant 0 : index
    %c128_110 = arith.constant 128 : index
    %423 = vector.load %arg8[%c0_109, %c128_110] : memref<8x256xf32, #tpu.memory_space<vmem>>, vector<8x128xf32>
    tpu.vector_store %arg8[%c0_109, %c128_110], %422 {strides = array<i32>} : memref<8x256xf32, #tpu.memory_space<vmem>>, vector<8x128xf32>,
    %424 = vector.extract_strided_slice %5 {offsets = [56, 0], sizes = [8, 512], strides = [1, 1]} : vector<64x512xf32> to vector<8x512xf32>
    %cst_111 = arith.constant dense<0.000000e+00> : vector<8x512xf32>
    %425 = tpu.matmul %392, %6, %cst_111 {dimension_numbers = #tpu.dot_dimension_numbers<[1], [0], [0], [1], [0, 0, 1, 1], [], []>} : vector<8x128xf32>, vector<128x512xf32>, vector<8x512xf32> -> vector<8x512xf32>
    %426 = arith.addf %424, %425 : vector<8x512xf32>
    %427 = vector.extract_strided_slice %426 {offsets = [0, 0], sizes = [8, 128], strides = [1, 1]} : vector<8x512xf32> to vector<8x128xf32>
    %428 = arith.negf %427 : vector<8x128xf32>
    %429 = math.exp %428 : vector<8x128xf32>
    %cst_112 = arith.constant 1.000000e+00 : f32
    %430 = vector.broadcast %cst_112 : f32 to vector<8x128xf32>
    %431 = arith.addf %430, %429 : vector<8x128xf32>
    %432 = arith.divf %430, %431 : vector<8x128xf32>
    %433 = vector.extract_strided_slice %426 {offsets = [0, 128], sizes = [8, 128], strides = [1, 1]} : vector<8x512xf32> to vector<8x128xf32>
    %434 = arith.negf %433 : vector<8x128xf32>
    %435 = math.exp %434 : vector<8x128xf32>
    %cst_113 = arith.constant 1.000000e+00 : f32
    %436 = vector.broadcast %cst_113 : f32 to vector<8x128xf32>
    %437 = arith.addf %436, %435 : vector<8x128xf32>
    %438 = arith.divf %436, %437 : vector<8x128xf32>
    %439 = vector.extract_strided_slice %426 {offsets = [0, 256], sizes = [8, 128], strides = [1, 1]} : vector<8x512xf32> to vector<8x128xf32>
    %440 = math.tanh %439 : vector<8x128xf32>
    %441 = vector.extract_strided_slice %426 {offsets = [0, 384], sizes = [8, 128], strides = [1, 1]} : vector<8x512xf32> to vector<8x128xf32>
    %442 = arith.negf %441 : vector<8x128xf32>
    %443 = math.exp %442 : vector<8x128xf32>
    %cst_114 = arith.constant 1.000000e+00 : f32
    %444 = vector.broadcast %cst_114 : f32 to vector<8x128xf32>
    %445 = arith.addf %444, %443 : vector<8x128xf32>
    %446 = arith.divf %444, %445 : vector<8x128xf32>
    %447 = arith.mulf %438, %390 : vector<8x128xf32>
    %448 = arith.mulf %432, %440 : vector<8x128xf32>
    %449 = arith.addf %447, %448 : vector<8x128xf32>
    %450 = math.tanh %449 : vector<8x128xf32>
    %451 = arith.mulf %446, %450 : vector<8x128xf32>
    %c0_115 = arith.constant 0 : index
    %c0_116 = arith.constant 0 : index
    %452 = vector.load %arg8[%c0_115, %c0_116] : memref<8x256xf32, #tpu.memory_space<vmem>>, vector<8x128xf32>
    tpu.vector_store %arg8[%c0_115, %c0_116], %451 {strides = array<i32>} : memref<8x256xf32, #tpu.memory_space<vmem>>, vector<8x128xf32>,
    %c0_117 = arith.constant 0 : index
    %c0_118 = arith.constant 0 : index
    %453 = vector.load %arg8[%c0_117, %c0_118] : memref<8x256xf32, #tpu.memory_space<vmem>>, vector<8x256xf32>
    %cst_119 = arith.constant dense<0.000000e+00> : vector<8x512xf32>
    %454 = tpu.matmul %453, %7, %cst_119 {dimension_numbers = #tpu.dot_dimension_numbers<[1], [0], [0], [1], [0, 0, 1, 1], [], []>} : vector<8x256xf32>, vector<256x512xf32>, vector<8x512xf32> -> vector<8x512xf32>
    %455 = vector.broadcast %8 : vector<1x512xf32> to vector<8x512xf32>
    %456 = arith.addf %454, %455 : vector<8x512xf32>
    %457 = vector.extract_strided_slice %456 {offsets = [0, 0], sizes = [8, 128], strides = [1, 1]} : vector<8x512xf32> to vector<8x128xf32>
    %458 = arith.negf %457 : vector<8x128xf32>
    %459 = math.exp %458 : vector<8x128xf32>
    %cst_120 = arith.constant 1.000000e+00 : f32
    %460 = vector.broadcast %cst_120 : f32 to vector<8x128xf32>
    %461 = arith.addf %460, %459 : vector<8x128xf32>
    %462 = arith.divf %460, %461 : vector<8x128xf32>
    %463 = vector.extract_strided_slice %456 {offsets = [0, 128], sizes = [8, 128], strides = [1, 1]} : vector<8x512xf32> to vector<8x128xf32>
    %464 = arith.negf %463 : vector<8x128xf32>
    %465 = math.exp %464 : vector<8x128xf32>
    %cst_121 = arith.constant 1.000000e+00 : f32
    %466 = vector.broadcast %cst_121 : f32 to vector<8x128xf32>
    %467 = arith.addf %466, %465 : vector<8x128xf32>
    %468 = arith.divf %466, %467 : vector<8x128xf32>
    %469 = vector.extract_strided_slice %456 {offsets = [0, 256], sizes = [8, 128], strides = [1, 1]} : vector<8x512xf32> to vector<8x128xf32>
    %470 = math.tanh %469 : vector<8x128xf32>
    %471 = vector.extract_strided_slice %456 {offsets = [0, 384], sizes = [8, 128], strides = [1, 1]} : vector<8x512xf32> to vector<8x128xf32>
    %472 = arith.negf %471 : vector<8x128xf32>
    %473 = math.exp %472 : vector<8x128xf32>
    %cst_122 = arith.constant 1.000000e+00 : f32
    %474 = vector.broadcast %cst_122 : f32 to vector<8x128xf32>
    %475 = arith.addf %474, %473 : vector<8x128xf32>
    %476 = arith.divf %474, %475 : vector<8x128xf32>
    %477 = arith.mulf %468, %420 : vector<8x128xf32>
    %478 = arith.mulf %462, %470 : vector<8x128xf32>
    %479 = arith.addf %477, %478 : vector<8x128xf32>
    %480 = math.tanh %479 : vector<8x128xf32>
    %481 = arith.mulf %476, %480 : vector<8x128xf32>
    %c0_123 = arith.constant 0 : index
    %c128_124 = arith.constant 128 : index
    %482 = vector.load %arg8[%c0_123, %c128_124] : memref<8x256xf32, #tpu.memory_space<vmem>>, vector<8x128xf32>
    tpu.vector_store %arg8[%c0_123, %c128_124], %481 {strides = array<i32>} : memref<8x256xf32, #tpu.memory_space<vmem>>, vector<8x128xf32>,
    %c0_125 = arith.constant 0 : index
    %c0_126 = arith.constant 0 : index
    %483 = vector.load %arg7[%c0_125, %c0_126] : memref<8x128xf32, #tpu.memory_space<vmem>>, vector<8x128xf32>
    tpu.vector_store %arg7[%c0_125, %c0_126], %481 {strides = array<i32>} : memref<8x128xf32, #tpu.memory_space<vmem>>, vector<8x128xf32>,
    return
  }
  func.func @transform_0(%arg0: i32) -> (i32, i32) {
    %c0_i32 = arith.constant 0 : i32
    %c0_i32_0 = arith.constant 0 : i32
    %c0_i32_1 = arith.constant 0 : i32
    return %c0_i32, %c0_i32_0 : i32, i32
  }
  func.func @transform_1(%arg0: i32) -> (i32, i32) {
    %c0_i32 = arith.constant 0 : i32
    %c0_i32_0 = arith.constant 0 : i32
    %c0_i32_1 = arith.constant 0 : i32
    return %c0_i32, %c0_i32_0 : i32, i32
  }
  func.func @transform_2(%arg0: i32) -> (i32, i32) {
    %c0_i32 = arith.constant 0 : i32
    %c0_i32_0 = arith.constant 0 : i32
    %c0_i32_1 = arith.constant 0 : i32
    return %c0_i32, %c0_i32_0 : i32, i32
  }
  func.func @transform_3(%arg0: i32) -> (i32, i32) {
    %c0_i32 = arith.constant 0 : i32
    %c0_i32_0 = arith.constant 0 : i32
    %c0_i32_1 = arith.constant 0 : i32
    return %c0_i32, %c0_i32_0 : i32, i32
  }
  func.func @transform_4(%arg0: i32) -> (i32, i32) {
    %c0_i32 = arith.constant 0 : i32
    %c0_i32_0 = arith.constant 0 : i32
    %c0_i32_1 = arith.constant 0 : i32
    return %c0_i32, %c0_i32_0 : i32, i32
  }
  func.func @transform_5(%arg0: i32) -> (i32, i32) {
    %c0_i32 = arith.constant 0 : i32
    %c0_i32_0 = arith.constant 0 : i32
    %c0_i32_1 = arith.constant 0 : i32
    return %c0_i32, %c0_i32_0 : i32, i32
  }
  func.func @transform_6(%arg0: i32) -> (i32, i32) {
    %c0_i32 = arith.constant 0 : i32
    %c0_i32_0 = arith.constant 0 : i32
    %c0_i32_1 = arith.constant 0 : i32
    return %c0_i32, %c0_i32_0 : i32, i32
  }
}

</mosaic_0001>

<llo_original>
// kernel: tpu_custom_call.1
$region0: #{tpu_custom_call.1}
  #allocation0 [shape = 'u32[]', space=smem, size = 0x4, offset = 0x4, fixed_abs, tag = 'smem constant byte address 0x4 - core index']
  #allocation1 [shape = 'u32[72,128]{1,0:T(1,128)}', space=vmem, size = 0x9000, scoped, tag = 'internal scratch']
  #allocation2 [shape = 'f32[8,256]{1,0:T(8,128)}', space=vmem, size = 0x2000, scoped, tag = 'scratch operand']
  %s0 = inlined_call_operand.vmem [shape: f32[64,10], index: 0, kind: input, shape index: {}]
  %s1 = inlined_call_operand.vmem [shape: f32[10,512], index: 1, kind: input, shape index: {}]
  %s2 = inlined_call_operand.vmem [shape: f32[1,512], index: 2, kind: input, shape index: {}]
  %s3 = inlined_call_operand.hbm [shape: f32[128,512], index: 3, kind: input, shape index: {}]
  %s4 = inlined_call_operand.hbm [shape: f32[256,512], index: 4, kind: input, shape index: {}]
  %s5 = inlined_call_operand.vmem [shape: f32[1,512], index: 5, kind: input, shape index: {}]
  %s6 = inlined_call_operand.hbm [shape: f32[8,128], index: 6, kind: output, shape index: {}]
  %s7 = sld [smem:[#allocation0]]
  $region42: #{tpu_custom_call.1} parent=0
    _
  %s9 = ssub.s32 1, %s7
  %s10 = scalar_select 0, %s9, %s7
  $region1: #{tpu_custom_call.1} parent=0
    #allocation3 [shape = 'u8[262144]{0}', space=vmem, size = 0x40000, scoped, tag = 'input window, operand 3, single buffered']
    #allocation4 [shape = 's32[1]{0}', space=sflag, size = 0x4, scoped, tag = 'scoped memory for tpu_custom_call.1']
    #allocation5 [shape = 's32[1]{0}', space=sflag, size = 0x4, scoped, tag = 'scoped memory for tpu_custom_call.1']
    #allocation6 [shape = 'u8[524288]{0}', space=vmem, size = 0x80000, scoped, tag = 'input window, operand 4, single buffered']
    #allocation7 [shape = 's32[1]{0}', space=sflag, size = 0x4, scoped, tag = 'scoped memory for tpu_custom_call.1']
    #allocation8 [shape = 'u8[4096]{0}', space=vmem, size = 0x1000, scoped, tag = 'output window, operand 0, single buffered']
    %11 = vsyncpa [#allocation4], 0
    %12 = vsyncpa [#allocation7], 0
    %13 = vsyncpa [#allocation5], 0
    // Predicated region
    $region2: #{tpu_custom_call.1} parent=1 // pred_check
      _
    $region3: #{tpu_custom_call.1} parent=1 // pred_check_branch
      %15 = sbr.rel (0) target = $region5
    $region4: #{tpu_custom_call.1} parent=1 // pred_region
      _
    $region5: #{tpu_custom_call.1} parent=1 // pred_fallthru
      _
    // Predicated region
    $region6: #{tpu_custom_call.1} parent=1 // pred_check
      _
    $region7: #{tpu_custom_call.1} parent=1 // pred_check_branch
      %17 = sbr.rel (0) target = $region9
    $region8: #{tpu_custom_call.1} parent=1 // pred_region
      _
    $region9: #{tpu_custom_call.1} parent=1 // pred_fallthru
      _
    // Predicated region
    $region10: #{tpu_custom_call.1} parent=1 // pred_check
      _
    $region11: #{tpu_custom_call.1} parent=1 // pred_check_branch
      %19 = sbr.rel (0) target = $region13
    $region12: #{tpu_custom_call.1} parent=1 // pred_region
      _
    $region13: #{tpu_custom_call.1} parent=1 // pred_fallthru
      _
    // Predicated region
    $region14: #{tpu_custom_call.1} parent=1 // pred_check
      _
    $region15: #{tpu_custom_call.1} parent=1 // pred_check_branch
      %21 = sbr.rel (0) target = $region17
    $region16: #{tpu_custom_call.1} parent=1 // pred_region
      %23 = vsyncadd [#allocation4], 0
      %s24 = sshll.u32 %s3, 4
      %s25 = int_to_ptr.hbm [resolvable:$true] %s24
      %s26 = sshll.u32 [#allocation3], 4
      %s27 = int_to_ptr.vmem [resolvable:$true] %s26
      %32 = dma.hbm_to_vmem [thread:$0]  %s25, 8192, %s27, [#allocation4], 512, 512, 32
    $region17: #{tpu_custom_call.1} parent=1 // pred_fallthru
      _
    // Predicated region
    $region18: #{tpu_custom_call.1} parent=1 // pred_check
      _
    $region19: #{tpu_custom_call.1} parent=1 // pred_check_branch
      %34 = sbr.rel (0) target = $region21
    $region20: #{tpu_custom_call.1} parent=1 // pred_region
      %36 = vsyncadd [#allocation7], 0
      %s37 = sshll.u32 %s4, 4
      %s38 = int_to_ptr.hbm [resolvable:$true] %s37
      %s39 = sshll.u32 [#allocation6], 4
      %s40 = int_to_ptr.vmem [resolvable:$true] %s39
      %45 = dma.hbm_to_vmem [thread:$0]  %s38, 16384, %s40, [#allocation7], 512, 512, 32
    $region21: #{tpu_custom_call.1} parent=1 // pred_fallthru
      _
    // Predicated region
    $region22: #{tpu_custom_call.1} parent=1 // pred_check
      _
    $region23: #{tpu_custom_call.1} parent=1 // pred_check_branch
      %47 = sbr.rel (0) target = $region25
    $region24: #{tpu_custom_call.1} parent=1 // pred_region
      _
    $region25: #{tpu_custom_call.1} parent=1 // pred_fallthru
      _
    // Predicated region
    $region26: #{tpu_custom_call.1} parent=1 // pred_check
      _
    $region27: #{tpu_custom_call.1} parent=1 // pred_check_branch
      %49 = sbr.rel (0) target = $region29
    $region28: #{tpu_custom_call.1} parent=1 // pred_region
      %51 = dma.done [#allocation4], 8192
    $region29: #{tpu_custom_call.1} parent=1 // pred_fallthru
      _
    // Predicated region
    $region30: #{tpu_custom_call.1} parent=1 // pred_check
      _
    $region31: #{tpu_custom_call.1} parent=1 // pred_check_branch
      %53 = sbr.rel (0) target = $region33
    $region32: #{tpu_custom_call.1} parent=1 // pred_region
      %55 = dma.done [#allocation7], 16384
    $region33: #{tpu_custom_call.1} parent=1 // pred_fallthru
      _
    %v56 = vld [vmem:[%s0] sm:$0xff]
    %v57 = vld [vmem:[%s0 + $0x8] sm:$0xff]
    %v58 = vld [vmem:[%s0 + $0x10] sm:$0xff]
    %v59 = vld [vmem:[%s0 + $0x18] sm:$0xff]
    %v60 = vld [vmem:[%s0 + $0x20] sm:$0xff]
    %v61 = vld [vmem:[%s0 + $0x28] sm:$0xff]
    %v62 = vld [vmem:[%s0 + $0x30] sm:$0xff]
    %v63 = vld [vmem:[%s0 + $0x38] sm:$0xff]
    %v64 = vld [vmem:[%s1] sm:$0xff]
    %v65 = vld [vmem:[%s1 + $0x8] sm:$0xff]
    %v66 = vld [vmem:[%s1 + $0x10] sm:$0xff]
    %v67 = vld [vmem:[%s1 + $0x18] sm:$0xff]
    %v68 = vld [vmem:[%s1 + $0x20] sm:$0x3]
    %v69 = vld [vmem:[%s1 + $0x28] sm:$0x3]
    %v70 = vld [vmem:[%s1 + $0x30] sm:$0x3]
    %v71 = vld [vmem:[%s1 + $0x38] sm:$0x3]
    %v72 = vld [vmem:[%s2] sm:$0xf]
    %v74 = vperm.slane %v72, 0
    %v75 = vperm.slane %v72, 1
    %v76 = vperm.slane %v72, 2
    %v77 = vperm.slane %v72, 3
    %vm82 = vcmask 80896
    %v84 = vsel %vm82, %v56, 0
    %v87 = vsel %vm82, %v57, 0
    %v90 = vsel %vm82, %v58, 0
    %v93 = vsel %vm82, %v59, 0
    %v96 = vsel %vm82, %v60, 0
    %v99 = vsel %vm82, %v61, 0
    %v102 = vsel %vm82, %v62, 0
    %v105 = vsel %vm82, %v63, 0
    %vm107 = vcmask 1041408
    %v109 = vsel %vm107, %v68, 0
    %v112 = vsel %vm107, %v69, 0
    %v115 = vsel %vm107, %v70, 0
    %v118 = vsel %vm107, %v71, 0
    %120 = vmatpush.msra.mxu0 0.0
    %121 = vmatpush.msra.mxu0 0.0
    %122 = vmatpush.msra.mxu0 0.0
    %123 = vmatpush.msra.mxu0 0.0
    %124 = vmatpush.msra.mxu0 0.0
    %125 = vmatpush.msra.mxu0 0.0
    %126 = vmatpush.msra.mxu0 0.0
    %127 = vmatpush.msra.mxu0 0.0
    %128 = vmatpush.msra.mxu0 0.0
    %129 = vmatpush.msra.mxu0 0.0
    %130 = vmatpush.msra.mxu0 0.0
    %131 = vmatpush.msra.mxu0 0.0
    %132 = vmatpush.msra.mxu0 0.0
    %133 = vmatpush.msra.mxu0 0.0
    %134 = vmatpush.msra.mxu0 %v109
    %135 = vmatpush.msra.mxu0 %v64
    %136 = vmatmul.f32.gmra.mxu0 %v84
    %v137 = vpop.f32.mrf.mxu0
    %v138 = vadd.f32 %v74, %v137
    %139 = vmatmul.f32.gmra.mxu0 %v87
    %v140 = vpop.f32.mrf.mxu0
    %v141 = vadd.f32 %v74, %v140
    %142 = vmatmul.f32.gmra.mxu0 %v90
    %v143 = vpop.f32.mrf.mxu0
    %v144 = vadd.f32 %v74, %v143
    %145 = vmatmul.f32.gmra.mxu0 %v93
    %v146 = vpop.f32.mrf.mxu0
    %v147 = vadd.f32 %v74, %v146
    %148 = vmatmul.f32.gmra.mxu0 %v96
    %v149 = vpop.f32.mrf.mxu0
    %v150 = vadd.f32 %v74, %v149
    %151 = vmatmul.f32.gmra.mxu0 %v99
    %v152 = vpop.f32.mrf.mxu0
    %v153 = vadd.f32 %v74, %v152
    %154 = vmatmul.f32.gmra.mxu0 %v102
    %v155 = vpop.f32.mrf.mxu0
    %v156 = vadd.f32 %v74, %v155
    %157 = vmatmul.f32.gmra.mxu0 %v105
    %v158 = vpop.f32.mrf.mxu0
    %v159 = vadd.f32 %v74, %v158
    %160 = vdwg.mxu0
    %161 = vmatpush.msra.mxu0 0.0
    %162 = vmatpush.msra.mxu0 0.0
    %163 = vmatpush.msra.mxu0 0.0
    %164 = vmatpush.msra.mxu0 0.0
    %165 = vmatpush.msra.mxu0 0.0
    %166 = vmatpush.msra.mxu0 0.0
    %167 = vmatpush.msra.mxu0 0.0
    %168 = vmatpush.msra.mxu0 0.0
    %169 = vmatpush.msra.mxu0 0.0
    %170 = vmatpush.msra.mxu0 0.0
    %171 = vmatpush.msra.mxu0 0.0
    %172 = vmatpush.msra.mxu0 0.0
    %173 = vmatpush.msra.mxu0 0.0
    %174 = vmatpush.msra.mxu0 0.0
    %175 = vmatpush.msra.mxu0 %v112
    %176 = vmatpush.msra.mxu0 %v65
    %177 = vmatmul.f32.gmra.mxu0 %v84
    %v178 = vpop.f32.mrf.mxu0
    %v179 = vadd.f32 %v75, %v178
    %180 = vmatmul.f32.gmra.mxu0 %v87
    %v181 = vpop.f32.mrf.mxu0
    %v182 = vadd.f32 %v75, %v181
    %183 = vmatmul.f32.gmra.mxu0 %v90
    %v184 = vpop.f32.mrf.mxu0
    %v185 = vadd.f32 %v75, %v184
    %186 = vmatmul.f32.gmra.mxu0 %v93
    %v187 = vpop.f32.mrf.mxu0
    %v188 = vadd.f32 %v75, %v187
    %189 = vmatmul.f32.gmra.mxu0 %v96
    %v190 = vpop.f32.mrf.mxu0
    %v191 = vadd.f32 %v75, %v190
    %192 = vmatmul.f32.gmra.mxu0 %v99
    %v193 = vpop.f32.mrf.mxu0
    %v194 = vadd.f32 %v75, %v193
    %195 = vmatmul.f32.gmra.mxu0 %v102
    %v196 = vpop.f32.mrf.mxu0
    %v197 = vadd.f32 %v75, %v196
    %198 = vmatmul.f32.gmra.mxu0 %v105
    %v199 = vpop.f32.mrf.mxu0
    %v200 = vadd.f32 %v75, %v199
    %201 = vdwg.mxu0
    %202 = vmatpush.msra.mxu0 0.0
    %203 = vmatpush.msra.mxu0 0.0
    %204 = vmatpush.msra.mxu0 0.0
    %205 = vmatpush.msra.mxu0 0.0
    %206 = vmatpush.msra.mxu0 0.0
    %207 = vmatpush.msra.mxu0 0.0
    %208 = vmatpush.msra.mxu0 0.0
    %209 = vmatpush.msra.mxu0 0.0
    %210 = vmatpush.msra.mxu0 0.0
    %211 = vmatpush.msra.mxu0 0.0
    %212 = vmatpush.msra.mxu0 0.0
    %213 = vmatpush.msra.mxu0 0.0
    %214 = vmatpush.msra.mxu0 0.0
    %215 = vmatpush.msra.mxu0 0.0
    %216 = vmatpush.msra.mxu0 %v115
    %217 = vmatpush.msra.mxu0 %v66
    %218 = vmatmul.f32.gmra.mxu0 %v84
    %v219 = vpop.f32.mrf.mxu0
    %v220 = vadd.f32 %v76, %v219
    %221 = vmatmul.f32.gmra.mxu0 %v87
    %v222 = vpop.f32.mrf.mxu0
    %v223 = vadd.f32 %v76, %v222
    %224 = vmatmul.f32.gmra.mxu0 %v90
    %v225 = vpop.f32.mrf.mxu0
    %v226 = vadd.f32 %v76, %v225
    %227 = vmatmul.f32.gmra.mxu0 %v93
    %v228 = vpop.f32.mrf.mxu0
    %v229 = vadd.f32 %v76, %v228
    %230 = vmatmul.f32.gmra.mxu0 %v96
    %v231 = vpop.f32.mrf.mxu0
    %v232 = vadd.f32 %v76, %v231
    %233 = vmatmul.f32.gmra.mxu0 %v99
    %v234 = vpop.f32.mrf.mxu0
    %v235 = vadd.f32 %v76, %v234
    %236 = vmatmul.f32.gmra.mxu0 %v102
    %v237 = vpop.f32.mrf.mxu0
    %v238 = vadd.f32 %v76, %v237
    %239 = vmatmul.f32.gmra.mxu0 %v105
    %v240 = vpop.f32.mrf.mxu0
    %v241 = vadd.f32 %v76, %v240
    %242 = vdwg.mxu0
    %243 = vmatpush.msra.mxu0 0.0
    %244 = vmatpush.msra.mxu0 0.0
    %245 = vmatpush.msra.mxu0 0.0
    %246 = vmatpush.msra.mxu0 0.0
    %247 = vmatpush.msra.mxu0 0.0
    %248 = vmatpush.msra.mxu0 0.0
    %249 = vmatpush.msra.mxu0 0.0
    %250 = vmatpush.msra.mxu0 0.0
    %251 = vmatpush.msra.mxu0 0.0
    %252 = vmatpush.msra.mxu0 0.0
    %253 = vmatpush.msra.mxu0 0.0
    %254 = vmatpush.msra.mxu0 0.0
    %255 = vmatpush.msra.mxu0 0.0
    %256 = vmatpush.msra.mxu0 0.0
    %257 = vmatpush.msra.mxu0 %v118
    %258 = vmatpush.msra.mxu0 %v67
    %259 = vmatmul.f32.gmra.mxu0 %v84
    %v260 = vpop.f32.mrf.mxu0
    %v261 = vadd.f32 %v77, %v260
    %262 = vmatmul.f32.gmra.mxu0 %v87
    %v263 = vpop.f32.mrf.mxu0
    %v264 = vadd.f32 %v77, %v263
    %265 = vmatmul.f32.gmra.mxu0 %v90
    %v266 = vpop.f32.mrf.mxu0
    %v267 = vadd.f32 %v77, %v266
    %268 = vmatmul.f32.gmra.mxu0 %v93
    %v269 = vpop.f32.mrf.mxu0
    %v270 = vadd.f32 %v77, %v269
    %271 = vmatmul.f32.gmra.mxu0 %v96
    %v272 = vpop.f32.mrf.mxu0
    %v273 = vadd.f32 %v77, %v272
    %274 = vmatmul.f32.gmra.mxu0 %v99
    %v275 = vpop.f32.mrf.mxu0
    %v276 = vadd.f32 %v77, %v275
    %277 = vmatmul.f32.gmra.mxu0 %v102
    %v278 = vpop.f32.mrf.mxu0
    %v279 = vadd.f32 %v77, %v278
    %280 = vmatmul.f32.gmra.mxu0 %v105
    %v281 = vpop.f32.mrf.mxu0
    %v282 = vadd.f32 %v77, %v281
    %283 = vdwg.mxu0
    %v284 = vld [vmem:[#allocation3] sm:$0xff]
    %v285 = vld [vmem:[#allocation3 + $0x8] sm:$0xff]
    %v286 = vld [vmem:[#allocation3 + $0x10] sm:$0xff]
    %v287 = vld [vmem:[#allocation3 + $0x18] sm:$0xff]
    %v288 = vld [vmem:[#allocation3 + $0x20] sm:$0xff]
    %v289 = vld [vmem:[#allocation3 + $0x28] sm:$0xff]
    %v290 = vld [vmem:[#allocation3 + $0x30] sm:$0xff]
    %v291 = vld [vmem:[#allocation3 + $0x38] sm:$0xff]
    %v292 = vld [vmem:[#allocation3 + $0x40] sm:$0xff]
    %v293 = vld [vmem:[#allocation3 + $0x48] sm:$0xff]
    %v294 = vld [vmem:[#allocation3 + $0x50] sm:$0xff]
    %v295 = vld [vmem:[#allocation3 + $0x58] sm:$0xff]
    %v296 = vld [vmem:[#allocation3 + $0x60] sm:$0xff]
    %v297 = vld [vmem:[#allocation3 + $0x68] sm:$0xff]
    %v298 = vld [vmem:[#allocation3 + $0x70] sm:$0xff]
    %v299 = vld [vmem:[#allocation3 + $0x78] sm:$0xff]
    %v300 = vld [vmem:[#allocation3 + $0x80] sm:$0xff]
    %v301 = vld [vmem:[#allocation3 + $0x88] sm:$0xff]
    %v302 = vld [vmem:[#allocation3 + $0x90] sm:$0xff]
    %v303 = vld [vmem:[#allocation3 + $0x98] sm:$0xff]
    %v304 = vld [vmem:[#allocation3 + $0xa0] sm:$0xff]
    %v305 = vld [vmem:[#allocation3 + $0xa8] sm:$0xff]
    %v306 = vld [vmem:[#allocation3 + $0xb0] sm:$0xff]
    %v307 = vld [vmem:[#allocation3 + $0xb8] sm:$0xff]
    %v308 = vld [vmem:[#allocation3 + $0xc0] sm:$0xff]
    %v309 = vld [vmem:[#allocation3 + $0xc8] sm:$0xff]
    %v310 = vld [vmem:[#allocation3 + $0xd0] sm:$0xff]
    %v311 = vld [vmem:[#allocation3 + $0xd8] sm:$0xff]
    %v312 = vld [vmem:[#allocation3 + $0xe0] sm:$0xff]
    %v313 = vld [vmem:[#allocation3 + $0xe8] sm:$0xff]
    %v314 = vld [vmem:[#allocation3 + $0xf0] sm:$0xff]
    %v315 = vld [vmem:[#allocation3 + $0xf8] sm:$0xff]
    %v316 = vld [vmem:[#allocation3 + $0x100] sm:$0xff]
    %v317 = vld [vmem:[#allocation3 + $0x108] sm:$0xff]
    %v318 = vld [vmem:[#allocation3 + $0x110] sm:$0xff]
    %v319 = vld [vmem:[#allocation3 + $0x118] sm:$0xff]
    %v320 = vld [vmem:[#allocation3 + $0x120] sm:$0xff]
    %v321 = vld [vmem:[#allocation3 + $0x128] sm:$0xff]
    %v322 = vld [vmem:[#allocation3 + $0x130] sm:$0xff]
    %v323 = vld [vmem:[#allocation3 + $0x138] sm:$0xff]
    %v324 = vld [vmem:[#allocation3 + $0x140] sm:$0xff]
    %v325 = vld [vmem:[#allocation3 + $0x148] sm:$0xff]
    %v326 = vld [vmem:[#allocation3 + $0x150] sm:$0xff]
    %v327 = vld [vmem:[#allocation3 + $0x158] sm:$0xff]
    %v328 = vld [vmem:[#allocation3 + $0x160] sm:$0xff]
    %v329 = vld [vmem:[#allocation3 + $0x168] sm:$0xff]
    %v330 = vld [vmem:[#allocation3 + $0x170] sm:$0xff]
    %v331 = vld [vmem:[#allocation3 + $0x178] sm:$0xff]
    %v332 = vld [vmem:[#allocation3 + $0x180] sm:$0xff]
    %v333 = vld [vmem:[#allocation3 + $0x188] sm:$0xff]
    %v334 = vld [vmem:[#allocation3 + $0x190] sm:$0xff]
    %v335 = vld [vmem:[#allocation3 + $0x198] sm:$0xff]
    %v336 = vld [vmem:[#allocation3 + $0x1a0] sm:$0xff]
    %v337 = vld [vmem:[#allocation3 + $0x1a8] sm:$0xff]
    %v338 = vld [vmem:[#allocation3 + $0x1b0] sm:$0xff]
    %v339 = vld [vmem:[#allocation3 + $0x1b8] sm:$0xff]
    %v340 = vld [vmem:[#allocation3 + $0x1c0] sm:$0xff]
    %v341 = vld [vmem:[#allocation3 + $0x1c8] sm:$0xff]
    %v342 = vld [vmem:[#allocation3 + $0x1d0] sm:$0xff]
    %v343 = vld [vmem:[#allocation3 + $0x1d8] sm:$0xff]
    %v344 = vld [vmem:[#allocation3 + $0x1e0] sm:$0xff]
    %v345 = vld [vmem:[#allocation3 + $0x1e8] sm:$0xff]
    %v346 = vld [vmem:[#allocation3 + $0x1f0] sm:$0xff]
    %v347 = vld [vmem:[#allocation3 + $0x1f8] sm:$0xff]
    %v348 = vld [vmem:[#allocation6] sm:$0xff]
    %v349 = vld [vmem:[#allocation6 + $0x8] sm:$0xff]
    %v350 = vld [vmem:[#allocation6 + $0x10] sm:$0xff]
    %v351 = vld [vmem:[#allocation6 + $0x18] sm:$0xff]
    %v352 = vld [vmem:[#allocation6 + $0x20] sm:$0xff]
    %v353 = vld [vmem:[#allocation6 + $0x28] sm:$0xff]
    %v354 = vld [vmem:[#allocation6 + $0x30] sm:$0xff]
    %v355 = vld [vmem:[#allocation6 + $0x38] sm:$0xff]
    %v356 = vld [vmem:[#allocation6 + $0x40] sm:$0xff]
    %v357 = vld [vmem:[#allocation6 + $0x48] sm:$0xff]
    %v358 = vld [vmem:[#allocation6 + $0x50] sm:$0xff]
    %v359 = vld [vmem:[#allocation6 + $0x58] sm:$0xff]
    %v360 = vld [vmem:[#allocation6 + $0x60] sm:$0xff]
    %v361 = vld [vmem:[#allocation6 + $0x68] sm:$0xff]
    %v362 = vld [vmem:[#allocation6 + $0x70] sm:$0xff]
    %v363 = vld [vmem:[#allocation6 + $0x78] sm:$0xff]
    %v364 = vld [vmem:[#allocation6 + $0x80] sm:$0xff]
    %v365 = vld [vmem:[#allocation6 + $0x88] sm:$0xff]
    %v366 = vld [vmem:[#allocation6 + $0x90] sm:$0xff]
    %v367 = vld [vmem:[#allocation6 + $0x98] sm:$0xff]
    %v368 = vld [vmem:[#allocation6 + $0xa0] sm:$0xff]
    %v369 = vld [vmem:[#allocation6 + $0xa8] sm:$0xff]
    %v370 = vld [vmem:[#allocation6 + $0xb0] sm:$0xff]
    %v371 = vld [vmem:[#allocation6 + $0xb8] sm:$0xff]
    %v372 = vld [vmem:[#allocation6 + $0xc0] sm:$0xff]
    %v373 = vld [vmem:[#allocation6 + $0xc8] sm:$0xff]
    %v374 = vld [vmem:[#allocation6 + $0xd0] sm:$0xff]
    %v375 = vld [vmem:[#allocation6 + $0xd8] sm:$0xff]
    %v376 = vld [vmem:[#allocation6 + $0xe0] sm:$0xff]
    %v377 = vld [vmem:[#allocation6 + $0xe8] sm:$0xff]
    %v378 = vld [vmem:[#allocation6 + $0xf0] sm:$0xff]
    %v379 = vld [vmem:[#allocation6 + $0xf8] sm:$0xff]
    %v380 = vld [vmem:[#allocation6 + $0x100] sm:$0xff]
    %v381 = vld [vmem:[#allocation6 + $0x108] sm:$0xff]
    %v382 = vld [vmem:[#allocation6 + $0x110] sm:$0xff]
    %v383 = vld [vmem:[#allocation6 + $0x118] sm:$0xff]
    %v384 = vld [vmem:[#allocation6 + $0x120] sm:$0xff]
    %v385 = vld [vmem:[#allocation6 + $0x128] sm:$0xff]
    %v386 = vld [vmem:[#allocation6 + $0x130] sm:$0xff]
    %v387 = vld [vmem:[#allocation6 + $0x138] sm:$0xff]
    %v388 = vld [vmem:[#allocation6 + $0x140] sm:$0xff]
    %v389 = vld [vmem:[#allocation6 + $0x148] sm:$0xff]
    %v390 = vld [vmem:[#allocation6 + $0x150] sm:$0xff]
    %v391 = vld [vmem:[#allocation6 + $0x158] sm:$0xff]
    %v392 = vld [vmem:[#allocation6 + $0x160] sm:$0xff]
    %v393 = vld [vmem:[#allocation6 + $0x168] sm:$0xff]
    %v394 = vld [vmem:[#allocation6 + $0x170] sm:$0xff]
    %v395 = vld [vmem:[#allocation6 + $0x178] sm:$0xff]
    %v396 = vld [vmem:[#allocation6 + $0x180] sm:$0xff]
    %v397 = vld [vmem:[#allocation6 + $0x188] sm:$0xff]
    %v398 = vld [vmem:[#allocation6 + $0x190] sm:$0xff]
    %v399 = vld [vmem:[#allocation6 + $0x198] sm:$0xff]
    %v400 = vld [vmem:[#allocation6 + $0x1a0] sm:$0xff]
    %v401 = vld [vmem:[#allocation6 + $0x1a8] sm:$0xff]
    %v402 = vld [vmem:[#allocation6 + $0x1b0] sm:$0xff]
    %v403 = vld [vmem:[#allocation6 + $0x1b8] sm:$0xff]
    %v404 = vld [vmem:[#allocation6 + $0x1c0] sm:$0xff]
    %v405 = vld [vmem:[#allocation6 + $0x1c8] sm:$0xff]
    %v406 = vld [vmem:[#allocation6 + $0x1d0] sm:$0xff]
    %v407 = vld [vmem:[#allocation6 + $0x1d8] sm:$0xff]
    %v408 = vld [vmem:[#allocation6 + $0x1e0] sm:$0xff]
    %v409 = vld [vmem:[#allocation6 + $0x1e8] sm:$0xff]
    %v410 = vld [vmem:[#allocation6 + $0x1f0] sm:$0xff]
    %v411 = vld [vmem:[#allocation6 + $0x1f8] sm:$0xff]
    %v412 = vld [vmem:[#allocation6 + $0x200] sm:$0xff]
    %v413 = vld [vmem:[#allocation6 + $0x208] sm:$0xff]
    %v414 = vld [vmem:[#allocation6 + $0x210] sm:$0xff]
    %v415 = vld [vmem:[#allocation6 + $0x218] sm:$0xff]
    %v416 = vld [vmem:[#allocation6 + $0x220] sm:$0xff]
    %v417 = vld [vmem:[#allocation6 + $0x228] sm:$0xff]
    %v418 = vld [vmem:[#allocation6 + $0x230] sm:$0xff]
    %v419 = vld [vmem:[#allocation6 + $0x238] sm:$0xff]
    %v420 = vld [vmem:[#allocation6 + $0x240] sm:$0xff]
    %v421 = vld [vmem:[#allocation6 + $0x248] sm:$0xff]
    %v422 = vld [vmem:[#allocation6 + $0x250] sm:$0xff]
    %v423 = vld [vmem:[#allocation6 + $0x258] sm:$0xff]
    %v424 = vld [vmem:[#allocation6 + $0x260] sm:$0xff]
    %v425 = vld [vmem:[#allocation6 + $0x268] sm:$0xff]
    %v426 = vld [vmem:[#allocation6 + $0x270] sm:$0xff]
    %v427 = vld [vmem:[#allocation6 + $0x278] sm:$0xff]
    %v428 = vld [vmem:[#allocation6 + $0x280] sm:$0xff]
    %v429 = vld [vmem:[#allocation6 + $0x288] sm:$0xff]
    %v430 = vld [vmem:[#allocation6 + $0x290] sm:$0xff]
    %v431 = vld [vmem:[#allocation6 + $0x298] sm:$0xff]
    %v432 = vld [vmem:[#allocation6 + $0x2a0] sm:$0xff]
    %v433 = vld [vmem:[#allocation6 + $0x2a8] sm:$0xff]
    %v434 = vld [vmem:[#allocation6 + $0x2b0] sm:$0xff]
    %v435 = vld [vmem:[#allocation6 + $0x2b8] sm:$0xff]
    %v436 = vld [vmem:[#allocation6 + $0x2c0] sm:$0xff]
    %v437 = vld [vmem:[#allocation6 + $0x2c8] sm:$0xff]
    %v438 = vld [vmem:[#allocation6 + $0x2d0] sm:$0xff]
    %v439 = vld [vmem:[#allocation6 + $0x2d8] sm:$0xff]
    %v440 = vld [vmem:[#allocation6 + $0x2e0] sm:$0xff]
    %v441 = vld [vmem:[#allocation6 + $0x2e8] sm:$0xff]
    %v442 = vld [vmem:[#allocation6 + $0x2f0] sm:$0xff]
    %v443 = vld [vmem:[#allocation6 + $0x2f8] sm:$0xff]
    %v444 = vld [vmem:[#allocation6 + $0x300] sm:$0xff]
    %v445 = vld [vmem:[#allocation6 + $0x308] sm:$0xff]
    %v446 = vld [vmem:[#allocation6 + $0x310] sm:$0xff]
    %v447 = vld [vmem:[#allocation6 + $0x318] sm:$0xff]
    %v448 = vld [vmem:[#allocation6 + $0x320] sm:$0xff]
    %v449 = vld [vmem:[#allocation6 + $0x328] sm:$0xff]
    %v450 = vld [vmem:[#allocation6 + $0x330] sm:$0xff]
    %v451 = vld [vmem:[#allocation6 + $0x338] sm:$0xff]
    %v452 = vld [vmem:[#allocation6 + $0x340] sm:$0xff]
    %v453 = vld [vmem:[#allocation6 + $0x348] sm:$0xff]
    %v454 = vld [vmem:[#allocation6 + $0x350] sm:$0xff]
    %v455 = vld [vmem:[#allocation6 + $0x358] sm:$0xff]
    %v456 = vld [vmem:[#allocation6 + $0x360] sm:$0xff]
    %v457 = vld [vmem:[#allocation6 + $0x368] sm:$0xff]
    %v458 = vld [vmem:[#allocation6 + $0x370] sm:$0xff]
    %v459 = vld [vmem:[#allocation6 + $0x378] sm:$0xff]
    %v460 = vld [vmem:[#allocation6 + $0x380] sm:$0xff]
    %v461 = vld [vmem:[#allocation6 + $0x388] sm:$0xff]
    %v462 = vld [vmem:[#allocation6 + $0x390] sm:$0xff]
    %v463 = vld [vmem:[#allocation6 + $0x398] sm:$0xff]
    %v464 = vld [vmem:[#allocation6 + $0x3a0] sm:$0xff]
    %v465 = vld [vmem:[#allocation6 + $0x3a8] sm:$0xff]
    %v466 = vld [vmem:[#allocation6 + $0x3b0] sm:$0xff]
    %v467 = vld [vmem:[#allocation6 + $0x3b8] sm:$0xff]
    %v468 = vld [vmem:[#allocation6 + $0x3c0] sm:$0xff]
    %v469 = vld [vmem:[#allocation6 + $0x3c8] sm:$0xff]
    %v470 = vld [vmem:[#allocation6 + $0x3d0] sm:$0xff]
    %v471 = vld [vmem:[#allocation6 + $0x3d8] sm:$0xff]
    %v472 = vld [vmem:[#allocation6 + $0x3e0] sm:$0xff]
    %v473 = vld [vmem:[#allocation6 + $0x3e8] sm:$0xff]
    %v474 = vld [vmem:[#allocation6 + $0x3f0] sm:$0xff]
    %v475 = vld [vmem:[#allocation6 + $0x3f8] sm:$0xff]
    %v476 = vld [vmem:[%s5] sm:$0xf]
    %477 = vst [vmem:[#allocation2 + $0x8] sm:$0xff] 0.0
    %478 = vmatpush.msra.mxu0 %v344
    %479 = vmatpush.msra.mxu0 %v340
    %480 = vmatpush.msra.mxu0 %v336
    %481 = vmatpush.msra.mxu0 %v332
    %482 = vmatpush.msra.mxu0 %v328
    %483 = vmatpush.msra.mxu0 %v324
    %484 = vmatpush.msra.mxu0 %v320
    %485 = vmatpush.msra.mxu0 %v316
    %486 = vmatpush.msra.mxu0 %v312
    %487 = vmatpush.msra.mxu0 %v308
    %488 = vmatpush.msra.mxu0 %v304
    %489 = vmatpush.msra.mxu0 %v300
    %490 = vmatpush.msra.mxu0 %v296
    %491 = vmatpush.msra.mxu0 %v292
    %492 = vmatpush.msra.mxu0 %v288
    %493 = vmatpush.msra.mxu0 %v284
    %494 = vmatmul.f32.gmra.mxu0 0.0
    %v495 = vpop.f32.mrf.mxu0
    %v496 = vadd.f32 0.0, %v495
    %497 = vdwg.mxu0
    %498 = vmatpush.msra.mxu0 %v345
    %499 = vmatpush.msra.mxu0 %v341
    %500 = vmatpush.msra.mxu0 %v337
    %501 = vmatpush.msra.mxu0 %v333
    %502 = vmatpush.msra.mxu0 %v329
    %503 = vmatpush.msra.mxu0 %v325
    %504 = vmatpush.msra.mxu0 %v321
    %505 = vmatpush.msra.mxu0 %v317
    %506 = vmatpush.msra.mxu0 %v313
    %507 = vmatpush.msra.mxu0 %v309
    %508 = vmatpush.msra.mxu0 %v305
    %509 = vmatpush.msra.mxu0 %v301
    %510 = vmatpush.msra.mxu0 %v297
    %511 = vmatpush.msra.mxu0 %v293
    %512 = vmatpush.msra.mxu0 %v289
    %513 = vmatpush.msra.mxu0 %v285
    %514 = vmatmul.f32.gmra.mxu0 0.0
    %v515 = vpop.f32.mrf.mxu0
    %v516 = vadd.f32 0.0, %v515
    %517 = vdwg.mxu0
    %518 = vmatpush.msra.mxu0 %v346
    %519 = vmatpush.msra.mxu0 %v342
    %520 = vmatpush.msra.mxu0 %v338
    %521 = vmatpush.msra.mxu0 %v334
    %522 = vmatpush.msra.mxu0 %v330
    %523 = vmatpush.msra.mxu0 %v326
    %524 = vmatpush.msra.mxu0 %v322
    %525 = vmatpush.msra.mxu0 %v318
    %526 = vmatpush.msra.mxu0 %v314
    %527 = vmatpush.msra.mxu0 %v310
    %528 = vmatpush.msra.mxu0 %v306
    %529 = vmatpush.msra.mxu0 %v302
    %530 = vmatpush.msra.mxu0 %v298
    %531 = vmatpush.msra.mxu0 %v294
    %532 = vmatpush.msra.mxu0 %v290
    %533 = vmatpush.msra.mxu0 %v286
    %534 = vmatmul.f32.gmra.mxu0 0.0
    %v535 = vpop.f32.mrf.mxu0
    %v536 = vadd.f32 0.0, %v535
    %537 = vdwg.mxu0
    %538 = vmatpush.msra.mxu0 %v347
    %539 = vmatpush.msra.mxu0 %v343
    %540 = vmatpush.msra.mxu0 %v339
    %541 = vmatpush.msra.mxu0 %v335
    %542 = vmatpush.msra.mxu0 %v331
    %543 = vmatpush.msra.mxu0 %v327
    %544 = vmatpush.msra.mxu0 %v323
    %545 = vmatpush.msra.mxu0 %v319
    %546 = vmatpush.msra.mxu0 %v315
    %547 = vmatpush.msra.mxu0 %v311
    %548 = vmatpush.msra.mxu0 %v307
    %549 = vmatpush.msra.mxu0 %v303
    %550 = vmatpush.msra.mxu0 %v299
    %551 = vmatpush.msra.mxu0 %v295
    %552 = vmatpush.msra.mxu0 %v291
    %553 = vmatpush.msra.mxu0 %v287
    %554 = vmatmul.f32.gmra.mxu0 0.0
    %v555 = vpop.f32.mrf.mxu0
    %v556 = vadd.f32 0.0, %v555
    %557 = vdwg.mxu0
    %v558 = vadd.f32 %v138, %v496
    %v559 = vadd.f32 %v179, %v516
    %v560 = vadd.f32 %v220, %v536
    %v561 = vadd.f32 %v261, %v556
    %v562 = vxor.u32 %v558, 2147483648
    %v563 = vmul.f32 %v562, 1.442695
    %v564 = vpow.pop %v563
    %v565 = vadd.f32 %v564, 1.0
    %v566 = vrcp.pop %v565
    %v567 = vmul.f32 %v565, %v566
    %v568 = vsub.f32 1.0, %v567
    %v569 = vmul.f32 %v566, %v568
    %v570 = vadd.f32 %v566, %v569
    %vm571 = vweird.f32 %v565
    %vm572 = vweird.f32 %v566
    %vm573 = vmor %vm571, %vm572
    %v574 = vsel %vm573, %v566, %v570
    %v575 = vand.u32 2147483647, %v565
    %vm576 = vcmp.eq.f32.partialorder %v575, 8.507059e+37
    %v577 = vand.u32 %v565, 2147483648
    %v578 = vor.u32 1.1754944e-38, %v577
    %v579 = vsel %vm576, %v578, %v574
    %v580 = vmul.f32 1.0, %v579
    %v581 = vxor.u32 %v559, 2147483648
    %v582 = vmul.f32 %v581, 1.442695
    %v583 = vpow.pop %v582
    %v584 = vadd.f32 %v583, 1.0
    %v585 = vrcp.pop %v584
    %v586 = vmul.f32 %v584, %v585
    %v587 = vsub.f32 1.0, %v586
    %v588 = vmul.f32 %v585, %v587
    %v589 = vadd.f32 %v585, %v588
    %vm590 = vweird.f32 %v584
    %vm591 = vweird.f32 %v585
    %vm592 = vmor %vm590, %vm591
    %v593 = vsel %vm592, %v585, %v589
    %v594 = vand.u32 2147483647, %v584
    %vm595 = vcmp.eq.f32.partialorder %v594, 8.507059e+37
    %v596 = vand.u32 %v584, 2147483648
    %v597 = vor.u32 1.1754944e-38, %v596
    %v598 = vsel %vm595, %v597, %v593
    %v599 = vmul.f32 1.0, %v598
    %v600 = vtanh.pop %v560
    %v601 = vxor.u32 %v561, 2147483648
    %v602 = vmul.f32 %v601, 1.442695
    %v603 = vpow.pop %v602
    %v604 = vadd.f32 %v603, 1.0
    %v605 = vrcp.pop %v604
    %v606 = vmul.f32 %v604, %v605
    %v607 = vsub.f32 1.0, %v606
    %v608 = vmul.f32 %v605, %v607
    %v609 = vadd.f32 %v605, %v608
    %vm610 = vweird.f32 %v604
    %vm611 = vweird.f32 %v605
    %vm612 = vmor %vm610, %vm611
    %v613 = vsel %vm612, %v605, %v609
    %v614 = vand.u32 2147483647, %v604
    %vm615 = vcmp.eq.f32.partialorder %v614, 8.507059e+37
    %v616 = vand.u32 %v604, 2147483648
    %v617 = vor.u32 1.1754944e-38, %v616
    %v618 = vsel %vm615, %v617, %v613
    %v619 = vmul.f32 1.0, %v618
    %v620 = vmul.f32 %v599, 0.0
    %v621 = vmul.f32 %v580, %v600
    %v622 = vadd.f32 %v620, %v621
    %v623 = vtanh.pop %v622
    %v624 = vmul.f32 %v619, %v623
    %625 = vst [vmem:[#allocation2] sm:$0xff] %v624
    %v626 = vld [vmem:[#allocation2] sm:$0xff]
    %v627 = vld [vmem:[#allocation2 + $0x8] sm:$0xff]
    %v629 = vperm.slane %v476, 0
    %v630 = vperm.slane %v476, 1
    %v631 = vperm.slane %v476, 2
    %v632 = vperm.slane %v476, 3
    %637 = vmatpush.msra.mxu0 %v408
    %638 = vmatpush.msra.mxu0 %v404
    %639 = vmatpush.msra.mxu0 %v400
    %640 = vmatpush.msra.mxu0 %v396
    %641 = vmatpush.msra.mxu0 %v392
    %642 = vmatpush.msra.mxu0 %v388
    %643 = vmatpush.msra.mxu0 %v384
    %644 = vmatpush.msra.mxu0 %v380
    %645 = vmatpush.msra.mxu0 %v376
    %646 = vmatpush.msra.mxu0 %v372
    %647 = vmatpush.msra.mxu0 %v368
    %648 = vmatpush.msra.mxu0 %v364
    %649 = vmatpush.msra.mxu0 %v360
    %650 = vmatpush.msra.mxu0 %v356
    %651 = vmatpush.msra.mxu0 %v352
    %652 = vmatpush.msra.mxu0 %v348
    %653 = vmatmul.f32.gmra.mxu0 %v626
    %v654 = vpop.f32.mrf.mxu0
    %v655 = vadd.f32 %v629, %v654
    %656 = vdwg.mxu0
    %657 = vmatpush.msra.mxu0 %v472
    %658 = vmatpush.msra.mxu0 %v468
    %659 = vmatpush.msra.mxu0 %v464
    %660 = vmatpush.msra.mxu0 %v460
    %661 = vmatpush.msra.mxu0 %v456
    %662 = vmatpush.msra.mxu0 %v452
    %663 = vmatpush.msra.mxu0 %v448
    %664 = vmatpush.msra.mxu0 %v444
    %665 = vmatpush.msra.mxu0 %v440
    %666 = vmatpush.msra.mxu0 %v436
    %667 = vmatpush.msra.mxu0 %v432
    %668 = vmatpush.msra.mxu0 %v428
    %669 = vmatpush.msra.mxu0 %v424
    %670 = vmatpush.msra.mxu0 %v420
    %671 = vmatpush.msra.mxu0 %v416
    %672 = vmatpush.msra.mxu0 %v412
    %673 = vmatmul.f32.gmra.mxu0 %v627
    %v674 = vpop.f32.mrf.mxu0
    %v675 = vadd.f32 %v655, %v674
    %676 = vdwg.mxu0
    %677 = vmatpush.msra.mxu0 %v409
    %678 = vmatpush.msra.mxu0 %v405
    %679 = vmatpush.msra.mxu0 %v401
    %680 = vmatpush.msra.mxu0 %v397
    %681 = vmatpush.msra.mxu0 %v393
    %682 = vmatpush.msra.mxu0 %v389
    %683 = vmatpush.msra.mxu0 %v385
    %684 = vmatpush.msra.mxu0 %v381
    %685 = vmatpush.msra.mxu0 %v377
    %686 = vmatpush.msra.mxu0 %v373
    %687 = vmatpush.msra.mxu0 %v369
    %688 = vmatpush.msra.mxu0 %v365
    %689 = vmatpush.msra.mxu0 %v361
    %690 = vmatpush.msra.mxu0 %v357
    %691 = vmatpush.msra.mxu0 %v353
    %692 = vmatpush.msra.mxu0 %v349
    %693 = vmatmul.f32.gmra.mxu0 %v626
    %v694 = vpop.f32.mrf.mxu0
    %v695 = vadd.f32 %v630, %v694
    %696 = vdwg.mxu0
    %697 = vmatpush.msra.mxu0 %v473
    %698 = vmatpush.msra.mxu0 %v469
    %699 = vmatpush.msra.mxu0 %v465
    %700 = vmatpush.msra.mxu0 %v461
    %701 = vmatpush.msra.mxu0 %v457
    %702 = vmatpush.msra.mxu0 %v453
    %703 = vmatpush.msra.mxu0 %v449
    %704 = vmatpush.msra.mxu0 %v445
    %705 = vmatpush.msra.mxu0 %v441
    %706 = vmatpush.msra.mxu0 %v437
    %707 = vmatpush.msra.mxu0 %v433
    %708 = vmatpush.msra.mxu0 %v429
    %709 = vmatpush.msra.mxu0 %v425
    %710 = vmatpush.msra.mxu0 %v421
    %711 = vmatpush.msra.mxu0 %v417
    %712 = vmatpush.msra.mxu0 %v413
    %713 = vmatmul.f32.gmra.mxu0 %v627
    %v714 = vpop.f32.mrf.mxu0
    %v715 = vadd.f32 %v695, %v714
    %716 = vdwg.mxu0
    %717 = vmatpush.msra.mxu0 %v410
    %718 = vmatpush.msra.mxu0 %v406
    %719 = vmatpush.msra.mxu0 %v402
    %720 = vmatpush.msra.mxu0 %v398
    %721 = vmatpush.msra.mxu0 %v394
    %722 = vmatpush.msra.mxu0 %v390
    %723 = vmatpush.msra.mxu0 %v386
    %724 = vmatpush.msra.mxu0 %v382
    %725 = vmatpush.msra.mxu0 %v378
    %726 = vmatpush.msra.mxu0 %v374
    %727 = vmatpush.msra.mxu0 %v370
    %728 = vmatpush.msra.mxu0 %v366
    %729 = vmatpush.msra.mxu0 %v362
    %730 = vmatpush.msra.mxu0 %v358
    %731 = vmatpush.msra.mxu0 %v354
    %732 = vmatpush.msra.mxu0 %v350
    %733 = vmatmul.f32.gmra.mxu0 %v626
    %v734 = vpop.f32.mrf.mxu0
    %v735 = vadd.f32 %v631, %v734
    %736 = vdwg.mxu0
    %737 = vmatpush.msra.mxu0 %v474
    %738 = vmatpush.msra.mxu0 %v470
    %739 = vmatpush.msra.mxu0 %v466
    %740 = vmatpush.msra.mxu0 %v462
    %741 = vmatpush.msra.mxu0 %v458
    %742 = vmatpush.msra.mxu0 %v454
    %743 = vmatpush.msra.mxu0 %v450
    %744 = vmatpush.msra.mxu0 %v446
    %745 = vmatpush.msra.mxu0 %v442
    %746 = vmatpush.msra.mxu0 %v438
    %747 = vmatpush.msra.mxu0 %v434
    %748 = vmatpush.msra.mxu0 %v430
    %749 = vmatpush.msra.mxu0 %v426
    %750 = vmatpush.msra.mxu0 %v422
    %751 = vmatpush.msra.mxu0 %v418
    %752 = vmatpush.msra.mxu0 %v414
    %753 = vmatmul.f32.gmra.mxu0 %v627
    %v754 = vpop.f32.mrf.mxu0
    %v755 = vadd.f32 %v735, %v754
    %756 = vdwg.mxu0
    %757 = vmatpush.msra.mxu0 %v411
    %758 = vmatpush.msra.mxu0 %v407
    %759 = vmatpush.msra.mxu0 %v403
    %760 = vmatpush.msra.mxu0 %v399
    %761 = vmatpush.msra.mxu0 %v395
    %762 = vmatpush.msra.mxu0 %v391
    %763 = vmatpush.msra.mxu0 %v387
    %764 = vmatpush.msra.mxu0 %v383
    %765 = vmatpush.msra.mxu0 %v379
    %766 = vmatpush.msra.mxu0 %v375
    %767 = vmatpush.msra.mxu0 %v371
    %768 = vmatpush.msra.mxu0 %v367
    %769 = vmatpush.msra.mxu0 %v363
    %770 = vmatpush.msra.mxu0 %v359
    %771 = vmatpush.msra.mxu0 %v355
    %772 = vmatpush.msra.mxu0 %v351
    %773 = vmatmul.f32.gmra.mxu0 %v626
    %v774 = vpop.f32.mrf.mxu0
    %v775 = vadd.f32 %v632, %v774
    %776 = vdwg.mxu0
    %777 = vmatpush.msra.mxu0 %v475
    %778 = vmatpush.msra.mxu0 %v471
    %779 = vmatpush.msra.mxu0 %v467
    %780 = vmatpush.msra.mxu0 %v463
    %781 = vmatpush.msra.mxu0 %v459
    %782 = vmatpush.msra.mxu0 %v455
    %783 = vmatpush.msra.mxu0 %v451
    %784 = vmatpush.msra.mxu0 %v447
    %785 = vmatpush.msra.mxu0 %v443
    %786 = vmatpush.msra.mxu0 %v439
    %787 = vmatpush.msra.mxu0 %v435
    %788 = vmatpush.msra.mxu0 %v431
    %789 = vmatpush.msra.mxu0 %v427
    %790 = vmatpush.msra.mxu0 %v423
    %791 = vmatpush.msra.mxu0 %v419
    %792 = vmatpush.msra.mxu0 %v415
    %793 = vmatmul.f32.gmra.mxu0 %v627
    %v794 = vpop.f32.mrf.mxu0
    %v795 = vadd.f32 %v775, %v794
    %796 = vdwg.mxu0
    %v797 = vxor.u32 %v675, 2147483648
    %v798 = vmul.f32 %v797, 1.442695
    %v799 = vpow.pop %v798
    %v800 = vadd.f32 %v799, 1.0
    %v801 = vrcp.pop %v800
    %v802 = vmul.f32 %v800, %v801
    %v803 = vsub.f32 1.0, %v802
    %v804 = vmul.f32 %v801, %v803
    %v805 = vadd.f32 %v801, %v804
    %vm806 = vweird.f32 %v800
    %vm807 = vweird.f32 %v801
    %vm808 = vmor %vm806, %vm807
    %v809 = vsel %vm808, %v801, %v805
    %v810 = vand.u32 2147483647, %v800
    %vm811 = vcmp.eq.f32.partialorder %v810, 8.507059e+37
    %v812 = vand.u32 %v800, 2147483648
    %v813 = vor.u32 1.1754944e-38, %v812
    %v814 = vsel %vm811, %v813, %v809
    %v815 = vmul.f32 1.0, %v814
    %v816 = vxor.u32 %v715, 2147483648
    %v817 = vmul.f32 %v816, 1.442695
    %v818 = vpow.pop %v817
    %v819 = vadd.f32 %v818, 1.0
    %v820 = vrcp.pop %v819
    %v821 = vmul.f32 %v819, %v820
    %v822 = vsub.f32 1.0, %v821
    %v823 = vmul.f32 %v820, %v822
    %v824 = vadd.f32 %v820, %v823
    %vm825 = vweird.f32 %v819
    %vm826 = vweird.f32 %v820
    %vm827 = vmor %vm825, %vm826
    %v828 = vsel %vm827, %v820, %v824
    %v829 = vand.u32 2147483647, %v819
    %vm830 = vcmp.eq.f32.partialorder %v829, 8.507059e+37
    %v831 = vand.u32 %v819, 2147483648
    %v832 = vor.u32 1.1754944e-38, %v831
    %v833 = vsel %vm830, %v832, %v828
    %v834 = vmul.f32 1.0, %v833
    %v835 = vtanh.pop %v755
    %v836 = vxor.u32 %v795, 2147483648
    %v837 = vmul.f32 %v836, 1.442695
    %v838 = vpow.pop %v837
    %v839 = vadd.f32 %v838, 1.0
    %v840 = vrcp.pop %v839
    %v841 = vmul.f32 %v839, %v840
    %v842 = vsub.f32 1.0, %v841
    %v843 = vmul.f32 %v840, %v842
    %v844 = vadd.f32 %v840, %v843
    %vm845 = vweird.f32 %v839
    %vm846 = vweird.f32 %v840
    %vm847 = vmor %vm845, %vm846
    %v848 = vsel %vm847, %v840, %v844
    %v849 = vand.u32 2147483647, %v839
    %vm850 = vcmp.eq.f32.partialorder %v849, 8.507059e+37
    %v851 = vand.u32 %v839, 2147483648
    %v852 = vor.u32 1.1754944e-38, %v851
    %v853 = vsel %vm850, %v852, %v848
    %v854 = vmul.f32 1.0, %v853
    %v855 = vmul.f32 %v834, 0.0
    %v856 = vmul.f32 %v815, %v835
    %v857 = vadd.f32 %v855, %v856
    %v858 = vtanh.pop %v857
    %v859 = vmul.f32 %v854, %v858
    %860 = vst [vmem:[#allocation2 + $0x8] sm:$0xff] %v859
    %861 = vmatpush.msra.mxu0 %v344
    %862 = vmatpush.msra.mxu0 %v340
    %863 = vmatpush.msra.mxu0 %v336
    %864 = vmatpush.msra.mxu0 %v332
    %865 = vmatpush.msra.mxu0 %v328
    %866 = vmatpush.msra.mxu0 %v324
    %867 = vmatpush.msra.mxu0 %v320
    %868 = vmatpush.msra.mxu0 %v316
    %869 = vmatpush.msra.mxu0 %v312
    %870 = vmatpush.msra.mxu0 %v308
    %871 = vmatpush.msra.mxu0 %v304
    %872 = vmatpush.msra.mxu0 %v300
    %873 = vmatpush.msra.mxu0 %v296
    %874 = vmatpush.msra.mxu0 %v292
    %875 = vmatpush.msra.mxu0 %v288
    %876 = vmatpush.msra.mxu0 %v284
    %877 = vmatmul.f32.gmra.mxu0 %v624
    %v878 = vpop.f32.mrf.mxu0
    %v879 = vadd.f32 0.0, %v878
    %880 = vdwg.mxu0
    %881 = vmatpush.msra.mxu0 %v345
    %882 = vmatpush.msra.mxu0 %v341
    %883 = vmatpush.msra.mxu0 %v337
    %884 = vmatpush.msra.mxu0 %v333
    %885 = vmatpush.msra.mxu0 %v329
    %886 = vmatpush.msra.mxu0 %v325
    %887 = vmatpush.msra.mxu0 %v321
    %888 = vmatpush.msra.mxu0 %v317
    %889 = vmatpush.msra.mxu0 %v313
    %890 = vmatpush.msra.mxu0 %v309
    %891 = vmatpush.msra.mxu0 %v305
    %892 = vmatpush.msra.mxu0 %v301
    %893 = vmatpush.msra.mxu0 %v297
    %894 = vmatpush.msra.mxu0 %v293
    %895 = vmatpush.msra.mxu0 %v289
    %896 = vmatpush.msra.mxu0 %v285
    %897 = vmatmul.f32.gmra.mxu0 %v624
    %v898 = vpop.f32.mrf.mxu0
    %v899 = vadd.f32 0.0, %v898
    %900 = vdwg.mxu0
    %901 = vmatpush.msra.mxu0 %v346
    %902 = vmatpush.msra.mxu0 %v342
    %903 = vmatpush.msra.mxu0 %v338
    %904 = vmatpush.msra.mxu0 %v334
    %905 = vmatpush.msra.mxu0 %v330
    %906 = vmatpush.msra.mxu0 %v326
    %907 = vmatpush.msra.mxu0 %v322
    %908 = vmatpush.msra.mxu0 %v318
    %909 = vmatpush.msra.mxu0 %v314
    %910 = vmatpush.msra.mxu0 %v310
    %911 = vmatpush.msra.mxu0 %v306
    %912 = vmatpush.msra.mxu0 %v302
    %913 = vmatpush.msra.mxu0 %v298
    %914 = vmatpush.msra.mxu0 %v294
    %915 = vmatpush.msra.mxu0 %v290
    %916 = vmatpush.msra.mxu0 %v286
    %917 = vmatmul.f32.gmra.mxu0 %v624
    %v918 = vpop.f32.mrf.mxu0
    %v919 = vadd.f32 0.0, %v918
    %920 = vdwg.mxu0
    %921 = vmatpush.msra.mxu0 %v347
    %922 = vmatpush.msra.mxu0 %v343
    %923 = vmatpush.msra.mxu0 %v339
    %924 = vmatpush.msra.mxu0 %v335
    %925 = vmatpush.msra.mxu0 %v331
    %926 = vmatpush.msra.mxu0 %v327
    %927 = vmatpush.msra.mxu0 %v323
    %928 = vmatpush.msra.mxu0 %v319
    %929 = vmatpush.msra.mxu0 %v315
    %930 = vmatpush.msra.mxu0 %v311
    %931 = vmatpush.msra.mxu0 %v307
    %932 = vmatpush.msra.mxu0 %v303
    %933 = vmatpush.msra.mxu0 %v299
    %934 = vmatpush.msra.mxu0 %v295
    %935 = vmatpush.msra.mxu0 %v291
    %936 = vmatpush.msra.mxu0 %v287
    %937 = vmatmul.f32.gmra.mxu0 %v624
    %v938 = vpop.f32.mrf.mxu0
    %v939 = vadd.f32 0.0, %v938
    %940 = vdwg.mxu0
    %v941 = vadd.f32 %v141, %v879
    %v942 = vadd.f32 %v182, %v899
    %v943 = vadd.f32 %v223, %v919
    %v944 = vadd.f32 %v264, %v939
    %v945 = vxor.u32 %v941, 2147483648
    %v946 = vmul.f32 %v945, 1.442695
    %v947 = vpow.pop %v946
    %v948 = vadd.f32 %v947, 1.0
    %v949 = vrcp.pop %v948
    %v950 = vmul.f32 %v948, %v949
    %v951 = vsub.f32 1.0, %v950
    %v952 = vmul.f32 %v949, %v951
    %v953 = vadd.f32 %v949, %v952
    %vm954 = vweird.f32 %v948
    %vm955 = vweird.f32 %v949
    %vm956 = vmor %vm954, %vm955
    %v957 = vsel %vm956, %v949, %v953
    %v958 = vand.u32 2147483647, %v948
    %vm959 = vcmp.eq.f32.partialorder %v958, 8.507059e+37
    %v960 = vand.u32 %v948, 2147483648
    %v961 = vor.u32 1.1754944e-38, %v960
    %v962 = vsel %vm959, %v961, %v957
    %v963 = vmul.f32 1.0, %v962
    %v964 = vxor.u32 %v942, 2147483648
    %v965 = vmul.f32 %v964, 1.442695
    %v966 = vpow.pop %v965
    %v967 = vadd.f32 %v966, 1.0
    %v968 = vrcp.pop %v967
    %v969 = vmul.f32 %v967, %v968
    %v970 = vsub.f32 1.0, %v969
    %v971 = vmul.f32 %v968, %v970
    %v972 = vadd.f32 %v968, %v971
    %vm973 = vweird.f32 %v967
    %vm974 = vweird.f32 %v968
    %vm975 = vmor %vm973, %vm974
    %v976 = vsel %vm975, %v968, %v972
    %v977 = vand.u32 2147483647, %v967
    %vm978 = vcmp.eq.f32.partialorder %v977, 8.507059e+37
    %v979 = vand.u32 %v967, 2147483648
    %v980 = vor.u32 1.1754944e-38, %v979
    %v981 = vsel %vm978, %v980, %v976
    %v982 = vmul.f32 1.0, %v981
    %v983 = vtanh.pop %v943
    %v984 = vxor.u32 %v944, 2147483648
    %v985 = vmul.f32 %v984, 1.442695
    %v986 = vpow.pop %v985
    %v987 = vadd.f32 %v986, 1.0
    %v988 = vrcp.pop %v987
    %v989 = vmul.f32 %v987, %v988
    %v990 = vsub.f32 1.0, %v989
    %v991 = vmul.f32 %v988, %v990
    %v992 = vadd.f32 %v988, %v991
    %vm993 = vweird.f32 %v987
    %vm994 = vweird.f32 %v988
    %vm995 = vmor %vm993, %vm994
    %v996 = vsel %vm995, %v988, %v992
    %v997 = vand.u32 2147483647, %v987
    %vm998 = vcmp.eq.f32.partialorder %v997, 8.507059e+37
    %v999 = vand.u32 %v987, 2147483648
    %v1000 = vor.u32 1.1754944e-38, %v999
    %v1001 = vsel %vm998, %v1000, %v996
    %v1002 = vmul.f32 1.0, %v1001
    %v1003 = vmul.f32 %v982, %v622
    %v1004 = vmul.f32 %v963, %v983
    %v1005 = vadd.f32 %v1003, %v1004
    %v1006 = vtanh.pop %v1005
    %v1007 = vmul.f32 %v1002, %v1006
    %1008 = vst [vmem:[#allocation2] sm:$0xff] %v1007
    %v1009 = vld [vmem:[#allocation2] sm:$0xff]
    %v1010 = vld [vmem:[#allocation2 + $0x8] sm:$0xff]
    %1011 = vmatpush.msra.mxu0 %v408
    %1012 = vmatpush.msra.mxu0 %v404
    %1013 = vmatpush.msra.mxu0 %v400
    %1014 = vmatpush.msra.mxu0 %v396
    %1015 = vmatpush.msra.mxu0 %v392
    %1016 = vmatpush.msra.mxu0 %v388
    %1017 = vmatpush.msra.mxu0 %v384
    %1018 = vmatpush.msra.mxu0 %v380
    %1019 = vmatpush.msra.mxu0 %v376
    %1020 = vmatpush.msra.mxu0 %v372
    %1021 = vmatpush.msra.mxu0 %v368
    %1022 = vmatpush.msra.mxu0 %v364
    %1023 = vmatpush.msra.mxu0 %v360
    %1024 = vmatpush.msra.mxu0 %v356
    %1025 = vmatpush.msra.mxu0 %v352
    %1026 = vmatpush.msra.mxu0 %v348
    %1027 = vmatmul.f32.gmra.mxu0 %v1009
    %v1028 = vpop.f32.mrf.mxu0
    %v1029 = vadd.f32 %v629, %v1028
    %1030 = vdwg.mxu0
    %1031 = vmatpush.msra.mxu0 %v472
    %1032 = vmatpush.msra.mxu0 %v468
    %1033 = vmatpush.msra.mxu0 %v464
    %1034 = vmatpush.msra.mxu0 %v460
    %1035 = vmatpush.msra.mxu0 %v456
    %1036 = vmatpush.msra.mxu0 %v452
    %1037 = vmatpush.msra.mxu0 %v448
    %1038 = vmatpush.msra.mxu0 %v444
    %1039 = vmatpush.msra.mxu0 %v440
    %1040 = vmatpush.msra.mxu0 %v436
    %1041 = vmatpush.msra.mxu0 %v432
    %1042 = vmatpush.msra.mxu0 %v428
    %1043 = vmatpush.msra.mxu0 %v424
    %1044 = vmatpush.msra.mxu0 %v420
    %1045 = vmatpush.msra.mxu0 %v416
    %1046 = vmatpush.msra.mxu0 %v412
    %1047 = vmatmul.f32.gmra.mxu0 %v1010
    %v1048 = vpop.f32.mrf.mxu0
    %v1049 = vadd.f32 %v1029, %v1048
    %1050 = vdwg.mxu0
    %1051 = vmatpush.msra.mxu0 %v409
    %1052 = vmatpush.msra.mxu0 %v405
    %1053 = vmatpush.msra.mxu0 %v401
    %1054 = vmatpush.msra.mxu0 %v397
    %1055 = vmatpush.msra.mxu0 %v393
    %1056 = vmatpush.msra.mxu0 %v389
    %1057 = vmatpush.msra.mxu0 %v385
    %1058 = vmatpush.msra.mxu0 %v381
    %1059 = vmatpush.msra.mxu0 %v377
    %1060 = vmatpush.msra.mxu0 %v373
    %1061 = vmatpush.msra.mxu0 %v369
    %1062 = vmatpush.msra.mxu0 %v365
    %1063 = vmatpush.msra.mxu0 %v361
    %1064 = vmatpush.msra.mxu0 %v357
    %1065 = vmatpush.msra.mxu0 %v353
    %1066 = vmatpush.msra.mxu0 %v349
    %1067 = vmatmul.f32.gmra.mxu0 %v1009
    %v1068 = vpop.f32.mrf.mxu0
    %v1069 = vadd.f32 %v630, %v1068
    %1070 = vdwg.mxu0
    %1071 = vmatpush.msra.mxu0 %v473
    %1072 = vmatpush.msra.mxu0 %v469
    %1073 = vmatpush.msra.mxu0 %v465
    %1074 = vmatpush.msra.mxu0 %v461
    %1075 = vmatpush.msra.mxu0 %v457
    %1076 = vmatpush.msra.mxu0 %v453
    %1077 = vmatpush.msra.mxu0 %v449
    %1078 = vmatpush.msra.mxu0 %v445
    %1079 = vmatpush.msra.mxu0 %v441
    %1080 = vmatpush.msra.mxu0 %v437
    %1081 = vmatpush.msra.mxu0 %v433
    %1082 = vmatpush.msra.mxu0 %v429
    %1083 = vmatpush.msra.mxu0 %v425
    %1084 = vmatpush.msra.mxu0 %v421
    %1085 = vmatpush.msra.mxu0 %v417
    %1086 = vmatpush.msra.mxu0 %v413
    %1087 = vmatmul.f32.gmra.mxu0 %v1010
    %v1088 = vpop.f32.mrf.mxu0
    %v1089 = vadd.f32 %v1069, %v1088
    %1090 = vdwg.mxu0
    %1091 = vmatpush.msra.mxu0 %v410
    %1092 = vmatpush.msra.mxu0 %v406
    %1093 = vmatpush.msra.mxu0 %v402
    %1094 = vmatpush.msra.mxu0 %v398
    %1095 = vmatpush.msra.mxu0 %v394
    %1096 = vmatpush.msra.mxu0 %v390
    %1097 = vmatpush.msra.mxu0 %v386
    %1098 = vmatpush.msra.mxu0 %v382
    %1099 = vmatpush.msra.mxu0 %v378
    %1100 = vmatpush.msra.mxu0 %v374
    %1101 = vmatpush.msra.mxu0 %v370
    %1102 = vmatpush.msra.mxu0 %v366
    %1103 = vmatpush.msra.mxu0 %v362
    %1104 = vmatpush.msra.mxu0 %v358
    %1105 = vmatpush.msra.mxu0 %v354
    %1106 = vmatpush.msra.mxu0 %v350
    %1107 = vmatmul.f32.gmra.mxu0 %v1009
    %v1108 = vpop.f32.mrf.mxu0
    %v1109 = vadd.f32 %v631, %v1108
    %1110 = vdwg.mxu0
    %1111 = vmatpush.msra.mxu0 %v474
    %1112 = vmatpush.msra.mxu0 %v470
    %1113 = vmatpush.msra.mxu0 %v466
    %1114 = vmatpush.msra.mxu0 %v462
    %1115 = vmatpush.msra.mxu0 %v458
    %1116 = vmatpush.msra.mxu0 %v454
    %1117 = vmatpush.msra.mxu0 %v450
    %1118 = vmatpush.msra.mxu0 %v446
    %1119 = vmatpush.msra.mxu0 %v442
    %1120 = vmatpush.msra.mxu0 %v438
    %1121 = vmatpush.msra.mxu0 %v434
    %1122 = vmatpush.msra.mxu0 %v430
    %1123 = vmatpush.msra.mxu0 %v426
    %1124 = vmatpush.msra.mxu0 %v422
    %1125 = vmatpush.msra.mxu0 %v418
    %1126 = vmatpush.msra.mxu0 %v414
    %1127 = vmatmul.f32.gmra.mxu0 %v1010
    %v1128 = vpop.f32.mrf.mxu0
    %v1129 = vadd.f32 %v1109, %v1128
    %1130 = vdwg.mxu0
    %1131 = vmatpush.msra.mxu0 %v411
    %1132 = vmatpush.msra.mxu0 %v407
    %1133 = vmatpush.msra.mxu0 %v403
    %1134 = vmatpush.msra.mxu0 %v399
    %1135 = vmatpush.msra.mxu0 %v395
    %1136 = vmatpush.msra.mxu0 %v391
    %1137 = vmatpush.msra.mxu0 %v387
    %1138 = vmatpush.msra.mxu0 %v383
    %1139 = vmatpush.msra.mxu0 %v379
    %1140 = vmatpush.msra.mxu0 %v375
    %1141 = vmatpush.msra.mxu0 %v371
    %1142 = vmatpush.msra.mxu0 %v367
    %1143 = vmatpush.msra.mxu0 %v363
    %1144 = vmatpush.msra.mxu0 %v359
    %1145 = vmatpush.msra.mxu0 %v355
    %1146 = vmatpush.msra.mxu0 %v351
    %1147 = vmatmul.f32.gmra.mxu0 %v1009
    %v1148 = vpop.f32.mrf.mxu0
    %v1149 = vadd.f32 %v632, %v1148
    %1150 = vdwg.mxu0
    %1151 = vmatpush.msra.mxu0 %v475
    %1152 = vmatpush.msra.mxu0 %v471
    %1153 = vmatpush.msra.mxu0 %v467
    %1154 = vmatpush.msra.mxu0 %v463
    %1155 = vmatpush.msra.mxu0 %v459
    %1156 = vmatpush.msra.mxu0 %v455
    %1157 = vmatpush.msra.mxu0 %v451
    %1158 = vmatpush.msra.mxu0 %v447
    %1159 = vmatpush.msra.mxu0 %v443
    %1160 = vmatpush.msra.mxu0 %v439
    %1161 = vmatpush.msra.mxu0 %v435
    %1162 = vmatpush.msra.mxu0 %v431
    %1163 = vmatpush.msra.mxu0 %v427
    %1164 = vmatpush.msra.mxu0 %v423
    %1165 = vmatpush.msra.mxu0 %v419
    %1166 = vmatpush.msra.mxu0 %v415
    %1167 = vmatmul.f32.gmra.mxu0 %v1010
    %v1168 = vpop.f32.mrf.mxu0
    %v1169 = vadd.f32 %v1149, %v1168
    %1170 = vdwg.mxu0
    %v1171 = vxor.u32 %v1049, 2147483648
    %v1172 = vmul.f32 %v1171, 1.442695
    %v1173 = vpow.pop %v1172
    %v1174 = vadd.f32 %v1173, 1.0
    %v1175 = vrcp.pop %v1174
    %v1176 = vmul.f32 %v1174, %v1175
    %v1177 = vsub.f32 1.0, %v1176
    %v1178 = vmul.f32 %v1175, %v1177
    %v1179 = vadd.f32 %v1175, %v1178
    %vm1180 = vweird.f32 %v1174
    %vm1181 = vweird.f32 %v1175
    %vm1182 = vmor %vm1180, %vm1181
    %v1183 = vsel %vm1182, %v1175, %v1179
    %v1184 = vand.u32 2147483647, %v1174
    %vm1185 = vcmp.eq.f32.partialorder %v1184, 8.507059e+37
    %v1186 = vand.u32 %v1174, 2147483648
    %v1187 = vor.u32 1.1754944e-38, %v1186
    %v1188 = vsel %vm1185, %v1187, %v1183
    %v1189 = vmul.f32 1.0, %v1188
    %v1190 = vxor.u32 %v1089, 2147483648
    %v1191 = vmul.f32 %v1190, 1.442695
    %v1192 = vpow.pop %v1191
    %v1193 = vadd.f32 %v1192, 1.0
    %v1194 = vrcp.pop %v1193
    %v1195 = vmul.f32 %v1193, %v1194
    %v1196 = vsub.f32 1.0, %v1195
    %v1197 = vmul.f32 %v1194, %v1196
    %v1198 = vadd.f32 %v1194, %v1197
    %vm1199 = vweird.f32 %v1193
    %vm1200 = vweird.f32 %v1194
    %vm1201 = vmor %vm1199, %vm1200
    %v1202 = vsel %vm1201, %v1194, %v1198
    %v1203 = vand.u32 2147483647, %v1193
    %vm1204 = vcmp.eq.f32.partialorder %v1203, 8.507059e+37
    %v1205 = vand.u32 %v1193, 2147483648
    %v1206 = vor.u32 1.1754944e-38, %v1205
    %v1207 = vsel %vm1204, %v1206, %v1202
    %v1208 = vmul.f32 1.0, %v1207
    %v1209 = vtanh.pop %v1129
    %v1210 = vxor.u32 %v1169, 2147483648
    %v1211 = vmul.f32 %v1210, 1.442695
    %v1212 = vpow.pop %v1211
    %v1213 = vadd.f32 %v1212, 1.0
    %v1214 = vrcp.pop %v1213
    %v1215 = vmul.f32 %v1213, %v1214
    %v1216 = vsub.f32 1.0, %v1215
    %v1217 = vmul.f32 %v1214, %v1216
    %v1218 = vadd.f32 %v1214, %v1217
    %vm1219 = vweird.f32 %v1213
    %vm1220 = vweird.f32 %v1214
    %vm1221 = vmor %vm1219, %vm1220
    %v1222 = vsel %vm1221, %v1214, %v1218
    %v1223 = vand.u32 2147483647, %v1213
    %vm1224 = vcmp.eq.f32.partialorder %v1223, 8.507059e+37
    %v1225 = vand.u32 %v1213, 2147483648
    %v1226 = vor.u32 1.1754944e-38, %v1225
    %v1227 = vsel %vm1224, %v1226, %v1222
    %v1228 = vmul.f32 1.0, %v1227
    %v1229 = vmul.f32 %v1208, %v857
    %v1230 = vmul.f32 %v1189, %v1209
    %v1231 = vadd.f32 %v1229, %v1230
    %v1232 = vtanh.pop %v1231
    %v1233 = vmul.f32 %v1228, %v1232
    %1234 = vst [vmem:[#allocation2 + $0x8] sm:$0xff] %v1233
    %1235 = vmatpush.msra.mxu0 %v344
    %1236 = vmatpush.msra.mxu0 %v340
    %1237 = vmatpush.msra.mxu0 %v336
    %1238 = vmatpush.msra.mxu0 %v332
    %1239 = vmatpush.msra.mxu0 %v328
    %1240 = vmatpush.msra.mxu0 %v324
    %1241 = vmatpush.msra.mxu0 %v320
    %1242 = vmatpush.msra.mxu0 %v316
    %1243 = vmatpush.msra.mxu0 %v312
    %1244 = vmatpush.msra.mxu0 %v308
    %1245 = vmatpush.msra.mxu0 %v304
    %1246 = vmatpush.msra.mxu0 %v300
    %1247 = vmatpush.msra.mxu0 %v296
    %1248 = vmatpush.msra.mxu0 %v292
    %1249 = vmatpush.msra.mxu0 %v288
    %1250 = vmatpush.msra.mxu0 %v284
    %1251 = vmatmul.f32.gmra.mxu0 %v1007
    %v1252 = vpop.f32.mrf.mxu0
    %v1253 = vadd.f32 0.0, %v1252
    %1254 = vdwg.mxu0
    %1255 = vmatpush.msra.mxu0 %v345
    %1256 = vmatpush.msra.mxu0 %v341
    %1257 = vmatpush.msra.mxu0 %v337
    %1258 = vmatpush.msra.mxu0 %v333
    %1259 = vmatpush.msra.mxu0 %v329
    %1260 = vmatpush.msra.mxu0 %v325
    %1261 = vmatpush.msra.mxu0 %v321
    %1262 = vmatpush.msra.mxu0 %v317
    %1263 = vmatpush.msra.mxu0 %v313
    %1264 = vmatpush.msra.mxu0 %v309
    %1265 = vmatpush.msra.mxu0 %v305
    %1266 = vmatpush.msra.mxu0 %v301
    %1267 = vmatpush.msra.mxu0 %v297
    %1268 = vmatpush.msra.mxu0 %v293
    %1269 = vmatpush.msra.mxu0 %v289
    %1270 = vmatpush.msra.mxu0 %v285
    %1271 = vmatmul.f32.gmra.mxu0 %v1007
    %v1272 = vpop.f32.mrf.mxu0
    %v1273 = vadd.f32 0.0, %v1272
    %1274 = vdwg.mxu0
    %1275 = vmatpush.msra.mxu0 %v346
    %1276 = vmatpush.msra.mxu0 %v342
    %1277 = vmatpush.msra.mxu0 %v338
    %1278 = vmatpush.msra.mxu0 %v334
    %1279 = vmatpush.msra.mxu0 %v330
    %1280 = vmatpush.msra.mxu0 %v326
    %1281 = vmatpush.msra.mxu0 %v322
    %1282 = vmatpush.msra.mxu0 %v318
    %1283 = vmatpush.msra.mxu0 %v314
    %1284 = vmatpush.msra.mxu0 %v310
    %1285 = vmatpush.msra.mxu0 %v306
    %1286 = vmatpush.msra.mxu0 %v302
    %1287 = vmatpush.msra.mxu0 %v298
    %1288 = vmatpush.msra.mxu0 %v294
    %1289 = vmatpush.msra.mxu0 %v290
    %1290 = vmatpush.msra.mxu0 %v286
    %1291 = vmatmul.f32.gmra.mxu0 %v1007
    %v1292 = vpop.f32.mrf.mxu0
    %v1293 = vadd.f32 0.0, %v1292
    %1294 = vdwg.mxu0
    %1295 = vmatpush.msra.mxu0 %v347
    %1296 = vmatpush.msra.mxu0 %v343
    %1297 = vmatpush.msra.mxu0 %v339
    %1298 = vmatpush.msra.mxu0 %v335
    %1299 = vmatpush.msra.mxu0 %v331
    %1300 = vmatpush.msra.mxu0 %v327
    %1301 = vmatpush.msra.mxu0 %v323
    %1302 = vmatpush.msra.mxu0 %v319
    %1303 = vmatpush.msra.mxu0 %v315
    %1304 = vmatpush.msra.mxu0 %v311
    %1305 = vmatpush.msra.mxu0 %v307
    %1306 = vmatpush.msra.mxu0 %v303
    %1307 = vmatpush.msra.mxu0 %v299
    %1308 = vmatpush.msra.mxu0 %v295
    %1309 = vmatpush.msra.mxu0 %v291
    %1310 = vmatpush.msra.mxu0 %v287
    %1311 = vmatmul.f32.gmra.mxu0 %v1007
    %v1312 = vpop.f32.mrf.mxu0
    %v1313 = vadd.f32 0.0, %v1312
    %1314 = vdwg.mxu0
    %v1315 = vadd.f32 %v144, %v1253
    %v1316 = vadd.f32 %v185, %v1273
    %v1317 = vadd.f32 %v226, %v1293
    %v1318 = vadd.f32 %v267, %v1313
    %v1319 = vxor.u32 %v1315, 2147483648
    %v1320 = vmul.f32 %v1319, 1.442695
    %v1321 = vpow.pop %v1320
    %v1322 = vadd.f32 %v1321, 1.0
    %v1323 = vrcp.pop %v1322
    %v1324 = vmul.f32 %v1322, %v1323
    %v1325 = vsub.f32 1.0, %v1324
    %v1326 = vmul.f32 %v1323, %v1325
    %v1327 = vadd.f32 %v1323, %v1326
    %vm1328 = vweird.f32 %v1322
    %vm1329 = vweird.f32 %v1323
    %vm1330 = vmor %vm1328, %vm1329
    %v1331 = vsel %vm1330, %v1323, %v1327
    %v1332 = vand.u32 2147483647, %v1322
    %vm1333 = vcmp.eq.f32.partialorder %v1332, 8.507059e+37
    %v1334 = vand.u32 %v1322, 2147483648
    %v1335 = vor.u32 1.1754944e-38, %v1334
    %v1336 = vsel %vm1333, %v1335, %v1331
    %v1337 = vmul.f32 1.0, %v1336
    %v1338 = vxor.u32 %v1316, 2147483648
    %v1339 = vmul.f32 %v1338, 1.442695
    %v1340 = vpow.pop %v1339
    %v1341 = vadd.f32 %v1340, 1.0
    %v1342 = vrcp.pop %v1341
    %v1343 = vmul.f32 %v1341, %v1342
    %v1344 = vsub.f32 1.0, %v1343
    %v1345 = vmul.f32 %v1342, %v1344
    %v1346 = vadd.f32 %v1342, %v1345
    %vm1347 = vweird.f32 %v1341
    %vm1348 = vweird.f32 %v1342
    %vm1349 = vmor %vm1347, %vm1348
    %v1350 = vsel %vm1349, %v1342, %v1346
    %v1351 = vand.u32 2147483647, %v1341
    %vm1352 = vcmp.eq.f32.partialorder %v1351, 8.507059e+37
    %v1353 = vand.u32 %v1341, 2147483648
    %v1354 = vor.u32 1.1754944e-38, %v1353
    %v1355 = vsel %vm1352, %v1354, %v1350
    %v1356 = vmul.f32 1.0, %v1355
    %v1357 = vtanh.pop %v1317
    %v1358 = vxor.u32 %v1318, 2147483648
    %v1359 = vmul.f32 %v1358, 1.442695
    %v1360 = vpow.pop %v1359
    %v1361 = vadd.f32 %v1360, 1.0
    %v1362 = vrcp.pop %v1361
    %v1363 = vmul.f32 %v1361, %v1362
    %v1364 = vsub.f32 1.0, %v1363
    %v1365 = vmul.f32 %v1362, %v1364
    %v1366 = vadd.f32 %v1362, %v1365
    %vm1367 = vweird.f32 %v1361
    %vm1368 = vweird.f32 %v1362
    %vm1369 = vmor %vm1367, %vm1368
    %v1370 = vsel %vm1369, %v1362, %v1366
    %v1371 = vand.u32 2147483647, %v1361
    %vm1372 = vcmp.eq.f32.partialorder %v1371, 8.507059e+37
    %v1373 = vand.u32 %v1361, 2147483648
    %v1374 = vor.u32 1.1754944e-38, %v1373
    %v1375 = vsel %vm1372, %v1374, %v1370
    %v1376 = vmul.f32 1.0, %v1375
    %v1377 = vmul.f32 %v1356, %v1005
    %v1378 = vmul.f32 %v1337, %v1357
    %v1379 = vadd.f32 %v1377, %v1378
    %v1380 = vtanh.pop %v1379
    %v1381 = vmul.f32 %v1376, %v1380
    %1382 = vst [vmem:[#allocation2] sm:$0xff] %v1381
    %v1383 = vld [vmem:[#allocation2] sm:$0xff]
    %v1384 = vld [vmem:[#allocation2 + $0x8] sm:$0xff]
    %1385 = vmatpush.msra.mxu0 %v408
    %1386 = vmatpush.msra.mxu0 %v404
    %1387 = vmatpush.msra.mxu0 %v400
    %1388 = vmatpush.msra.mxu0 %v396
    %1389 = vmatpush.msra.mxu0 %v392
    %1390 = vmatpush.msra.mxu0 %v388
    %1391 = vmatpush.msra.mxu0 %v384
    %1392 = vmatpush.msra.mxu0 %v380
    %1393 = vmatpush.msra.mxu0 %v376
    %1394 = vmatpush.msra.mxu0 %v372
    %1395 = vmatpush.msra.mxu0 %v368
    %1396 = vmatpush.msra.mxu0 %v364
    %1397 = vmatpush.msra.mxu0 %v360
    %1398 = vmatpush.msra.mxu0 %v356
    %1399 = vmatpush.msra.mxu0 %v352
    %1400 = vmatpush.msra.mxu0 %v348
    %1401 = vmatmul.f32.gmra.mxu0 %v1383
    %v1402 = vpop.f32.mrf.mxu0
    %v1403 = vadd.f32 %v629, %v1402
    %1404 = vdwg.mxu0
    %1405 = vmatpush.msra.mxu0 %v472
    %1406 = vmatpush.msra.mxu0 %v468
    %1407 = vmatpush.msra.mxu0 %v464
    %1408 = vmatpush.msra.mxu0 %v460
    %1409 = vmatpush.msra.mxu0 %v456
    %1410 = vmatpush.msra.mxu0 %v452
    %1411 = vmatpush.msra.mxu0 %v448
    %1412 = vmatpush.msra.mxu0 %v444
    %1413 = vmatpush.msra.mxu0 %v440
    %1414 = vmatpush.msra.mxu0 %v436
    %1415 = vmatpush.msra.mxu0 %v432
    %1416 = vmatpush.msra.mxu0 %v428
    %1417 = vmatpush.msra.mxu0 %v424
    %1418 = vmatpush.msra.mxu0 %v420
    %1419 = vmatpush.msra.mxu0 %v416
    %1420 = vmatpush.msra.mxu0 %v412
    %1421 = vmatmul.f32.gmra.mxu0 %v1384
    %v1422 = vpop.f32.mrf.mxu0
    %v1423 = vadd.f32 %v1403, %v1422
    %1424 = vdwg.mxu0
    %1425 = vmatpush.msra.mxu0 %v409
    %1426 = vmatpush.msra.mxu0 %v405
    %1427 = vmatpush.msra.mxu0 %v401
    %1428 = vmatpush.msra.mxu0 %v397
    %1429 = vmatpush.msra.mxu0 %v393
    %1430 = vmatpush.msra.mxu0 %v389
    %1431 = vmatpush.msra.mxu0 %v385
    %1432 = vmatpush.msra.mxu0 %v381
    %1433 = vmatpush.msra.mxu0 %v377
    %1434 = vmatpush.msra.mxu0 %v373
    %1435 = vmatpush.msra.mxu0 %v369
    %1436 = vmatpush.msra.mxu0 %v365
    %1437 = vmatpush.msra.mxu0 %v361
    %1438 = vmatpush.msra.mxu0 %v357
    %1439 = vmatpush.msra.mxu0 %v353
    %1440 = vmatpush.msra.mxu0 %v349
    %1441 = vmatmul.f32.gmra.mxu0 %v1383
    %v1442 = vpop.f32.mrf.mxu0
    %v1443 = vadd.f32 %v630, %v1442
    %1444 = vdwg.mxu0
    %1445 = vmatpush.msra.mxu0 %v473
    %1446 = vmatpush.msra.mxu0 %v469
    %1447 = vmatpush.msra.mxu0 %v465
    %1448 = vmatpush.msra.mxu0 %v461
    %1449 = vmatpush.msra.mxu0 %v457
    %1450 = vmatpush.msra.mxu0 %v453
    %1451 = vmatpush.msra.mxu0 %v449
    %1452 = vmatpush.msra.mxu0 %v445
    %1453 = vmatpush.msra.mxu0 %v441
    %1454 = vmatpush.msra.mxu0 %v437
    %1455 = vmatpush.msra.mxu0 %v433
    %1456 = vmatpush.msra.mxu0 %v429
    %1457 = vmatpush.msra.mxu0 %v425
    %1458 = vmatpush.msra.mxu0 %v421
    %1459 = vmatpush.msra.mxu0 %v417
    %1460 = vmatpush.msra.mxu0 %v413
    %1461 = vmatmul.f32.gmra.mxu0 %v1384
    %v1462 = vpop.f32.mrf.mxu0
    %v1463 = vadd.f32 %v1443, %v1462
    %1464 = vdwg.mxu0
    %1465 = vmatpush.msra.mxu0 %v410
    %1466 = vmatpush.msra.mxu0 %v406
    %1467 = vmatpush.msra.mxu0 %v402
    %1468 = vmatpush.msra.mxu0 %v398
    %1469 = vmatpush.msra.mxu0 %v394
    %1470 = vmatpush.msra.mxu0 %v390
    %1471 = vmatpush.msra.mxu0 %v386
    %1472 = vmatpush.msra.mxu0 %v382
    %1473 = vmatpush.msra.mxu0 %v378
    %1474 = vmatpush.msra.mxu0 %v374
    %1475 = vmatpush.msra.mxu0 %v370
    %1476 = vmatpush.msra.mxu0 %v366
    %1477 = vmatpush.msra.mxu0 %v362
    %1478 = vmatpush.msra.mxu0 %v358
    %1479 = vmatpush.msra.mxu0 %v354
    %1480 = vmatpush.msra.mxu0 %v350
    %1481 = vmatmul.f32.gmra.mxu0 %v1383
    %v1482 = vpop.f32.mrf.mxu0
    %v1483 = vadd.f32 %v631, %v1482
    %1484 = vdwg.mxu0
    %1485 = vmatpush.msra.mxu0 %v474
    %1486 = vmatpush.msra.mxu0 %v470
    %1487 = vmatpush.msra.mxu0 %v466
    %1488 = vmatpush.msra.mxu0 %v462
    %1489 = vmatpush.msra.mxu0 %v458
    %1490 = vmatpush.msra.mxu0 %v454
    %1491 = vmatpush.msra.mxu0 %v450
    %1492 = vmatpush.msra.mxu0 %v446
    %1493 = vmatpush.msra.mxu0 %v442
    %1494 = vmatpush.msra.mxu0 %v438
    %1495 = vmatpush.msra.mxu0 %v434
    %1496 = vmatpush.msra.mxu0 %v430
    %1497 = vmatpush.msra.mxu0 %v426
    %1498 = vmatpush.msra.mxu0 %v422
    %1499 = vmatpush.msra.mxu0 %v418
    %1500 = vmatpush.msra.mxu0 %v414
    %1501 = vmatmul.f32.gmra.mxu0 %v1384
    %v1502 = vpop.f32.mrf.mxu0
    %v1503 = vadd.f32 %v1483, %v1502
    %1504 = vdwg.mxu0
    %1505 = vmatpush.msra.mxu0 %v411
    %1506 = vmatpush.msra.mxu0 %v407
    %1507 = vmatpush.msra.mxu0 %v403
    %1508 = vmatpush.msra.mxu0 %v399
    %1509 = vmatpush.msra.mxu0 %v395
    %1510 = vmatpush.msra.mxu0 %v391
    %1511 = vmatpush.msra.mxu0 %v387
    %1512 = vmatpush.msra.mxu0 %v383
    %1513 = vmatpush.msra.mxu0 %v379
    %1514 = vmatpush.msra.mxu0 %v375
    %1515 = vmatpush.msra.mxu0 %v371
    %1516 = vmatpush.msra.mxu0 %v367
    %1517 = vmatpush.msra.mxu0 %v363
    %1518 = vmatpush.msra.mxu0 %v359
    %1519 = vmatpush.msra.mxu0 %v355
    %1520 = vmatpush.msra.mxu0 %v351
    %1521 = vmatmul.f32.gmra.mxu0 %v1383
    %v1522 = vpop.f32.mrf.mxu0
    %v1523 = vadd.f32 %v632, %v1522
    %1524 = vdwg.mxu0
    %1525 = vmatpush.msra.mxu0 %v475
    %1526 = vmatpush.msra.mxu0 %v471
    %1527 = vmatpush.msra.mxu0 %v467
    %1528 = vmatpush.msra.mxu0 %v463
    %1529 = vmatpush.msra.mxu0 %v459
    %1530 = vmatpush.msra.mxu0 %v455
    %1531 = vmatpush.msra.mxu0 %v451
    %1532 = vmatpush.msra.mxu0 %v447
    %1533 = vmatpush.msra.mxu0 %v443
    %1534 = vmatpush.msra.mxu0 %v439
    %1535 = vmatpush.msra.mxu0 %v435
    %1536 = vmatpush.msra.mxu0 %v431
    %1537 = vmatpush.msra.mxu0 %v427
    %1538 = vmatpush.msra.mxu0 %v423
    %1539 = vmatpush.msra.mxu0 %v419
    %1540 = vmatpush.msra.mxu0 %v415
    %1541 = vmatmul.f32.gmra.mxu0 %v1384
    %v1542 = vpop.f32.mrf.mxu0
    %v1543 = vadd.f32 %v1523, %v1542
    %1544 = vdwg.mxu0
    %v1545 = vxor.u32 %v1423, 2147483648
    %v1546 = vmul.f32 %v1545, 1.442695
    %v1547 = vpow.pop %v1546
    %v1548 = vadd.f32 %v1547, 1.0
    %v1549 = vrcp.pop %v1548
    %v1550 = vmul.f32 %v1548, %v1549
    %v1551 = vsub.f32 1.0, %v1550
    %v1552 = vmul.f32 %v1549, %v1551
    %v1553 = vadd.f32 %v1549, %v1552
    %vm1554 = vweird.f32 %v1548
    %vm1555 = vweird.f32 %v1549
    %vm1556 = vmor %vm1554, %vm1555
    %v1557 = vsel %vm1556, %v1549, %v1553
    %v1558 = vand.u32 2147483647, %v1548
    %vm1559 = vcmp.eq.f32.partialorder %v1558, 8.507059e+37
    %v1560 = vand.u32 %v1548, 2147483648
    %v1561 = vor.u32 1.1754944e-38, %v1560
    %v1562 = vsel %vm1559, %v1561, %v1557
    %v1563 = vmul.f32 1.0, %v1562
    %v1564 = vxor.u32 %v1463, 2147483648
    %v1565 = vmul.f32 %v1564, 1.442695
    %v1566 = vpow.pop %v1565
    %v1567 = vadd.f32 %v1566, 1.0
    %v1568 = vrcp.pop %v1567
    %v1569 = vmul.f32 %v1567, %v1568
    %v1570 = vsub.f32 1.0, %v1569
    %v1571 = vmul.f32 %v1568, %v1570
    %v1572 = vadd.f32 %v1568, %v1571
    %vm1573 = vweird.f32 %v1567
    %vm1574 = vweird.f32 %v1568
    %vm1575 = vmor %vm1573, %vm1574
    %v1576 = vsel %vm1575, %v1568, %v1572
    %v1577 = vand.u32 2147483647, %v1567
    %vm1578 = vcmp.eq.f32.partialorder %v1577, 8.507059e+37
    %v1579 = vand.u32 %v1567, 2147483648
    %v1580 = vor.u32 1.1754944e-38, %v1579
    %v1581 = vsel %vm1578, %v1580, %v1576
    %v1582 = vmul.f32 1.0, %v1581
    %v1583 = vtanh.pop %v1503
    %v1584 = vxor.u32 %v1543, 2147483648
    %v1585 = vmul.f32 %v1584, 1.442695
    %v1586 = vpow.pop %v1585
    %v1587 = vadd.f32 %v1586, 1.0
    %v1588 = vrcp.pop %v1587
    %v1589 = vmul.f32 %v1587, %v1588
    %v1590 = vsub.f32 1.0, %v1589
    %v1591 = vmul.f32 %v1588, %v1590
    %v1592 = vadd.f32 %v1588, %v1591
    %vm1593 = vweird.f32 %v1587
    %vm1594 = vweird.f32 %v1588
    %vm1595 = vmor %vm1593, %vm1594
    %v1596 = vsel %vm1595, %v1588, %v1592
    %v1597 = vand.u32 2147483647, %v1587
    %vm1598 = vcmp.eq.f32.partialorder %v1597, 8.507059e+37
    %v1599 = vand.u32 %v1587, 2147483648
    %v1600 = vor.u32 1.1754944e-38, %v1599
    %v1601 = vsel %vm1598, %v1600, %v1596
    %v1602 = vmul.f32 1.0, %v1601
    %v1603 = vmul.f32 %v1582, %v1231
    %v1604 = vmul.f32 %v1563, %v1583
    %v1605 = vadd.f32 %v1603, %v1604
    %v1606 = vtanh.pop %v1605
    %v1607 = vmul.f32 %v1602, %v1606
    %1608 = vst [vmem:[#allocation2 + $0x8] sm:$0xff] %v1607
    %1609 = vmatpush.msra.mxu0 %v344
    %1610 = vmatpush.msra.mxu0 %v340
    %1611 = vmatpush.msra.mxu0 %v336
    %1612 = vmatpush.msra.mxu0 %v332
    %1613 = vmatpush.msra.mxu0 %v328
    %1614 = vmatpush.msra.mxu0 %v324
    %1615 = vmatpush.msra.mxu0 %v320
    %1616 = vmatpush.msra.mxu0 %v316
    %1617 = vmatpush.msra.mxu0 %v312
    %1618 = vmatpush.msra.mxu0 %v308
    %1619 = vmatpush.msra.mxu0 %v304
    %1620 = vmatpush.msra.mxu0 %v300
    %1621 = vmatpush.msra.mxu0 %v296
    %1622 = vmatpush.msra.mxu0 %v292
    %1623 = vmatpush.msra.mxu0 %v288
    %1624 = vmatpush.msra.mxu0 %v284
    %1625 = vmatmul.f32.gmra.mxu0 %v1381
    %v1626 = vpop.f32.mrf.mxu0
    %v1627 = vadd.f32 0.0, %v1626
    %1628 = vdwg.mxu0
    %1629 = vmatpush.msra.mxu0 %v345
    %1630 = vmatpush.msra.mxu0 %v341
    %1631 = vmatpush.msra.mxu0 %v337
    %1632 = vmatpush.msra.mxu0 %v333
    %1633 = vmatpush.msra.mxu0 %v329
    %1634 = vmatpush.msra.mxu0 %v325
    %1635 = vmatpush.msra.mxu0 %v321
    %1636 = vmatpush.msra.mxu0 %v317
    %1637 = vmatpush.msra.mxu0 %v313
    %1638 = vmatpush.msra.mxu0 %v309
    %1639 = vmatpush.msra.mxu0 %v305
    %1640 = vmatpush.msra.mxu0 %v301
    %1641 = vmatpush.msra.mxu0 %v297
    %1642 = vmatpush.msra.mxu0 %v293
    %1643 = vmatpush.msra.mxu0 %v289
    %1644 = vmatpush.msra.mxu0 %v285
    %1645 = vmatmul.f32.gmra.mxu0 %v1381
    %v1646 = vpop.f32.mrf.mxu0
    %v1647 = vadd.f32 0.0, %v1646
    %1648 = vdwg.mxu0
    %1649 = vmatpush.msra.mxu0 %v346
    %1650 = vmatpush.msra.mxu0 %v342
    %1651 = vmatpush.msra.mxu0 %v338
    %1652 = vmatpush.msra.mxu0 %v334
    %1653 = vmatpush.msra.mxu0 %v330
    %1654 = vmatpush.msra.mxu0 %v326
    %1655 = vmatpush.msra.mxu0 %v322
    %1656 = vmatpush.msra.mxu0 %v318
    %1657 = vmatpush.msra.mxu0 %v314
    %1658 = vmatpush.msra.mxu0 %v310
    %1659 = vmatpush.msra.mxu0 %v306
    %1660 = vmatpush.msra.mxu0 %v302
    %1661 = vmatpush.msra.mxu0 %v298
    %1662 = vmatpush.msra.mxu0 %v294
    %1663 = vmatpush.msra.mxu0 %v290
    %1664 = vmatpush.msra.mxu0 %v286
    %1665 = vmatmul.f32.gmra.mxu0 %v1381
    %v1666 = vpop.f32.mrf.mxu0
    %v1667 = vadd.f32 0.0, %v1666
    %1668 = vdwg.mxu0
    %1669 = vmatpush.msra.mxu0 %v347
    %1670 = vmatpush.msra.mxu0 %v343
    %1671 = vmatpush.msra.mxu0 %v339
    %1672 = vmatpush.msra.mxu0 %v335
    %1673 = vmatpush.msra.mxu0 %v331
    %1674 = vmatpush.msra.mxu0 %v327
    %1675 = vmatpush.msra.mxu0 %v323
    %1676 = vmatpush.msra.mxu0 %v319
    %1677 = vmatpush.msra.mxu0 %v315
    %1678 = vmatpush.msra.mxu0 %v311
    %1679 = vmatpush.msra.mxu0 %v307
    %1680 = vmatpush.msra.mxu0 %v303
    %1681 = vmatpush.msra.mxu0 %v299
    %1682 = vmatpush.msra.mxu0 %v295
    %1683 = vmatpush.msra.mxu0 %v291
    %1684 = vmatpush.msra.mxu0 %v287
    %1685 = vmatmul.f32.gmra.mxu0 %v1381
    %v1686 = vpop.f32.mrf.mxu0
    %v1687 = vadd.f32 0.0, %v1686
    %1688 = vdwg.mxu0
    %v1689 = vadd.f32 %v147, %v1627
    %v1690 = vadd.f32 %v188, %v1647
    %v1691 = vadd.f32 %v229, %v1667
    %v1692 = vadd.f32 %v270, %v1687
    %v1693 = vxor.u32 %v1689, 2147483648
    %v1694 = vmul.f32 %v1693, 1.442695
    %v1695 = vpow.pop %v1694
    %v1696 = vadd.f32 %v1695, 1.0
    %v1697 = vrcp.pop %v1696
    %v1698 = vmul.f32 %v1696, %v1697
    %v1699 = vsub.f32 1.0, %v1698
    %v1700 = vmul.f32 %v1697, %v1699
    %v1701 = vadd.f32 %v1697, %v1700
    %vm1702 = vweird.f32 %v1696
    %vm1703 = vweird.f32 %v1697
    %vm1704 = vmor %vm1702, %vm1703
    %v1705 = vsel %vm1704, %v1697, %v1701
    %v1706 = vand.u32 2147483647, %v1696
    %vm1707 = vcmp.eq.f32.partialorder %v1706, 8.507059e+37
    %v1708 = vand.u32 %v1696, 2147483648
    %v1709 = vor.u32 1.1754944e-38, %v1708
    %v1710 = vsel %vm1707, %v1709, %v1705
    %v1711 = vmul.f32 1.0, %v1710
    %v1712 = vxor.u32 %v1690, 2147483648
    %v1713 = vmul.f32 %v1712, 1.442695
    %v1714 = vpow.pop %v1713
    %v1715 = vadd.f32 %v1714, 1.0
    %v1716 = vrcp.pop %v1715
    %v1717 = vmul.f32 %v1715, %v1716
    %v1718 = vsub.f32 1.0, %v1717
    %v1719 = vmul.f32 %v1716, %v1718
    %v1720 = vadd.f32 %v1716, %v1719
    %vm1721 = vweird.f32 %v1715
    %vm1722 = vweird.f32 %v1716
    %vm1723 = vmor %vm1721, %vm1722
    %v1724 = vsel %vm1723, %v1716, %v1720
    %v1725 = vand.u32 2147483647, %v1715
    %vm1726 = vcmp.eq.f32.partialorder %v1725, 8.507059e+37
    %v1727 = vand.u32 %v1715, 2147483648
    %v1728 = vor.u32 1.1754944e-38, %v1727
    %v1729 = vsel %vm1726, %v1728, %v1724
    %v1730 = vmul.f32 1.0, %v1729
    %v1731 = vtanh.pop %v1691
    %v1732 = vxor.u32 %v1692, 2147483648
    %v1733 = vmul.f32 %v1732, 1.442695
    %v1734 = vpow.pop %v1733
    %v1735 = vadd.f32 %v1734, 1.0
    %v1736 = vrcp.pop %v1735
    %v1737 = vmul.f32 %v1735, %v1736
    %v1738 = vsub.f32 1.0, %v1737
    %v1739 = vmul.f32 %v1736, %v1738
    %v1740 = vadd.f32 %v1736, %v1739
    %vm1741 = vweird.f32 %v1735
    %vm1742 = vweird.f32 %v1736
    %vm1743 = vmor %vm1741, %vm1742
    %v1744 = vsel %vm1743, %v1736, %v1740
    %v1745 = vand.u32 2147483647, %v1735
    %vm1746 = vcmp.eq.f32.partialorder %v1745, 8.507059e+37
    %v1747 = vand.u32 %v1735, 2147483648
    %v1748 = vor.u32 1.1754944e-38, %v1747
    %v1749 = vsel %vm1746, %v1748, %v1744
    %v1750 = vmul.f32 1.0, %v1749
    %v1751 = vmul.f32 %v1730, %v1379
    %v1752 = vmul.f32 %v1711, %v1731
    %v1753 = vadd.f32 %v1751, %v1752
    %v1754 = vtanh.pop %v1753
    %v1755 = vmul.f32 %v1750, %v1754
    %1756 = vst [vmem:[#allocation2] sm:$0xff] %v1755
    %v1757 = vld [vmem:[#allocation2] sm:$0xff]
    %v1758 = vld [vmem:[#allocation2 + $0x8] sm:$0xff]
    %1759 = vmatpush.msra.mxu0 %v408
    %1760 = vmatpush.msra.mxu0 %v404
    %1761 = vmatpush.msra.mxu0 %v400
    %1762 = vmatpush.msra.mxu0 %v396
    %1763 = vmatpush.msra.mxu0 %v392
    %1764 = vmatpush.msra.mxu0 %v388
    %1765 = vmatpush.msra.mxu0 %v384
    %1766 = vmatpush.msra.mxu0 %v380
    %1767 = vmatpush.msra.mxu0 %v376
    %1768 = vmatpush.msra.mxu0 %v372
    %1769 = vmatpush.msra.mxu0 %v368
    %1770 = vmatpush.msra.mxu0 %v364
    %1771 = vmatpush.msra.mxu0 %v360
    %1772 = vmatpush.msra.mxu0 %v356
    %1773 = vmatpush.msra.mxu0 %v352
    %1774 = vmatpush.msra.mxu0 %v348
    %1775 = vmatmul.f32.gmra.mxu0 %v1757
    %v1776 = vpop.f32.mrf.mxu0
    %v1777 = vadd.f32 %v629, %v1776
    %1778 = vdwg.mxu0
    %1779 = vmatpush.msra.mxu0 %v472
    %1780 = vmatpush.msra.mxu0 %v468
    %1781 = vmatpush.msra.mxu0 %v464
    %1782 = vmatpush.msra.mxu0 %v460
    %1783 = vmatpush.msra.mxu0 %v456
    %1784 = vmatpush.msra.mxu0 %v452
    %1785 = vmatpush.msra.mxu0 %v448
    %1786 = vmatpush.msra.mxu0 %v444
    %1787 = vmatpush.msra.mxu0 %v440
    %1788 = vmatpush.msra.mxu0 %v436
    %1789 = vmatpush.msra.mxu0 %v432
    %1790 = vmatpush.msra.mxu0 %v428
    %1791 = vmatpush.msra.mxu0 %v424
    %1792 = vmatpush.msra.mxu0 %v420
    %1793 = vmatpush.msra.mxu0 %v416
    %1794 = vmatpush.msra.mxu0 %v412
    %1795 = vmatmul.f32.gmra.mxu0 %v1758
    %v1796 = vpop.f32.mrf.mxu0
    %v1797 = vadd.f32 %v1777, %v1796
    %1798 = vdwg.mxu0
    %1799 = vmatpush.msra.mxu0 %v409
    %1800 = vmatpush.msra.mxu0 %v405
    %1801 = vmatpush.msra.mxu0 %v401
    %1802 = vmatpush.msra.mxu0 %v397
    %1803 = vmatpush.msra.mxu0 %v393
    %1804 = vmatpush.msra.mxu0 %v389
    %1805 = vmatpush.msra.mxu0 %v385
    %1806 = vmatpush.msra.mxu0 %v381
    %1807 = vmatpush.msra.mxu0 %v377
    %1808 = vmatpush.msra.mxu0 %v373
    %1809 = vmatpush.msra.mxu0 %v369
    %1810 = vmatpush.msra.mxu0 %v365
    %1811 = vmatpush.msra.mxu0 %v361
    %1812 = vmatpush.msra.mxu0 %v357
    %1813 = vmatpush.msra.mxu0 %v353
    %1814 = vmatpush.msra.mxu0 %v349
    %1815 = vmatmul.f32.gmra.mxu0 %v1757
    %v1816 = vpop.f32.mrf.mxu0
    %v1817 = vadd.f32 %v630, %v1816
    %1818 = vdwg.mxu0
    %1819 = vmatpush.msra.mxu0 %v473
    %1820 = vmatpush.msra.mxu0 %v469
    %1821 = vmatpush.msra.mxu0 %v465
    %1822 = vmatpush.msra.mxu0 %v461
    %1823 = vmatpush.msra.mxu0 %v457
    %1824 = vmatpush.msra.mxu0 %v453
    %1825 = vmatpush.msra.mxu0 %v449
    %1826 = vmatpush.msra.mxu0 %v445
    %1827 = vmatpush.msra.mxu0 %v441
    %1828 = vmatpush.msra.mxu0 %v437
    %1829 = vmatpush.msra.mxu0 %v433
    %1830 = vmatpush.msra.mxu0 %v429
    %1831 = vmatpush.msra.mxu0 %v425
    %1832 = vmatpush.msra.mxu0 %v421
    %1833 = vmatpush.msra.mxu0 %v417
    %1834 = vmatpush.msra.mxu0 %v413
    %1835 = vmatmul.f32.gmra.mxu0 %v1758
    %v1836 = vpop.f32.mrf.mxu0
    %v1837 = vadd.f32 %v1817, %v1836
    %1838 = vdwg.mxu0
    %1839 = vmatpush.msra.mxu0 %v410
    %1840 = vmatpush.msra.mxu0 %v406
    %1841 = vmatpush.msra.mxu0 %v402
    %1842 = vmatpush.msra.mxu0 %v398
    %1843 = vmatpush.msra.mxu0 %v394
    %1844 = vmatpush.msra.mxu0 %v390
    %1845 = vmatpush.msra.mxu0 %v386
    %1846 = vmatpush.msra.mxu0 %v382
    %1847 = vmatpush.msra.mxu0 %v378
    %1848 = vmatpush.msra.mxu0 %v374
    %1849 = vmatpush.msra.mxu0 %v370
    %1850 = vmatpush.msra.mxu0 %v366
    %1851 = vmatpush.msra.mxu0 %v362
    %1852 = vmatpush.msra.mxu0 %v358
    %1853 = vmatpush.msra.mxu0 %v354
    %1854 = vmatpush.msra.mxu0 %v350
    %1855 = vmatmul.f32.gmra.mxu0 %v1757
    %v1856 = vpop.f32.mrf.mxu0
    %v1857 = vadd.f32 %v631, %v1856
    %1858 = vdwg.mxu0
    %1859 = vmatpush.msra.mxu0 %v474
    %1860 = vmatpush.msra.mxu0 %v470
    %1861 = vmatpush.msra.mxu0 %v466
    %1862 = vmatpush.msra.mxu0 %v462
    %1863 = vmatpush.msra.mxu0 %v458
    %1864 = vmatpush.msra.mxu0 %v454
    %1865 = vmatpush.msra.mxu0 %v450
    %1866 = vmatpush.msra.mxu0 %v446
    %1867 = vmatpush.msra.mxu0 %v442
    %1868 = vmatpush.msra.mxu0 %v438
    %1869 = vmatpush.msra.mxu0 %v434
    %1870 = vmatpush.msra.mxu0 %v430
    %1871 = vmatpush.msra.mxu0 %v426
    %1872 = vmatpush.msra.mxu0 %v422
    %1873 = vmatpush.msra.mxu0 %v418
    %1874 = vmatpush.msra.mxu0 %v414
    %1875 = vmatmul.f32.gmra.mxu0 %v1758
    %v1876 = vpop.f32.mrf.mxu0
    %v1877 = vadd.f32 %v1857, %v1876
    %1878 = vdwg.mxu0
    %1879 = vmatpush.msra.mxu0 %v411
    %1880 = vmatpush.msra.mxu0 %v407
    %1881 = vmatpush.msra.mxu0 %v403
    %1882 = vmatpush.msra.mxu0 %v399
    %1883 = vmatpush.msra.mxu0 %v395
    %1884 = vmatpush.msra.mxu0 %v391
    %1885 = vmatpush.msra.mxu0 %v387
    %1886 = vmatpush.msra.mxu0 %v383
    %1887 = vmatpush.msra.mxu0 %v379
    %1888 = vmatpush.msra.mxu0 %v375
    %1889 = vmatpush.msra.mxu0 %v371
    %1890 = vmatpush.msra.mxu0 %v367
    %1891 = vmatpush.msra.mxu0 %v363
    %1892 = vmatpush.msra.mxu0 %v359
    %1893 = vmatpush.msra.mxu0 %v355
    %1894 = vmatpush.msra.mxu0 %v351
    %1895 = vmatmul.f32.gmra.mxu0 %v1757
    %v1896 = vpop.f32.mrf.mxu0
    %v1897 = vadd.f32 %v632, %v1896
    %1898 = vdwg.mxu0
    %1899 = vmatpush.msra.mxu0 %v475
    %1900 = vmatpush.msra.mxu0 %v471
    %1901 = vmatpush.msra.mxu0 %v467
    %1902 = vmatpush.msra.mxu0 %v463
    %1903 = vmatpush.msra.mxu0 %v459
    %1904 = vmatpush.msra.mxu0 %v455
    %1905 = vmatpush.msra.mxu0 %v451
    %1906 = vmatpush.msra.mxu0 %v447
    %1907 = vmatpush.msra.mxu0 %v443
    %1908 = vmatpush.msra.mxu0 %v439
    %1909 = vmatpush.msra.mxu0 %v435
    %1910 = vmatpush.msra.mxu0 %v431
    %1911 = vmatpush.msra.mxu0 %v427
    %1912 = vmatpush.msra.mxu0 %v423
    %1913 = vmatpush.msra.mxu0 %v419
    %1914 = vmatpush.msra.mxu0 %v415
    %1915 = vmatmul.f32.gmra.mxu0 %v1758
    %v1916 = vpop.f32.mrf.mxu0
    %v1917 = vadd.f32 %v1897, %v1916
    %1918 = vdwg.mxu0
    %v1919 = vxor.u32 %v1797, 2147483648
    %v1920 = vmul.f32 %v1919, 1.442695
    %v1921 = vpow.pop %v1920
    %v1922 = vadd.f32 %v1921, 1.0
    %v1923 = vrcp.pop %v1922
    %v1924 = vmul.f32 %v1922, %v1923
    %v1925 = vsub.f32 1.0, %v1924
    %v1926 = vmul.f32 %v1923, %v1925
    %v1927 = vadd.f32 %v1923, %v1926
    %vm1928 = vweird.f32 %v1922
    %vm1929 = vweird.f32 %v1923
    %vm1930 = vmor %vm1928, %vm1929
    %v1931 = vsel %vm1930, %v1923, %v1927
    %v1932 = vand.u32 2147483647, %v1922
    %vm1933 = vcmp.eq.f32.partialorder %v1932, 8.507059e+37
    %v1934 = vand.u32 %v1922, 2147483648
    %v1935 = vor.u32 1.1754944e-38, %v1934
    %v1936 = vsel %vm1933, %v1935, %v1931
    %v1937 = vmul.f32 1.0, %v1936
    %v1938 = vxor.u32 %v1837, 2147483648
    %v1939 = vmul.f32 %v1938, 1.442695
    %v1940 = vpow.pop %v1939
    %v1941 = vadd.f32 %v1940, 1.0
    %v1942 = vrcp.pop %v1941
    %v1943 = vmul.f32 %v1941, %v1942
    %v1944 = vsub.f32 1.0, %v1943
    %v1945 = vmul.f32 %v1942, %v1944
    %v1946 = vadd.f32 %v1942, %v1945
    %vm1947 = vweird.f32 %v1941
    %vm1948 = vweird.f32 %v1942
    %vm1949 = vmor %vm1947, %vm1948
    %v1950 = vsel %vm1949, %v1942, %v1946
    %v1951 = vand.u32 2147483647, %v1941
    %vm1952 = vcmp.eq.f32.partialorder %v1951, 8.507059e+37
    %v1953 = vand.u32 %v1941, 2147483648
    %v1954 = vor.u32 1.1754944e-38, %v1953
    %v1955 = vsel %vm1952, %v1954, %v1950
    %v1956 = vmul.f32 1.0, %v1955
    %v1957 = vtanh.pop %v1877
    %v1958 = vxor.u32 %v1917, 2147483648
    %v1959 = vmul.f32 %v1958, 1.442695
    %v1960 = vpow.pop %v1959
    %v1961 = vadd.f32 %v1960, 1.0
    %v1962 = vrcp.pop %v1961
    %v1963 = vmul.f32 %v1961, %v1962
    %v1964 = vsub.f32 1.0, %v1963
    %v1965 = vmul.f32 %v1962, %v1964
    %v1966 = vadd.f32 %v1962, %v1965
    %vm1967 = vweird.f32 %v1961
    %vm1968 = vweird.f32 %v1962
    %vm1969 = vmor %vm1967, %vm1968
    %v1970 = vsel %vm1969, %v1962, %v1966
    %v1971 = vand.u32 2147483647, %v1961
    %vm1972 = vcmp.eq.f32.partialorder %v1971, 8.507059e+37
    %v1973 = vand.u32 %v1961, 2147483648
    %v1974 = vor.u32 1.1754944e-38, %v1973
    %v1975 = vsel %vm1972, %v1974, %v1970
    %v1976 = vmul.f32 1.0, %v1975
    %v1977 = vmul.f32 %v1956, %v1605
    %v1978 = vmul.f32 %v1937, %v1957
    %v1979 = vadd.f32 %v1977, %v1978
    %v1980 = vtanh.pop %v1979
    %v1981 = vmul.f32 %v1976, %v1980
    %1982 = vst [vmem:[#allocation2 + $0x8] sm:$0xff] %v1981
    %1983 = vmatpush.msra.mxu0 %v344
    %1984 = vmatpush.msra.mxu0 %v340
    %1985 = vmatpush.msra.mxu0 %v336
    %1986 = vmatpush.msra.mxu0 %v332
    %1987 = vmatpush.msra.mxu0 %v328
    %1988 = vmatpush.msra.mxu0 %v324
    %1989 = vmatpush.msra.mxu0 %v320
    %1990 = vmatpush.msra.mxu0 %v316
    %1991 = vmatpush.msra.mxu0 %v312
    %1992 = vmatpush.msra.mxu0 %v308
    %1993 = vmatpush.msra.mxu0 %v304
    %1994 = vmatpush.msra.mxu0 %v300
    %1995 = vmatpush.msra.mxu0 %v296
    %1996 = vmatpush.msra.mxu0 %v292
    %1997 = vmatpush.msra.mxu0 %v288
    %1998 = vmatpush.msra.mxu0 %v284
    %1999 = vmatmul.f32.gmra.mxu0 %v1755
    %v2000 = vpop.f32.mrf.mxu0
    %v2001 = vadd.f32 0.0, %v2000
    %2002 = vdwg.mxu0
    %2003 = vmatpush.msra.mxu0 %v345
    %2004 = vmatpush.msra.mxu0 %v341
    %2005 = vmatpush.msra.mxu0 %v337
    %2006 = vmatpush.msra.mxu0 %v333
    %2007 = vmatpush.msra.mxu0 %v329
    %2008 = vmatpush.msra.mxu0 %v325
    %2009 = vmatpush.msra.mxu0 %v321
    %2010 = vmatpush.msra.mxu0 %v317
    %2011 = vmatpush.msra.mxu0 %v313
    %2012 = vmatpush.msra.mxu0 %v309
    %2013 = vmatpush.msra.mxu0 %v305
    %2014 = vmatpush.msra.mxu0 %v301
    %2015 = vmatpush.msra.mxu0 %v297
    %2016 = vmatpush.msra.mxu0 %v293
    %2017 = vmatpush.msra.mxu0 %v289
    %2018 = vmatpush.msra.mxu0 %v285
    %2019 = vmatmul.f32.gmra.mxu0 %v1755
    %v2020 = vpop.f32.mrf.mxu0
    %v2021 = vadd.f32 0.0, %v2020
    %2022 = vdwg.mxu0
    %2023 = vmatpush.msra.mxu0 %v346
    %2024 = vmatpush.msra.mxu0 %v342
    %2025 = vmatpush.msra.mxu0 %v338
    %2026 = vmatpush.msra.mxu0 %v334
    %2027 = vmatpush.msra.mxu0 %v330
    %2028 = vmatpush.msra.mxu0 %v326
    %2029 = vmatpush.msra.mxu0 %v322
    %2030 = vmatpush.msra.mxu0 %v318
    %2031 = vmatpush.msra.mxu0 %v314
    %2032 = vmatpush.msra.mxu0 %v310
    %2033 = vmatpush.msra.mxu0 %v306
    %2034 = vmatpush.msra.mxu0 %v302
    %2035 = vmatpush.msra.mxu0 %v298
    %2036 = vmatpush.msra.mxu0 %v294
    %2037 = vmatpush.msra.mxu0 %v290
    %2038 = vmatpush.msra.mxu0 %v286
    %2039 = vmatmul.f32.gmra.mxu0 %v1755
    %v2040 = vpop.f32.mrf.mxu0
    %v2041 = vadd.f32 0.0, %v2040
    %2042 = vdwg.mxu0
    %2043 = vmatpush.msra.mxu0 %v347
    %2044 = vmatpush.msra.mxu0 %v343
    %2045 = vmatpush.msra.mxu0 %v339
    %2046 = vmatpush.msra.mxu0 %v335
    %2047 = vmatpush.msra.mxu0 %v331
    %2048 = vmatpush.msra.mxu0 %v327
    %2049 = vmatpush.msra.mxu0 %v323
    %2050 = vmatpush.msra.mxu0 %v319
    %2051 = vmatpush.msra.mxu0 %v315
    %2052 = vmatpush.msra.mxu0 %v311
    %2053 = vmatpush.msra.mxu0 %v307
    %2054 = vmatpush.msra.mxu0 %v303
    %2055 = vmatpush.msra.mxu0 %v299
    %2056 = vmatpush.msra.mxu0 %v295
    %2057 = vmatpush.msra.mxu0 %v291
    %2058 = vmatpush.msra.mxu0 %v287
    %2059 = vmatmul.f32.gmra.mxu0 %v1755
    %v2060 = vpop.f32.mrf.mxu0
    %v2061 = vadd.f32 0.0, %v2060
    %2062 = vdwg.mxu0
    %v2063 = vadd.f32 %v150, %v2001
    %v2064 = vadd.f32 %v191, %v2021
    %v2065 = vadd.f32 %v232, %v2041
    %v2066 = vadd.f32 %v273, %v2061
    %v2067 = vxor.u32 %v2063, 2147483648
    %v2068 = vmul.f32 %v2067, 1.442695
    %v2069 = vpow.pop %v2068
    %v2070 = vadd.f32 %v2069, 1.0
    %v2071 = vrcp.pop %v2070
    %v2072 = vmul.f32 %v2070, %v2071
    %v2073 = vsub.f32 1.0, %v2072
    %v2074 = vmul.f32 %v2071, %v2073
    %v2075 = vadd.f32 %v2071, %v2074
    %vm2076 = vweird.f32 %v2070
    %vm2077 = vweird.f32 %v2071
    %vm2078 = vmor %vm2076, %vm2077
    %v2079 = vsel %vm2078, %v2071, %v2075
    %v2080 = vand.u32 2147483647, %v2070
    %vm2081 = vcmp.eq.f32.partialorder %v2080, 8.507059e+37
    %v2082 = vand.u32 %v2070, 2147483648
    %v2083 = vor.u32 1.1754944e-38, %v2082
    %v2084 = vsel %vm2081, %v2083, %v2079
    %v2085 = vmul.f32 1.0, %v2084
    %v2086 = vxor.u32 %v2064, 2147483648
    %v2087 = vmul.f32 %v2086, 1.442695
    %v2088 = vpow.pop %v2087
    %v2089 = vadd.f32 %v2088, 1.0
    %v2090 = vrcp.pop %v2089
    %v2091 = vmul.f32 %v2089, %v2090
    %v2092 = vsub.f32 1.0, %v2091
    %v2093 = vmul.f32 %v2090, %v2092
    %v2094 = vadd.f32 %v2090, %v2093
    %vm2095 = vweird.f32 %v2089
    %vm2096 = vweird.f32 %v2090
    %vm2097 = vmor %vm2095, %vm2096
    %v2098 = vsel %vm2097, %v2090, %v2094
    %v2099 = vand.u32 2147483647, %v2089
    %vm2100 = vcmp.eq.f32.partialorder %v2099, 8.507059e+37
    %v2101 = vand.u32 %v2089, 2147483648
    %v2102 = vor.u32 1.1754944e-38, %v2101
    %v2103 = vsel %vm2100, %v2102, %v2098
    %v2104 = vmul.f32 1.0, %v2103
    %v2105 = vtanh.pop %v2065
    %v2106 = vxor.u32 %v2066, 2147483648
    %v2107 = vmul.f32 %v2106, 1.442695
    %v2108 = vpow.pop %v2107
    %v2109 = vadd.f32 %v2108, 1.0
    %v2110 = vrcp.pop %v2109
    %v2111 = vmul.f32 %v2109, %v2110
    %v2112 = vsub.f32 1.0, %v2111
    %v2113 = vmul.f32 %v2110, %v2112
    %v2114 = vadd.f32 %v2110, %v2113
    %vm2115 = vweird.f32 %v2109
    %vm2116 = vweird.f32 %v2110
    %vm2117 = vmor %vm2115, %vm2116
    %v2118 = vsel %vm2117, %v2110, %v2114
    %v2119 = vand.u32 2147483647, %v2109
    %vm2120 = vcmp.eq.f32.partialorder %v2119, 8.507059e+37
    %v2121 = vand.u32 %v2109, 2147483648
    %v2122 = vor.u32 1.1754944e-38, %v2121
    %v2123 = vsel %vm2120, %v2122, %v2118
    %v2124 = vmul.f32 1.0, %v2123
    %v2125 = vmul.f32 %v2104, %v1753
    %v2126 = vmul.f32 %v2085, %v2105
    %v2127 = vadd.f32 %v2125, %v2126
    %v2128 = vtanh.pop %v2127
    %v2129 = vmul.f32 %v2124, %v2128
    %2130 = vst [vmem:[#allocation2] sm:$0xff] %v2129
    %v2131 = vld [vmem:[#allocation2] sm:$0xff]
    %v2132 = vld [vmem:[#allocation2 + $0x8] sm:$0xff]
    %2133 = vmatpush.msra.mxu0 %v408
    %2134 = vmatpush.msra.mxu0 %v404
    %2135 = vmatpush.msra.mxu0 %v400
    %2136 = vmatpush.msra.mxu0 %v396
    %2137 = vmatpush.msra.mxu0 %v392
    %2138 = vmatpush.msra.mxu0 %v388
    %2139 = vmatpush.msra.mxu0 %v384
    %2140 = vmatpush.msra.mxu0 %v380
    %2141 = vmatpush.msra.mxu0 %v376
    %2142 = vmatpush.msra.mxu0 %v372
    %2143 = vmatpush.msra.mxu0 %v368
    %2144 = vmatpush.msra.mxu0 %v364
    %2145 = vmatpush.msra.mxu0 %v360
    %2146 = vmatpush.msra.mxu0 %v356
    %2147 = vmatpush.msra.mxu0 %v352
    %2148 = vmatpush.msra.mxu0 %v348
    %2149 = vmatmul.f32.gmra.mxu0 %v2131
    %v2150 = vpop.f32.mrf.mxu0
    %v2151 = vadd.f32 %v629, %v2150
    %2152 = vdwg.mxu0
    %2153 = vmatpush.msra.mxu0 %v472
    %2154 = vmatpush.msra.mxu0 %v468
    %2155 = vmatpush.msra.mxu0 %v464
    %2156 = vmatpush.msra.mxu0 %v460
    %2157 = vmatpush.msra.mxu0 %v456
    %2158 = vmatpush.msra.mxu0 %v452
    %2159 = vmatpush.msra.mxu0 %v448
    %2160 = vmatpush.msra.mxu0 %v444
    %2161 = vmatpush.msra.mxu0 %v440
    %2162 = vmatpush.msra.mxu0 %v436
    %2163 = vmatpush.msra.mxu0 %v432
    %2164 = vmatpush.msra.mxu0 %v428
    %2165 = vmatpush.msra.mxu0 %v424
    %2166 = vmatpush.msra.mxu0 %v420
    %2167 = vmatpush.msra.mxu0 %v416
    %2168 = vmatpush.msra.mxu0 %v412
    %2169 = vmatmul.f32.gmra.mxu0 %v2132
    %v2170 = vpop.f32.mrf.mxu0
    %v2171 = vadd.f32 %v2151, %v2170
    %2172 = vdwg.mxu0
    %2173 = vmatpush.msra.mxu0 %v409
    %2174 = vmatpush.msra.mxu0 %v405
    %2175 = vmatpush.msra.mxu0 %v401
    %2176 = vmatpush.msra.mxu0 %v397
    %2177 = vmatpush.msra.mxu0 %v393
    %2178 = vmatpush.msra.mxu0 %v389
    %2179 = vmatpush.msra.mxu0 %v385
    %2180 = vmatpush.msra.mxu0 %v381
    %2181 = vmatpush.msra.mxu0 %v377
    %2182 = vmatpush.msra.mxu0 %v373
    %2183 = vmatpush.msra.mxu0 %v369
    %2184 = vmatpush.msra.mxu0 %v365
    %2185 = vmatpush.msra.mxu0 %v361
    %2186 = vmatpush.msra.mxu0 %v357
    %2187 = vmatpush.msra.mxu0 %v353
    %2188 = vmatpush.msra.mxu0 %v349
    %2189 = vmatmul.f32.gmra.mxu0 %v2131
    %v2190 = vpop.f32.mrf.mxu0
    %v2191 = vadd.f32 %v630, %v2190
    %2192 = vdwg.mxu0
    %2193 = vmatpush.msra.mxu0 %v473
    %2194 = vmatpush.msra.mxu0 %v469
    %2195 = vmatpush.msra.mxu0 %v465
    %2196 = vmatpush.msra.mxu0 %v461
    %2197 = vmatpush.msra.mxu0 %v457
    %2198 = vmatpush.msra.mxu0 %v453
    %2199 = vmatpush.msra.mxu0 %v449
    %2200 = vmatpush.msra.mxu0 %v445
    %2201 = vmatpush.msra.mxu0 %v441
    %2202 = vmatpush.msra.mxu0 %v437
    %2203 = vmatpush.msra.mxu0 %v433
    %2204 = vmatpush.msra.mxu0 %v429
    %2205 = vmatpush.msra.mxu0 %v425
    %2206 = vmatpush.msra.mxu0 %v421
    %2207 = vmatpush.msra.mxu0 %v417
    %2208 = vmatpush.msra.mxu0 %v413
    %2209 = vmatmul.f32.gmra.mxu0 %v2132
    %v2210 = vpop.f32.mrf.mxu0
    %v2211 = vadd.f32 %v2191, %v2210
    %2212 = vdwg.mxu0
    %2213 = vmatpush.msra.mxu0 %v410
    %2214 = vmatpush.msra.mxu0 %v406
    %2215 = vmatpush.msra.mxu0 %v402
    %2216 = vmatpush.msra.mxu0 %v398
    %2217 = vmatpush.msra.mxu0 %v394
    %2218 = vmatpush.msra.mxu0 %v390
    %2219 = vmatpush.msra.mxu0 %v386
    %2220 = vmatpush.msra.mxu0 %v382
    %2221 = vmatpush.msra.mxu0 %v378
    %2222 = vmatpush.msra.mxu0 %v374
    %2223 = vmatpush.msra.mxu0 %v370
    %2224 = vmatpush.msra.mxu0 %v366
    %2225 = vmatpush.msra.mxu0 %v362
    %2226 = vmatpush.msra.mxu0 %v358
    %2227 = vmatpush.msra.mxu0 %v354
    %2228 = vmatpush.msra.mxu0 %v350
    %2229 = vmatmul.f32.gmra.mxu0 %v2131
    %v2230 = vpop.f32.mrf.mxu0
    %v2231 = vadd.f32 %v631, %v2230
    %2232 = vdwg.mxu0
    %2233 = vmatpush.msra.mxu0 %v474
    %2234 = vmatpush.msra.mxu0 %v470
    %2235 = vmatpush.msra.mxu0 %v466
    %2236 = vmatpush.msra.mxu0 %v462
    %2237 = vmatpush.msra.mxu0 %v458
    %2238 = vmatpush.msra.mxu0 %v454
    %2239 = vmatpush.msra.mxu0 %v450
    %2240 = vmatpush.msra.mxu0 %v446
    %2241 = vmatpush.msra.mxu0 %v442
    %2242 = vmatpush.msra.mxu0 %v438
    %2243 = vmatpush.msra.mxu0 %v434
    %2244 = vmatpush.msra.mxu0 %v430
    %2245 = vmatpush.msra.mxu0 %v426
    %2246 = vmatpush.msra.mxu0 %v422
    %2247 = vmatpush.msra.mxu0 %v418
    %2248 = vmatpush.msra.mxu0 %v414
    %2249 = vmatmul.f32.gmra.mxu0 %v2132
    %v2250 = vpop.f32.mrf.mxu0
    %v2251 = vadd.f32 %v2231, %v2250
    %2252 = vdwg.mxu0
    %2253 = vmatpush.msra.mxu0 %v411
    %2254 = vmatpush.msra.mxu0 %v407
    %2255 = vmatpush.msra.mxu0 %v403
    %2256 = vmatpush.msra.mxu0 %v399
    %2257 = vmatpush.msra.mxu0 %v395
    %2258 = vmatpush.msra.mxu0 %v391
    %2259 = vmatpush.msra.mxu0 %v387
    %2260 = vmatpush.msra.mxu0 %v383
    %2261 = vmatpush.msra.mxu0 %v379
    %2262 = vmatpush.msra.mxu0 %v375
    %2263 = vmatpush.msra.mxu0 %v371
    %2264 = vmatpush.msra.mxu0 %v367
    %2265 = vmatpush.msra.mxu0 %v363
    %2266 = vmatpush.msra.mxu0 %v359
    %2267 = vmatpush.msra.mxu0 %v355
    %2268 = vmatpush.msra.mxu0 %v351
    %2269 = vmatmul.f32.gmra.mxu0 %v2131
    %v2270 = vpop.f32.mrf.mxu0
    %v2271 = vadd.f32 %v632, %v2270
    %2272 = vdwg.mxu0
    %2273 = vmatpush.msra.mxu0 %v475
    %2274 = vmatpush.msra.mxu0 %v471
    %2275 = vmatpush.msra.mxu0 %v467
    %2276 = vmatpush.msra.mxu0 %v463
    %2277 = vmatpush.msra.mxu0 %v459
    %2278 = vmatpush.msra.mxu0 %v455
    %2279 = vmatpush.msra.mxu0 %v451
    %2280 = vmatpush.msra.mxu0 %v447
    %2281 = vmatpush.msra.mxu0 %v443
    %2282 = vmatpush.msra.mxu0 %v439
    %2283 = vmatpush.msra.mxu0 %v435
    %2284 = vmatpush.msra.mxu0 %v431
    %2285 = vmatpush.msra.mxu0 %v427
    %2286 = vmatpush.msra.mxu0 %v423
    %2287 = vmatpush.msra.mxu0 %v419
    %2288 = vmatpush.msra.mxu0 %v415
    %2289 = vmatmul.f32.gmra.mxu0 %v2132
    %v2290 = vpop.f32.mrf.mxu0
    %v2291 = vadd.f32 %v2271, %v2290
    %2292 = vdwg.mxu0
    %v2293 = vxor.u32 %v2171, 2147483648
    %v2294 = vmul.f32 %v2293, 1.442695
    %v2295 = vpow.pop %v2294
    %v2296 = vadd.f32 %v2295, 1.0
    %v2297 = vrcp.pop %v2296
    %v2298 = vmul.f32 %v2296, %v2297
    %v2299 = vsub.f32 1.0, %v2298
    %v2300 = vmul.f32 %v2297, %v2299
    %v2301 = vadd.f32 %v2297, %v2300
    %vm2302 = vweird.f32 %v2296
    %vm2303 = vweird.f32 %v2297
    %vm2304 = vmor %vm2302, %vm2303
    %v2305 = vsel %vm2304, %v2297, %v2301
    %v2306 = vand.u32 2147483647, %v2296
    %vm2307 = vcmp.eq.f32.partialorder %v2306, 8.507059e+37
    %v2308 = vand.u32 %v2296, 2147483648
    %v2309 = vor.u32 1.1754944e-38, %v2308
    %v2310 = vsel %vm2307, %v2309, %v2305
    %v2311 = vmul.f32 1.0, %v2310
    %v2312 = vxor.u32 %v2211, 2147483648
    %v2313 = vmul.f32 %v2312, 1.442695
    %v2314 = vpow.pop %v2313
    %v2315 = vadd.f32 %v2314, 1.0
    %v2316 = vrcp.pop %v2315
    %v2317 = vmul.f32 %v2315, %v2316
    %v2318 = vsub.f32 1.0, %v2317
    %v2319 = vmul.f32 %v2316, %v2318
    %v2320 = vadd.f32 %v2316, %v2319
    %vm2321 = vweird.f32 %v2315
    %vm2322 = vweird.f32 %v2316
    %vm2323 = vmor %vm2321, %vm2322
    %v2324 = vsel %vm2323, %v2316, %v2320
    %v2325 = vand.u32 2147483647, %v2315
    %vm2326 = vcmp.eq.f32.partialorder %v2325, 8.507059e+37
    %v2327 = vand.u32 %v2315, 2147483648
    %v2328 = vor.u32 1.1754944e-38, %v2327
    %v2329 = vsel %vm2326, %v2328, %v2324
    %v2330 = vmul.f32 1.0, %v2329
    %v2331 = vtanh.pop %v2251
    %v2332 = vxor.u32 %v2291, 2147483648
    %v2333 = vmul.f32 %v2332, 1.442695
    %v2334 = vpow.pop %v2333
    %v2335 = vadd.f32 %v2334, 1.0
    %v2336 = vrcp.pop %v2335
    %v2337 = vmul.f32 %v2335, %v2336
    %v2338 = vsub.f32 1.0, %v2337
    %v2339 = vmul.f32 %v2336, %v2338
    %v2340 = vadd.f32 %v2336, %v2339
    %vm2341 = vweird.f32 %v2335
    %vm2342 = vweird.f32 %v2336
    %vm2343 = vmor %vm2341, %vm2342
    %v2344 = vsel %vm2343, %v2336, %v2340
    %v2345 = vand.u32 2147483647, %v2335
    %vm2346 = vcmp.eq.f32.partialorder %v2345, 8.507059e+37
    %v2347 = vand.u32 %v2335, 2147483648
    %v2348 = vor.u32 1.1754944e-38, %v2347
    %v2349 = vsel %vm2346, %v2348, %v2344
    %v2350 = vmul.f32 1.0, %v2349
    %v2351 = vmul.f32 %v2330, %v1979
    %v2352 = vmul.f32 %v2311, %v2331
    %v2353 = vadd.f32 %v2351, %v2352
    %v2354 = vtanh.pop %v2353
    %v2355 = vmul.f32 %v2350, %v2354
    %2356 = vst [vmem:[#allocation2 + $0x8] sm:$0xff] %v2355
    %2357 = vmatpush.msra.mxu0 %v344
    %2358 = vmatpush.msra.mxu0 %v340
    %2359 = vmatpush.msra.mxu0 %v336
    %2360 = vmatpush.msra.mxu0 %v332
    %2361 = vmatpush.msra.mxu0 %v328
    %2362 = vmatpush.msra.mxu0 %v324
    %2363 = vmatpush.msra.mxu0 %v320
    %2364 = vmatpush.msra.mxu0 %v316
    %2365 = vmatpush.msra.mxu0 %v312
    %2366 = vmatpush.msra.mxu0 %v308
    %2367 = vmatpush.msra.mxu0 %v304
    %2368 = vmatpush.msra.mxu0 %v300
    %2369 = vmatpush.msra.mxu0 %v296
    %2370 = vmatpush.msra.mxu0 %v292
    %2371 = vmatpush.msra.mxu0 %v288
    %2372 = vmatpush.msra.mxu0 %v284
    %2373 = vmatmul.f32.gmra.mxu0 %v2129
    %v2374 = vpop.f32.mrf.mxu0
    %v2375 = vadd.f32 0.0, %v2374
    %2376 = vdwg.mxu0
    %2377 = vmatpush.msra.mxu0 %v345
    %2378 = vmatpush.msra.mxu0 %v341
    %2379 = vmatpush.msra.mxu0 %v337
    %2380 = vmatpush.msra.mxu0 %v333
    %2381 = vmatpush.msra.mxu0 %v329
    %2382 = vmatpush.msra.mxu0 %v325
    %2383 = vmatpush.msra.mxu0 %v321
    %2384 = vmatpush.msra.mxu0 %v317
    %2385 = vmatpush.msra.mxu0 %v313
    %2386 = vmatpush.msra.mxu0 %v309
    %2387 = vmatpush.msra.mxu0 %v305
    %2388 = vmatpush.msra.mxu0 %v301
    %2389 = vmatpush.msra.mxu0 %v297
    %2390 = vmatpush.msra.mxu0 %v293
    %2391 = vmatpush.msra.mxu0 %v289
    %2392 = vmatpush.msra.mxu0 %v285
    %2393 = vmatmul.f32.gmra.mxu0 %v2129
    %v2394 = vpop.f32.mrf.mxu0
    %v2395 = vadd.f32 0.0, %v2394
    %2396 = vdwg.mxu0
    %2397 = vmatpush.msra.mxu0 %v346
    %2398 = vmatpush.msra.mxu0 %v342
    %2399 = vmatpush.msra.mxu0 %v338
    %2400 = vmatpush.msra.mxu0 %v334
    %2401 = vmatpush.msra.mxu0 %v330
    %2402 = vmatpush.msra.mxu0 %v326
    %2403 = vmatpush.msra.mxu0 %v322
    %2404 = vmatpush.msra.mxu0 %v318
    %2405 = vmatpush.msra.mxu0 %v314
    %2406 = vmatpush.msra.mxu0 %v310
    %2407 = vmatpush.msra.mxu0 %v306
    %2408 = vmatpush.msra.mxu0 %v302
    %2409 = vmatpush.msra.mxu0 %v298
    %2410 = vmatpush.msra.mxu0 %v294
    %2411 = vmatpush.msra.mxu0 %v290
    %2412 = vmatpush.msra.mxu0 %v286
    %2413 = vmatmul.f32.gmra.mxu0 %v2129
    %v2414 = vpop.f32.mrf.mxu0
    %v2415 = vadd.f32 0.0, %v2414
    %2416 = vdwg.mxu0
    %2417 = vmatpush.msra.mxu0 %v347
    %2418 = vmatpush.msra.mxu0 %v343
    %2419 = vmatpush.msra.mxu0 %v339
    %2420 = vmatpush.msra.mxu0 %v335
    %2421 = vmatpush.msra.mxu0 %v331
    %2422 = vmatpush.msra.mxu0 %v327
    %2423 = vmatpush.msra.mxu0 %v323
    %2424 = vmatpush.msra.mxu0 %v319
    %2425 = vmatpush.msra.mxu0 %v315
    %2426 = vmatpush.msra.mxu0 %v311
    %2427 = vmatpush.msra.mxu0 %v307
    %2428 = vmatpush.msra.mxu0 %v303
    %2429 = vmatpush.msra.mxu0 %v299
    %2430 = vmatpush.msra.mxu0 %v295
    %2431 = vmatpush.msra.mxu0 %v291
    %2432 = vmatpush.msra.mxu0 %v287
    %2433 = vmatmul.f32.gmra.mxu0 %v2129
    %v2434 = vpop.f32.mrf.mxu0
    %v2435 = vadd.f32 0.0, %v2434
    %2436 = vdwg.mxu0
    %v2437 = vadd.f32 %v153, %v2375
    %v2438 = vadd.f32 %v194, %v2395
    %v2439 = vadd.f32 %v235, %v2415
    %v2440 = vadd.f32 %v276, %v2435
    %v2441 = vxor.u32 %v2437, 2147483648
    %v2442 = vmul.f32 %v2441, 1.442695
    %v2443 = vpow.pop %v2442
    %v2444 = vadd.f32 %v2443, 1.0
    %v2445 = vrcp.pop %v2444
    %v2446 = vmul.f32 %v2444, %v2445
    %v2447 = vsub.f32 1.0, %v2446
    %v2448 = vmul.f32 %v2445, %v2447
    %v2449 = vadd.f32 %v2445, %v2448
    %vm2450 = vweird.f32 %v2444
    %vm2451 = vweird.f32 %v2445
    %vm2452 = vmor %vm2450, %vm2451
    %v2453 = vsel %vm2452, %v2445, %v2449
    %v2454 = vand.u32 2147483647, %v2444
    %vm2455 = vcmp.eq.f32.partialorder %v2454, 8.507059e+37
    %v2456 = vand.u32 %v2444, 2147483648
    %v2457 = vor.u32 1.1754944e-38, %v2456
    %v2458 = vsel %vm2455, %v2457, %v2453
    %v2459 = vmul.f32 1.0, %v2458
    %v2460 = vxor.u32 %v2438, 2147483648
    %v2461 = vmul.f32 %v2460, 1.442695
    %v2462 = vpow.pop %v2461
    %v2463 = vadd.f32 %v2462, 1.0
    %v2464 = vrcp.pop %v2463
    %v2465 = vmul.f32 %v2463, %v2464
    %v2466 = vsub.f32 1.0, %v2465
    %v2467 = vmul.f32 %v2464, %v2466
    %v2468 = vadd.f32 %v2464, %v2467
    %vm2469 = vweird.f32 %v2463
    %vm2470 = vweird.f32 %v2464
    %vm2471 = vmor %vm2469, %vm2470
    %v2472 = vsel %vm2471, %v2464, %v2468
    %v2473 = vand.u32 2147483647, %v2463
    %vm2474 = vcmp.eq.f32.partialorder %v2473, 8.507059e+37
    %v2475 = vand.u32 %v2463, 2147483648
    %v2476 = vor.u32 1.1754944e-38, %v2475
    %v2477 = vsel %vm2474, %v2476, %v2472
    %v2478 = vmul.f32 1.0, %v2477
    %v2479 = vtanh.pop %v2439
    %v2480 = vxor.u32 %v2440, 2147483648
    %v2481 = vmul.f32 %v2480, 1.442695
    %v2482 = vpow.pop %v2481
    %v2483 = vadd.f32 %v2482, 1.0
    %v2484 = vrcp.pop %v2483
    %v2485 = vmul.f32 %v2483, %v2484
    %v2486 = vsub.f32 1.0, %v2485
    %v2487 = vmul.f32 %v2484, %v2486
    %v2488 = vadd.f32 %v2484, %v2487
    %vm2489 = vweird.f32 %v2483
    %vm2490 = vweird.f32 %v2484
    %vm2491 = vmor %vm2489, %vm2490
    %v2492 = vsel %vm2491, %v2484, %v2488
    %v2493 = vand.u32 2147483647, %v2483
    %vm2494 = vcmp.eq.f32.partialorder %v2493, 8.507059e+37
    %v2495 = vand.u32 %v2483, 2147483648
    %v2496 = vor.u32 1.1754944e-38, %v2495
    %v2497 = vsel %vm2494, %v2496, %v2492
    %v2498 = vmul.f32 1.0, %v2497
    %v2499 = vmul.f32 %v2478, %v2127
    %v2500 = vmul.f32 %v2459, %v2479
    %v2501 = vadd.f32 %v2499, %v2500
    %v2502 = vtanh.pop %v2501
    %v2503 = vmul.f32 %v2498, %v2502
    %2504 = vst [vmem:[#allocation2] sm:$0xff] %v2503
    %v2505 = vld [vmem:[#allocation2] sm:$0xff]
    %v2506 = vld [vmem:[#allocation2 + $0x8] sm:$0xff]
    %2507 = vmatpush.msra.mxu0 %v408
    %2508 = vmatpush.msra.mxu0 %v404
    %2509 = vmatpush.msra.mxu0 %v400
    %2510 = vmatpush.msra.mxu0 %v396
    %2511 = vmatpush.msra.mxu0 %v392
    %2512 = vmatpush.msra.mxu0 %v388
    %2513 = vmatpush.msra.mxu0 %v384
    %2514 = vmatpush.msra.mxu0 %v380
    %2515 = vmatpush.msra.mxu0 %v376
    %2516 = vmatpush.msra.mxu0 %v372
    %2517 = vmatpush.msra.mxu0 %v368
    %2518 = vmatpush.msra.mxu0 %v364
    %2519 = vmatpush.msra.mxu0 %v360
    %2520 = vmatpush.msra.mxu0 %v356
    %2521 = vmatpush.msra.mxu0 %v352
    %2522 = vmatpush.msra.mxu0 %v348
    %2523 = vmatmul.f32.gmra.mxu0 %v2505
    %v2524 = vpop.f32.mrf.mxu0
    %v2525 = vadd.f32 %v629, %v2524
    %2526 = vdwg.mxu0
    %2527 = vmatpush.msra.mxu0 %v472
    %2528 = vmatpush.msra.mxu0 %v468
    %2529 = vmatpush.msra.mxu0 %v464
    %2530 = vmatpush.msra.mxu0 %v460
    %2531 = vmatpush.msra.mxu0 %v456
    %2532 = vmatpush.msra.mxu0 %v452
    %2533 = vmatpush.msra.mxu0 %v448
    %2534 = vmatpush.msra.mxu0 %v444
    %2535 = vmatpush.msra.mxu0 %v440
    %2536 = vmatpush.msra.mxu0 %v436
    %2537 = vmatpush.msra.mxu0 %v432
    %2538 = vmatpush.msra.mxu0 %v428
    %2539 = vmatpush.msra.mxu0 %v424
    %2540 = vmatpush.msra.mxu0 %v420
    %2541 = vmatpush.msra.mxu0 %v416
    %2542 = vmatpush.msra.mxu0 %v412
    %2543 = vmatmul.f32.gmra.mxu0 %v2506
    %v2544 = vpop.f32.mrf.mxu0
    %v2545 = vadd.f32 %v2525, %v2544
    %2546 = vdwg.mxu0
    %2547 = vmatpush.msra.mxu0 %v409
    %2548 = vmatpush.msra.mxu0 %v405
    %2549 = vmatpush.msra.mxu0 %v401
    %2550 = vmatpush.msra.mxu0 %v397
    %2551 = vmatpush.msra.mxu0 %v393
    %2552 = vmatpush.msra.mxu0 %v389
    %2553 = vmatpush.msra.mxu0 %v385
    %2554 = vmatpush.msra.mxu0 %v381
    %2555 = vmatpush.msra.mxu0 %v377
    %2556 = vmatpush.msra.mxu0 %v373
    %2557 = vmatpush.msra.mxu0 %v369
    %2558 = vmatpush.msra.mxu0 %v365
    %2559 = vmatpush.msra.mxu0 %v361
    %2560 = vmatpush.msra.mxu0 %v357
    %2561 = vmatpush.msra.mxu0 %v353
    %2562 = vmatpush.msra.mxu0 %v349
    %2563 = vmatmul.f32.gmra.mxu0 %v2505
    %v2564 = vpop.f32.mrf.mxu0
    %v2565 = vadd.f32 %v630, %v2564
    %2566 = vdwg.mxu0
    %2567 = vmatpush.msra.mxu0 %v473
    %2568 = vmatpush.msra.mxu0 %v469
    %2569 = vmatpush.msra.mxu0 %v465
    %2570 = vmatpush.msra.mxu0 %v461
    %2571 = vmatpush.msra.mxu0 %v457
    %2572 = vmatpush.msra.mxu0 %v453
    %2573 = vmatpush.msra.mxu0 %v449
    %2574 = vmatpush.msra.mxu0 %v445
    %2575 = vmatpush.msra.mxu0 %v441
    %2576 = vmatpush.msra.mxu0 %v437
    %2577 = vmatpush.msra.mxu0 %v433
    %2578 = vmatpush.msra.mxu0 %v429
    %2579 = vmatpush.msra.mxu0 %v425
    %2580 = vmatpush.msra.mxu0 %v421
    %2581 = vmatpush.msra.mxu0 %v417
    %2582 = vmatpush.msra.mxu0 %v413
    %2583 = vmatmul.f32.gmra.mxu0 %v2506
    %v2584 = vpop.f32.mrf.mxu0
    %v2585 = vadd.f32 %v2565, %v2584
    %2586 = vdwg.mxu0
    %2587 = vmatpush.msra.mxu0 %v410
    %2588 = vmatpush.msra.mxu0 %v406
    %2589 = vmatpush.msra.mxu0 %v402
    %2590 = vmatpush.msra.mxu0 %v398
    %2591 = vmatpush.msra.mxu0 %v394
    %2592 = vmatpush.msra.mxu0 %v390
    %2593 = vmatpush.msra.mxu0 %v386
    %2594 = vmatpush.msra.mxu0 %v382
    %2595 = vmatpush.msra.mxu0 %v378
    %2596 = vmatpush.msra.mxu0 %v374
    %2597 = vmatpush.msra.mxu0 %v370
    %2598 = vmatpush.msra.mxu0 %v366
    %2599 = vmatpush.msra.mxu0 %v362
    %2600 = vmatpush.msra.mxu0 %v358
    %2601 = vmatpush.msra.mxu0 %v354
    %2602 = vmatpush.msra.mxu0 %v350
    %2603 = vmatmul.f32.gmra.mxu0 %v2505
    %v2604 = vpop.f32.mrf.mxu0
    %v2605 = vadd.f32 %v631, %v2604
    %2606 = vdwg.mxu0
    %2607 = vmatpush.msra.mxu0 %v474
    %2608 = vmatpush.msra.mxu0 %v470
    %2609 = vmatpush.msra.mxu0 %v466
    %2610 = vmatpush.msra.mxu0 %v462
    %2611 = vmatpush.msra.mxu0 %v458
    %2612 = vmatpush.msra.mxu0 %v454
    %2613 = vmatpush.msra.mxu0 %v450
    %2614 = vmatpush.msra.mxu0 %v446
    %2615 = vmatpush.msra.mxu0 %v442
    %2616 = vmatpush.msra.mxu0 %v438
    %2617 = vmatpush.msra.mxu0 %v434
    %2618 = vmatpush.msra.mxu0 %v430
    %2619 = vmatpush.msra.mxu0 %v426
    %2620 = vmatpush.msra.mxu0 %v422
    %2621 = vmatpush.msra.mxu0 %v418
    %2622 = vmatpush.msra.mxu0 %v414
    %2623 = vmatmul.f32.gmra.mxu0 %v2506
    %v2624 = vpop.f32.mrf.mxu0
    %v2625 = vadd.f32 %v2605, %v2624
    %2626 = vdwg.mxu0
    %2627 = vmatpush.msra.mxu0 %v411
    %2628 = vmatpush.msra.mxu0 %v407
    %2629 = vmatpush.msra.mxu0 %v403
    %2630 = vmatpush.msra.mxu0 %v399
    %2631 = vmatpush.msra.mxu0 %v395
    %2632 = vmatpush.msra.mxu0 %v391
    %2633 = vmatpush.msra.mxu0 %v387
    %2634 = vmatpush.msra.mxu0 %v383
    %2635 = vmatpush.msra.mxu0 %v379
    %2636 = vmatpush.msra.mxu0 %v375
    %2637 = vmatpush.msra.mxu0 %v371
    %2638 = vmatpush.msra.mxu0 %v367
    %2639 = vmatpush.msra.mxu0 %v363
    %2640 = vmatpush.msra.mxu0 %v359
    %2641 = vmatpush.msra.mxu0 %v355
    %2642 = vmatpush.msra.mxu0 %v351
    %2643 = vmatmul.f32.gmra.mxu0 %v2505
    %v2644 = vpop.f32.mrf.mxu0
    %v2645 = vadd.f32 %v632, %v2644
    %2646 = vdwg.mxu0
    %2647 = vmatpush.msra.mxu0 %v475
    %2648 = vmatpush.msra.mxu0 %v471
    %2649 = vmatpush.msra.mxu0 %v467
    %2650 = vmatpush.msra.mxu0 %v463
    %2651 = vmatpush.msra.mxu0 %v459
    %2652 = vmatpush.msra.mxu0 %v455
    %2653 = vmatpush.msra.mxu0 %v451
    %2654 = vmatpush.msra.mxu0 %v447
    %2655 = vmatpush.msra.mxu0 %v443
    %2656 = vmatpush.msra.mxu0 %v439
    %2657 = vmatpush.msra.mxu0 %v435
    %2658 = vmatpush.msra.mxu0 %v431
    %2659 = vmatpush.msra.mxu0 %v427
    %2660 = vmatpush.msra.mxu0 %v423
    %2661 = vmatpush.msra.mxu0 %v419
    %2662 = vmatpush.msra.mxu0 %v415
    %2663 = vmatmul.f32.gmra.mxu0 %v2506
    %v2664 = vpop.f32.mrf.mxu0
    %v2665 = vadd.f32 %v2645, %v2664
    %2666 = vdwg.mxu0
    %v2667 = vxor.u32 %v2545, 2147483648
    %v2668 = vmul.f32 %v2667, 1.442695
    %v2669 = vpow.pop %v2668
    %v2670 = vadd.f32 %v2669, 1.0
    %v2671 = vrcp.pop %v2670
    %v2672 = vmul.f32 %v2670, %v2671
    %v2673 = vsub.f32 1.0, %v2672
    %v2674 = vmul.f32 %v2671, %v2673
    %v2675 = vadd.f32 %v2671, %v2674
    %vm2676 = vweird.f32 %v2670
    %vm2677 = vweird.f32 %v2671
    %vm2678 = vmor %vm2676, %vm2677
    %v2679 = vsel %vm2678, %v2671, %v2675
    %v2680 = vand.u32 2147483647, %v2670
    %vm2681 = vcmp.eq.f32.partialorder %v2680, 8.507059e+37
    %v2682 = vand.u32 %v2670, 2147483648
    %v2683 = vor.u32 1.1754944e-38, %v2682
    %v2684 = vsel %vm2681, %v2683, %v2679
    %v2685 = vmul.f32 1.0, %v2684
    %v2686 = vxor.u32 %v2585, 2147483648
    %v2687 = vmul.f32 %v2686, 1.442695
    %v2688 = vpow.pop %v2687
    %v2689 = vadd.f32 %v2688, 1.0
    %v2690 = vrcp.pop %v2689
    %v2691 = vmul.f32 %v2689, %v2690
    %v2692 = vsub.f32 1.0, %v2691
    %v2693 = vmul.f32 %v2690, %v2692
    %v2694 = vadd.f32 %v2690, %v2693
    %vm2695 = vweird.f32 %v2689
    %vm2696 = vweird.f32 %v2690
    %vm2697 = vmor %vm2695, %vm2696
    %v2698 = vsel %vm2697, %v2690, %v2694
    %v2699 = vand.u32 2147483647, %v2689
    %vm2700 = vcmp.eq.f32.partialorder %v2699, 8.507059e+37
    %v2701 = vand.u32 %v2689, 2147483648
    %v2702 = vor.u32 1.1754944e-38, %v2701
    %v2703 = vsel %vm2700, %v2702, %v2698
    %v2704 = vmul.f32 1.0, %v2703
    %v2705 = vtanh.pop %v2625
    %v2706 = vxor.u32 %v2665, 2147483648
    %v2707 = vmul.f32 %v2706, 1.442695
    %v2708 = vpow.pop %v2707
    %v2709 = vadd.f32 %v2708, 1.0
    %v2710 = vrcp.pop %v2709
    %v2711 = vmul.f32 %v2709, %v2710
    %v2712 = vsub.f32 1.0, %v2711
    %v2713 = vmul.f32 %v2710, %v2712
    %v2714 = vadd.f32 %v2710, %v2713
    %vm2715 = vweird.f32 %v2709
    %vm2716 = vweird.f32 %v2710
    %vm2717 = vmor %vm2715, %vm2716
    %v2718 = vsel %vm2717, %v2710, %v2714
    %v2719 = vand.u32 2147483647, %v2709
    %vm2720 = vcmp.eq.f32.partialorder %v2719, 8.507059e+37
    %v2721 = vand.u32 %v2709, 2147483648
    %v2722 = vor.u32 1.1754944e-38, %v2721
    %v2723 = vsel %vm2720, %v2722, %v2718
    %v2724 = vmul.f32 1.0, %v2723
    %v2725 = vmul.f32 %v2704, %v2353
    %v2726 = vmul.f32 %v2685, %v2705
    %v2727 = vadd.f32 %v2725, %v2726
    %v2728 = vtanh.pop %v2727
    %v2729 = vmul.f32 %v2724, %v2728
    %2730 = vst [vmem:[#allocation2 + $0x8] sm:$0xff] %v2729
    %2731 = vmatpush.msra.mxu0 %v344
    %2732 = vmatpush.msra.mxu0 %v340
    %2733 = vmatpush.msra.mxu0 %v336
    %2734 = vmatpush.msra.mxu0 %v332
    %2735 = vmatpush.msra.mxu0 %v328
    %2736 = vmatpush.msra.mxu0 %v324
    %2737 = vmatpush.msra.mxu0 %v320
    %2738 = vmatpush.msra.mxu0 %v316
    %2739 = vmatpush.msra.mxu0 %v312
    %2740 = vmatpush.msra.mxu0 %v308
    %2741 = vmatpush.msra.mxu0 %v304
    %2742 = vmatpush.msra.mxu0 %v300
    %2743 = vmatpush.msra.mxu0 %v296
    %2744 = vmatpush.msra.mxu0 %v292
    %2745 = vmatpush.msra.mxu0 %v288
    %2746 = vmatpush.msra.mxu0 %v284
    %2747 = vmatmul.f32.gmra.mxu0 %v2503
    %v2748 = vpop.f32.mrf.mxu0
    %v2749 = vadd.f32 0.0, %v2748
    %2750 = vdwg.mxu0
    %2751 = vmatpush.msra.mxu0 %v345
    %2752 = vmatpush.msra.mxu0 %v341
    %2753 = vmatpush.msra.mxu0 %v337
    %2754 = vmatpush.msra.mxu0 %v333
    %2755 = vmatpush.msra.mxu0 %v329
    %2756 = vmatpush.msra.mxu0 %v325
    %2757 = vmatpush.msra.mxu0 %v321
    %2758 = vmatpush.msra.mxu0 %v317
    %2759 = vmatpush.msra.mxu0 %v313
    %2760 = vmatpush.msra.mxu0 %v309
    %2761 = vmatpush.msra.mxu0 %v305
    %2762 = vmatpush.msra.mxu0 %v301
    %2763 = vmatpush.msra.mxu0 %v297
    %2764 = vmatpush.msra.mxu0 %v293
    %2765 = vmatpush.msra.mxu0 %v289
    %2766 = vmatpush.msra.mxu0 %v285
    %2767 = vmatmul.f32.gmra.mxu0 %v2503
    %v2768 = vpop.f32.mrf.mxu0
    %v2769 = vadd.f32 0.0, %v2768
    %2770 = vdwg.mxu0
    %2771 = vmatpush.msra.mxu0 %v346
    %2772 = vmatpush.msra.mxu0 %v342
    %2773 = vmatpush.msra.mxu0 %v338
    %2774 = vmatpush.msra.mxu0 %v334
    %2775 = vmatpush.msra.mxu0 %v330
    %2776 = vmatpush.msra.mxu0 %v326
    %2777 = vmatpush.msra.mxu0 %v322
    %2778 = vmatpush.msra.mxu0 %v318
    %2779 = vmatpush.msra.mxu0 %v314
    %2780 = vmatpush.msra.mxu0 %v310
    %2781 = vmatpush.msra.mxu0 %v306
    %2782 = vmatpush.msra.mxu0 %v302
    %2783 = vmatpush.msra.mxu0 %v298
    %2784 = vmatpush.msra.mxu0 %v294
    %2785 = vmatpush.msra.mxu0 %v290
    %2786 = vmatpush.msra.mxu0 %v286
    %2787 = vmatmul.f32.gmra.mxu0 %v2503
    %v2788 = vpop.f32.mrf.mxu0
    %v2789 = vadd.f32 0.0, %v2788
    %2790 = vdwg.mxu0
    %2791 = vmatpush.msra.mxu0 %v347
    %2792 = vmatpush.msra.mxu0 %v343
    %2793 = vmatpush.msra.mxu0 %v339
    %2794 = vmatpush.msra.mxu0 %v335
    %2795 = vmatpush.msra.mxu0 %v331
    %2796 = vmatpush.msra.mxu0 %v327
    %2797 = vmatpush.msra.mxu0 %v323
    %2798 = vmatpush.msra.mxu0 %v319
    %2799 = vmatpush.msra.mxu0 %v315
    %2800 = vmatpush.msra.mxu0 %v311
    %2801 = vmatpush.msra.mxu0 %v307
    %2802 = vmatpush.msra.mxu0 %v303
    %2803 = vmatpush.msra.mxu0 %v299
    %2804 = vmatpush.msra.mxu0 %v295
    %2805 = vmatpush.msra.mxu0 %v291
    %2806 = vmatpush.msra.mxu0 %v287
    %2807 = vmatmul.f32.gmra.mxu0 %v2503
    %v2808 = vpop.f32.mrf.mxu0
    %v2809 = vadd.f32 0.0, %v2808
    %2810 = vdwg.mxu0
    %v2811 = vadd.f32 %v156, %v2749
    %v2812 = vadd.f32 %v197, %v2769
    %v2813 = vadd.f32 %v238, %v2789
    %v2814 = vadd.f32 %v279, %v2809
    %v2815 = vxor.u32 %v2811, 2147483648
    %v2816 = vmul.f32 %v2815, 1.442695
    %v2817 = vpow.pop %v2816
    %v2818 = vadd.f32 %v2817, 1.0
    %v2819 = vrcp.pop %v2818
    %v2820 = vmul.f32 %v2818, %v2819
    %v2821 = vsub.f32 1.0, %v2820
    %v2822 = vmul.f32 %v2819, %v2821
    %v2823 = vadd.f32 %v2819, %v2822
    %vm2824 = vweird.f32 %v2818
    %vm2825 = vweird.f32 %v2819
    %vm2826 = vmor %vm2824, %vm2825
    %v2827 = vsel %vm2826, %v2819, %v2823
    %v2828 = vand.u32 2147483647, %v2818
    %vm2829 = vcmp.eq.f32.partialorder %v2828, 8.507059e+37
    %v2830 = vand.u32 %v2818, 2147483648
    %v2831 = vor.u32 1.1754944e-38, %v2830
    %v2832 = vsel %vm2829, %v2831, %v2827
    %v2833 = vmul.f32 1.0, %v2832
    %v2834 = vxor.u32 %v2812, 2147483648
    %v2835 = vmul.f32 %v2834, 1.442695
    %v2836 = vpow.pop %v2835
    %v2837 = vadd.f32 %v2836, 1.0
    %v2838 = vrcp.pop %v2837
    %v2839 = vmul.f32 %v2837, %v2838
    %v2840 = vsub.f32 1.0, %v2839
    %v2841 = vmul.f32 %v2838, %v2840
    %v2842 = vadd.f32 %v2838, %v2841
    %vm2843 = vweird.f32 %v2837
    %vm2844 = vweird.f32 %v2838
    %vm2845 = vmor %vm2843, %vm2844
    %v2846 = vsel %vm2845, %v2838, %v2842
    %v2847 = vand.u32 2147483647, %v2837
    %vm2848 = vcmp.eq.f32.partialorder %v2847, 8.507059e+37
    %v2849 = vand.u32 %v2837, 2147483648
    %v2850 = vor.u32 1.1754944e-38, %v2849
    %v2851 = vsel %vm2848, %v2850, %v2846
    %v2852 = vmul.f32 1.0, %v2851
    %v2853 = vtanh.pop %v2813
    %v2854 = vxor.u32 %v2814, 2147483648
    %v2855 = vmul.f32 %v2854, 1.442695
    %v2856 = vpow.pop %v2855
    %v2857 = vadd.f32 %v2856, 1.0
    %v2858 = vrcp.pop %v2857
    %v2859 = vmul.f32 %v2857, %v2858
    %v2860 = vsub.f32 1.0, %v2859
    %v2861 = vmul.f32 %v2858, %v2860
    %v2862 = vadd.f32 %v2858, %v2861
    %vm2863 = vweird.f32 %v2857
    %vm2864 = vweird.f32 %v2858
    %vm2865 = vmor %vm2863, %vm2864
    %v2866 = vsel %vm2865, %v2858, %v2862
    %v2867 = vand.u32 2147483647, %v2857
    %vm2868 = vcmp.eq.f32.partialorder %v2867, 8.507059e+37
    %v2869 = vand.u32 %v2857, 2147483648
    %v2870 = vor.u32 1.1754944e-38, %v2869
    %v2871 = vsel %vm2868, %v2870, %v2866
    %v2872 = vmul.f32 1.0, %v2871
    %v2873 = vmul.f32 %v2852, %v2501
    %v2874 = vmul.f32 %v2833, %v2853
    %v2875 = vadd.f32 %v2873, %v2874
    %v2876 = vtanh.pop %v2875
    %v2877 = vmul.f32 %v2872, %v2876
    %2878 = vst [vmem:[#allocation2] sm:$0xff] %v2877
    %v2879 = vld [vmem:[#allocation2] sm:$0xff]
    %v2880 = vld [vmem:[#allocation2 + $0x8] sm:$0xff]
    %2881 = vmatpush.msra.mxu0 %v408
    %2882 = vmatpush.msra.mxu0 %v404
    %2883 = vmatpush.msra.mxu0 %v400
    %2884 = vmatpush.msra.mxu0 %v396
    %2885 = vmatpush.msra.mxu0 %v392
    %2886 = vmatpush.msra.mxu0 %v388
    %2887 = vmatpush.msra.mxu0 %v384
    %2888 = vmatpush.msra.mxu0 %v380
    %2889 = vmatpush.msra.mxu0 %v376
    %2890 = vmatpush.msra.mxu0 %v372
    %2891 = vmatpush.msra.mxu0 %v368
    %2892 = vmatpush.msra.mxu0 %v364
    %2893 = vmatpush.msra.mxu0 %v360
    %2894 = vmatpush.msra.mxu0 %v356
    %2895 = vmatpush.msra.mxu0 %v352
    %2896 = vmatpush.msra.mxu0 %v348
    %2897 = vmatmul.f32.gmra.mxu0 %v2879
    %v2898 = vpop.f32.mrf.mxu0
    %v2899 = vadd.f32 %v629, %v2898
    %2900 = vdwg.mxu0
    %2901 = vmatpush.msra.mxu0 %v472
    %2902 = vmatpush.msra.mxu0 %v468
    %2903 = vmatpush.msra.mxu0 %v464
    %2904 = vmatpush.msra.mxu0 %v460
    %2905 = vmatpush.msra.mxu0 %v456
    %2906 = vmatpush.msra.mxu0 %v452
    %2907 = vmatpush.msra.mxu0 %v448
    %2908 = vmatpush.msra.mxu0 %v444
    %2909 = vmatpush.msra.mxu0 %v440
    %2910 = vmatpush.msra.mxu0 %v436
    %2911 = vmatpush.msra.mxu0 %v432
    %2912 = vmatpush.msra.mxu0 %v428
    %2913 = vmatpush.msra.mxu0 %v424
    %2914 = vmatpush.msra.mxu0 %v420
    %2915 = vmatpush.msra.mxu0 %v416
    %2916 = vmatpush.msra.mxu0 %v412
    %2917 = vmatmul.f32.gmra.mxu0 %v2880
    %v2918 = vpop.f32.mrf.mxu0
    %v2919 = vadd.f32 %v2899, %v2918
    %2920 = vdwg.mxu0
    %2921 = vmatpush.msra.mxu0 %v409
    %2922 = vmatpush.msra.mxu0 %v405
    %2923 = vmatpush.msra.mxu0 %v401
    %2924 = vmatpush.msra.mxu0 %v397
    %2925 = vmatpush.msra.mxu0 %v393
    %2926 = vmatpush.msra.mxu0 %v389
    %2927 = vmatpush.msra.mxu0 %v385
    %2928 = vmatpush.msra.mxu0 %v381
    %2929 = vmatpush.msra.mxu0 %v377
    %2930 = vmatpush.msra.mxu0 %v373
    %2931 = vmatpush.msra.mxu0 %v369
    %2932 = vmatpush.msra.mxu0 %v365
    %2933 = vmatpush.msra.mxu0 %v361
    %2934 = vmatpush.msra.mxu0 %v357
    %2935 = vmatpush.msra.mxu0 %v353
    %2936 = vmatpush.msra.mxu0 %v349
    %2937 = vmatmul.f32.gmra.mxu0 %v2879
    %v2938 = vpop.f32.mrf.mxu0
    %v2939 = vadd.f32 %v630, %v2938
    %2940 = vdwg.mxu0
    %2941 = vmatpush.msra.mxu0 %v473
    %2942 = vmatpush.msra.mxu0 %v469
    %2943 = vmatpush.msra.mxu0 %v465
    %2944 = vmatpush.msra.mxu0 %v461
    %2945 = vmatpush.msra.mxu0 %v457
    %2946 = vmatpush.msra.mxu0 %v453
    %2947 = vmatpush.msra.mxu0 %v449
    %2948 = vmatpush.msra.mxu0 %v445
    %2949 = vmatpush.msra.mxu0 %v441
    %2950 = vmatpush.msra.mxu0 %v437
    %2951 = vmatpush.msra.mxu0 %v433
    %2952 = vmatpush.msra.mxu0 %v429
    %2953 = vmatpush.msra.mxu0 %v425
    %2954 = vmatpush.msra.mxu0 %v421
    %2955 = vmatpush.msra.mxu0 %v417
    %2956 = vmatpush.msra.mxu0 %v413
    %2957 = vmatmul.f32.gmra.mxu0 %v2880
    %v2958 = vpop.f32.mrf.mxu0
    %v2959 = vadd.f32 %v2939, %v2958
    %2960 = vdwg.mxu0
    %2961 = vmatpush.msra.mxu0 %v410
    %2962 = vmatpush.msra.mxu0 %v406
    %2963 = vmatpush.msra.mxu0 %v402
    %2964 = vmatpush.msra.mxu0 %v398
    %2965 = vmatpush.msra.mxu0 %v394
    %2966 = vmatpush.msra.mxu0 %v390
    %2967 = vmatpush.msra.mxu0 %v386
    %2968 = vmatpush.msra.mxu0 %v382
    %2969 = vmatpush.msra.mxu0 %v378
    %2970 = vmatpush.msra.mxu0 %v374
    %2971 = vmatpush.msra.mxu0 %v370
    %2972 = vmatpush.msra.mxu0 %v366
    %2973 = vmatpush.msra.mxu0 %v362
    %2974 = vmatpush.msra.mxu0 %v358
    %2975 = vmatpush.msra.mxu0 %v354
    %2976 = vmatpush.msra.mxu0 %v350
    %2977 = vmatmul.f32.gmra.mxu0 %v2879
    %v2978 = vpop.f32.mrf.mxu0
    %v2979 = vadd.f32 %v631, %v2978
    %2980 = vdwg.mxu0
    %2981 = vmatpush.msra.mxu0 %v474
    %2982 = vmatpush.msra.mxu0 %v470
    %2983 = vmatpush.msra.mxu0 %v466
    %2984 = vmatpush.msra.mxu0 %v462
    %2985 = vmatpush.msra.mxu0 %v458
    %2986 = vmatpush.msra.mxu0 %v454
    %2987 = vmatpush.msra.mxu0 %v450
    %2988 = vmatpush.msra.mxu0 %v446
    %2989 = vmatpush.msra.mxu0 %v442
    %2990 = vmatpush.msra.mxu0 %v438
    %2991 = vmatpush.msra.mxu0 %v434
    %2992 = vmatpush.msra.mxu0 %v430
    %2993 = vmatpush.msra.mxu0 %v426
    %2994 = vmatpush.msra.mxu0 %v422
    %2995 = vmatpush.msra.mxu0 %v418
    %2996 = vmatpush.msra.mxu0 %v414
    %2997 = vmatmul.f32.gmra.mxu0 %v2880
    %v2998 = vpop.f32.mrf.mxu0
    %v2999 = vadd.f32 %v2979, %v2998
    %3000 = vdwg.mxu0
    %3001 = vmatpush.msra.mxu0 %v411
    %3002 = vmatpush.msra.mxu0 %v407
    %3003 = vmatpush.msra.mxu0 %v403
    %3004 = vmatpush.msra.mxu0 %v399
    %3005 = vmatpush.msra.mxu0 %v395
    %3006 = vmatpush.msra.mxu0 %v391
    %3007 = vmatpush.msra.mxu0 %v387
    %3008 = vmatpush.msra.mxu0 %v383
    %3009 = vmatpush.msra.mxu0 %v379
    %3010 = vmatpush.msra.mxu0 %v375
    %3011 = vmatpush.msra.mxu0 %v371
    %3012 = vmatpush.msra.mxu0 %v367
    %3013 = vmatpush.msra.mxu0 %v363
    %3014 = vmatpush.msra.mxu0 %v359
    %3015 = vmatpush.msra.mxu0 %v355
    %3016 = vmatpush.msra.mxu0 %v351
    %3017 = vmatmul.f32.gmra.mxu0 %v2879
    %v3018 = vpop.f32.mrf.mxu0
    %v3019 = vadd.f32 %v632, %v3018
    %3020 = vdwg.mxu0
    %3021 = vmatpush.msra.mxu0 %v475
    %3022 = vmatpush.msra.mxu0 %v471
    %3023 = vmatpush.msra.mxu0 %v467
    %3024 = vmatpush.msra.mxu0 %v463
    %3025 = vmatpush.msra.mxu0 %v459
    %3026 = vmatpush.msra.mxu0 %v455
    %3027 = vmatpush.msra.mxu0 %v451
    %3028 = vmatpush.msra.mxu0 %v447
    %3029 = vmatpush.msra.mxu0 %v443
    %3030 = vmatpush.msra.mxu0 %v439
    %3031 = vmatpush.msra.mxu0 %v435
    %3032 = vmatpush.msra.mxu0 %v431
    %3033 = vmatpush.msra.mxu0 %v427
    %3034 = vmatpush.msra.mxu0 %v423
    %3035 = vmatpush.msra.mxu0 %v419
    %3036 = vmatpush.msra.mxu0 %v415
    %3037 = vmatmul.f32.gmra.mxu0 %v2880
    %v3038 = vpop.f32.mrf.mxu0
    %v3039 = vadd.f32 %v3019, %v3038
    %3040 = vdwg.mxu0
    %v3041 = vxor.u32 %v2919, 2147483648
    %v3042 = vmul.f32 %v3041, 1.442695
    %v3043 = vpow.pop %v3042
    %v3044 = vadd.f32 %v3043, 1.0
    %v3045 = vrcp.pop %v3044
    %v3046 = vmul.f32 %v3044, %v3045
    %v3047 = vsub.f32 1.0, %v3046
    %v3048 = vmul.f32 %v3045, %v3047
    %v3049 = vadd.f32 %v3045, %v3048
    %vm3050 = vweird.f32 %v3044
    %vm3051 = vweird.f32 %v3045
    %vm3052 = vmor %vm3050, %vm3051
    %v3053 = vsel %vm3052, %v3045, %v3049
    %v3054 = vand.u32 2147483647, %v3044
    %vm3055 = vcmp.eq.f32.partialorder %v3054, 8.507059e+37
    %v3056 = vand.u32 %v3044, 2147483648
    %v3057 = vor.u32 1.1754944e-38, %v3056
    %v3058 = vsel %vm3055, %v3057, %v3053
    %v3059 = vmul.f32 1.0, %v3058
    %v3060 = vxor.u32 %v2959, 2147483648
    %v3061 = vmul.f32 %v3060, 1.442695
    %v3062 = vpow.pop %v3061
    %v3063 = vadd.f32 %v3062, 1.0
    %v3064 = vrcp.pop %v3063
    %v3065 = vmul.f32 %v3063, %v3064
    %v3066 = vsub.f32 1.0, %v3065
    %v3067 = vmul.f32 %v3064, %v3066
    %v3068 = vadd.f32 %v3064, %v3067
    %vm3069 = vweird.f32 %v3063
    %vm3070 = vweird.f32 %v3064
    %vm3071 = vmor %vm3069, %vm3070
    %v3072 = vsel %vm3071, %v3064, %v3068
    %v3073 = vand.u32 2147483647, %v3063
    %vm3074 = vcmp.eq.f32.partialorder %v3073, 8.507059e+37
    %v3075 = vand.u32 %v3063, 2147483648
    %v3076 = vor.u32 1.1754944e-38, %v3075
    %v3077 = vsel %vm3074, %v3076, %v3072
    %v3078 = vmul.f32 1.0, %v3077
    %v3079 = vtanh.pop %v2999
    %v3080 = vxor.u32 %v3039, 2147483648
    %v3081 = vmul.f32 %v3080, 1.442695
    %v3082 = vpow.pop %v3081
    %v3083 = vadd.f32 %v3082, 1.0
    %v3084 = vrcp.pop %v3083
    %v3085 = vmul.f32 %v3083, %v3084
    %v3086 = vsub.f32 1.0, %v3085
    %v3087 = vmul.f32 %v3084, %v3086
    %v3088 = vadd.f32 %v3084, %v3087
    %vm3089 = vweird.f32 %v3083
    %vm3090 = vweird.f32 %v3084
    %vm3091 = vmor %vm3089, %vm3090
    %v3092 = vsel %vm3091, %v3084, %v3088
    %v3093 = vand.u32 2147483647, %v3083
    %vm3094 = vcmp.eq.f32.partialorder %v3093, 8.507059e+37
    %v3095 = vand.u32 %v3083, 2147483648
    %v3096 = vor.u32 1.1754944e-38, %v3095
    %v3097 = vsel %vm3094, %v3096, %v3092
    %v3098 = vmul.f32 1.0, %v3097
    %v3099 = vmul.f32 %v3078, %v2727
    %v3100 = vmul.f32 %v3059, %v3079
    %v3101 = vadd.f32 %v3099, %v3100
    %v3102 = vtanh.pop %v3101
    %v3103 = vmul.f32 %v3098, %v3102
    %3104 = vst [vmem:[#allocation2 + $0x8] sm:$0xff] %v3103
    %3105 = vmatpush.msra.mxu0 %v344
    %3106 = vmatpush.msra.mxu0 %v340
    %3107 = vmatpush.msra.mxu0 %v336
    %3108 = vmatpush.msra.mxu0 %v332
    %3109 = vmatpush.msra.mxu0 %v328
    %3110 = vmatpush.msra.mxu0 %v324
    %3111 = vmatpush.msra.mxu0 %v320
    %3112 = vmatpush.msra.mxu0 %v316
    %3113 = vmatpush.msra.mxu0 %v312
    %3114 = vmatpush.msra.mxu0 %v308
    %3115 = vmatpush.msra.mxu0 %v304
    %3116 = vmatpush.msra.mxu0 %v300
    %3117 = vmatpush.msra.mxu0 %v296
    %3118 = vmatpush.msra.mxu0 %v292
    %3119 = vmatpush.msra.mxu0 %v288
    %3120 = vmatpush.msra.mxu0 %v284
    %3121 = vmatmul.f32.gmra.mxu0 %v2877
    %v3122 = vpop.f32.mrf.mxu0
    %v3123 = vadd.f32 0.0, %v3122
    %3124 = vdwg.mxu0
    %3125 = vmatpush.msra.mxu0 %v345
    %3126 = vmatpush.msra.mxu0 %v341
    %3127 = vmatpush.msra.mxu0 %v337
    %3128 = vmatpush.msra.mxu0 %v333
    %3129 = vmatpush.msra.mxu0 %v329
    %3130 = vmatpush.msra.mxu0 %v325
    %3131 = vmatpush.msra.mxu0 %v321
    %3132 = vmatpush.msra.mxu0 %v317
    %3133 = vmatpush.msra.mxu0 %v313
    %3134 = vmatpush.msra.mxu0 %v309
    %3135 = vmatpush.msra.mxu0 %v305
    %3136 = vmatpush.msra.mxu0 %v301
    %3137 = vmatpush.msra.mxu0 %v297
    %3138 = vmatpush.msra.mxu0 %v293
    %3139 = vmatpush.msra.mxu0 %v289
    %3140 = vmatpush.msra.mxu0 %v285
    %3141 = vmatmul.f32.gmra.mxu0 %v2877
    %v3142 = vpop.f32.mrf.mxu0
    %v3143 = vadd.f32 0.0, %v3142
    %3144 = vdwg.mxu0
    %3145 = vmatpush.msra.mxu0 %v346
    %3146 = vmatpush.msra.mxu0 %v342
    %3147 = vmatpush.msra.mxu0 %v338
    %3148 = vmatpush.msra.mxu0 %v334
    %3149 = vmatpush.msra.mxu0 %v330
    %3150 = vmatpush.msra.mxu0 %v326
    %3151 = vmatpush.msra.mxu0 %v322
    %3152 = vmatpush.msra.mxu0 %v318
    %3153 = vmatpush.msra.mxu0 %v314
    %3154 = vmatpush.msra.mxu0 %v310
    %3155 = vmatpush.msra.mxu0 %v306
    %3156 = vmatpush.msra.mxu0 %v302
    %3157 = vmatpush.msra.mxu0 %v298
    %3158 = vmatpush.msra.mxu0 %v294
    %3159 = vmatpush.msra.mxu0 %v290
    %3160 = vmatpush.msra.mxu0 %v286
    %3161 = vmatmul.f32.gmra.mxu0 %v2877
    %v3162 = vpop.f32.mrf.mxu0
    %v3163 = vadd.f32 0.0, %v3162
    %3164 = vdwg.mxu0
    %3165 = vmatpush.msra.mxu0 %v347
    %3166 = vmatpush.msra.mxu0 %v343
    %3167 = vmatpush.msra.mxu0 %v339
    %3168 = vmatpush.msra.mxu0 %v335
    %3169 = vmatpush.msra.mxu0 %v331
    %3170 = vmatpush.msra.mxu0 %v327
    %3171 = vmatpush.msra.mxu0 %v323
    %3172 = vmatpush.msra.mxu0 %v319
    %3173 = vmatpush.msra.mxu0 %v315
    %3174 = vmatpush.msra.mxu0 %v311
    %3175 = vmatpush.msra.mxu0 %v307
    %3176 = vmatpush.msra.mxu0 %v303
    %3177 = vmatpush.msra.mxu0 %v299
    %3178 = vmatpush.msra.mxu0 %v295
    %3179 = vmatpush.msra.mxu0 %v291
    %3180 = vmatpush.msra.mxu0 %v287
    %3181 = vmatmul.f32.gmra.mxu0 %v2877
    %v3182 = vpop.f32.mrf.mxu0
    %v3183 = vadd.f32 0.0, %v3182
    %3184 = vdwg.mxu0
    %v3185 = vadd.f32 %v159, %v3123
    %v3186 = vadd.f32 %v200, %v3143
    %v3187 = vadd.f32 %v241, %v3163
    %v3188 = vadd.f32 %v282, %v3183
    %v3189 = vxor.u32 %v3185, 2147483648
    %v3190 = vmul.f32 %v3189, 1.442695
    %v3191 = vpow.pop %v3190
    %v3192 = vadd.f32 %v3191, 1.0
    %v3193 = vrcp.pop %v3192
    %v3194 = vmul.f32 %v3192, %v3193
    %v3195 = vsub.f32 1.0, %v3194
    %v3196 = vmul.f32 %v3193, %v3195
    %v3197 = vadd.f32 %v3193, %v3196
    %vm3198 = vweird.f32 %v3192
    %vm3199 = vweird.f32 %v3193
    %vm3200 = vmor %vm3198, %vm3199
    %v3201 = vsel %vm3200, %v3193, %v3197
    %v3202 = vand.u32 2147483647, %v3192
    %vm3203 = vcmp.eq.f32.partialorder %v3202, 8.507059e+37
    %v3204 = vand.u32 %v3192, 2147483648
    %v3205 = vor.u32 1.1754944e-38, %v3204
    %v3206 = vsel %vm3203, %v3205, %v3201
    %v3207 = vmul.f32 1.0, %v3206
    %v3208 = vxor.u32 %v3186, 2147483648
    %v3209 = vmul.f32 %v3208, 1.442695
    %v3210 = vpow.pop %v3209
    %v3211 = vadd.f32 %v3210, 1.0
    %v3212 = vrcp.pop %v3211
    %v3213 = vmul.f32 %v3211, %v3212
    %v3214 = vsub.f32 1.0, %v3213
    %v3215 = vmul.f32 %v3212, %v3214
    %v3216 = vadd.f32 %v3212, %v3215
    %vm3217 = vweird.f32 %v3211
    %vm3218 = vweird.f32 %v3212
    %vm3219 = vmor %vm3217, %vm3218
    %v3220 = vsel %vm3219, %v3212, %v3216
    %v3221 = vand.u32 2147483647, %v3211
    %vm3222 = vcmp.eq.f32.partialorder %v3221, 8.507059e+37
    %v3223 = vand.u32 %v3211, 2147483648
    %v3224 = vor.u32 1.1754944e-38, %v3223
    %v3225 = vsel %vm3222, %v3224, %v3220
    %v3226 = vmul.f32 1.0, %v3225
    %v3227 = vtanh.pop %v3187
    %v3228 = vxor.u32 %v3188, 2147483648
    %v3229 = vmul.f32 %v3228, 1.442695
    %v3230 = vpow.pop %v3229
    %v3231 = vadd.f32 %v3230, 1.0
    %v3232 = vrcp.pop %v3231
    %v3233 = vmul.f32 %v3231, %v3232
    %v3234 = vsub.f32 1.0, %v3233
    %v3235 = vmul.f32 %v3232, %v3234
    %v3236 = vadd.f32 %v3232, %v3235
    %vm3237 = vweird.f32 %v3231
    %vm3238 = vweird.f32 %v3232
    %vm3239 = vmor %vm3237, %vm3238
    %v3240 = vsel %vm3239, %v3232, %v3236
    %v3241 = vand.u32 2147483647, %v3231
    %vm3242 = vcmp.eq.f32.partialorder %v3241, 8.507059e+37
    %v3243 = vand.u32 %v3231, 2147483648
    %v3244 = vor.u32 1.1754944e-38, %v3243
    %v3245 = vsel %vm3242, %v3244, %v3240
    %v3246 = vmul.f32 1.0, %v3245
    %v3247 = vmul.f32 %v3226, %v2875
    %v3248 = vmul.f32 %v3207, %v3227
    %v3249 = vadd.f32 %v3247, %v3248
    %v3250 = vtanh.pop %v3249
    %v3251 = vmul.f32 %v3246, %v3250
    %3252 = vst [vmem:[#allocation2] sm:$0xff] %v3251
    %v3253 = vld [vmem:[#allocation2] sm:$0xff]
    %v3254 = vld [vmem:[#allocation2 + $0x8] sm:$0xff]
    %3255 = vmatpush.msra.mxu0 %v408
    %3256 = vmatpush.msra.mxu0 %v404
    %3257 = vmatpush.msra.mxu0 %v400
    %3258 = vmatpush.msra.mxu0 %v396
    %3259 = vmatpush.msra.mxu0 %v392
    %3260 = vmatpush.msra.mxu0 %v388
    %3261 = vmatpush.msra.mxu0 %v384
    %3262 = vmatpush.msra.mxu0 %v380
    %3263 = vmatpush.msra.mxu0 %v376
    %3264 = vmatpush.msra.mxu0 %v372
    %3265 = vmatpush.msra.mxu0 %v368
    %3266 = vmatpush.msra.mxu0 %v364
    %3267 = vmatpush.msra.mxu0 %v360
    %3268 = vmatpush.msra.mxu0 %v356
    %3269 = vmatpush.msra.mxu0 %v352
    %3270 = vmatpush.msra.mxu0 %v348
    %3271 = vmatmul.f32.gmra.mxu0 %v3253
    %v3272 = vpop.f32.mrf.mxu0
    %v3273 = vadd.f32 %v629, %v3272
    %3274 = vdwg.mxu0
    %3275 = vmatpush.msra.mxu0 %v472
    %3276 = vmatpush.msra.mxu0 %v468
    %3277 = vmatpush.msra.mxu0 %v464
    %3278 = vmatpush.msra.mxu0 %v460
    %3279 = vmatpush.msra.mxu0 %v456
    %3280 = vmatpush.msra.mxu0 %v452
    %3281 = vmatpush.msra.mxu0 %v448
    %3282 = vmatpush.msra.mxu0 %v444
    %3283 = vmatpush.msra.mxu0 %v440
    %3284 = vmatpush.msra.mxu0 %v436
    %3285 = vmatpush.msra.mxu0 %v432
    %3286 = vmatpush.msra.mxu0 %v428
    %3287 = vmatpush.msra.mxu0 %v424
    %3288 = vmatpush.msra.mxu0 %v420
    %3289 = vmatpush.msra.mxu0 %v416
    %3290 = vmatpush.msra.mxu0 %v412
    %3291 = vmatmul.f32.gmra.mxu0 %v3254
    %v3292 = vpop.f32.mrf.mxu0
    %v3293 = vadd.f32 %v3273, %v3292
    %3294 = vdwg.mxu0
    %3295 = vmatpush.msra.mxu0 %v409
    %3296 = vmatpush.msra.mxu0 %v405
    %3297 = vmatpush.msra.mxu0 %v401
    %3298 = vmatpush.msra.mxu0 %v397
    %3299 = vmatpush.msra.mxu0 %v393
    %3300 = vmatpush.msra.mxu0 %v389
    %3301 = vmatpush.msra.mxu0 %v385
    %3302 = vmatpush.msra.mxu0 %v381
    %3303 = vmatpush.msra.mxu0 %v377
    %3304 = vmatpush.msra.mxu0 %v373
    %3305 = vmatpush.msra.mxu0 %v369
    %3306 = vmatpush.msra.mxu0 %v365
    %3307 = vmatpush.msra.mxu0 %v361
    %3308 = vmatpush.msra.mxu0 %v357
    %3309 = vmatpush.msra.mxu0 %v353
    %3310 = vmatpush.msra.mxu0 %v349
    %3311 = vmatmul.f32.gmra.mxu0 %v3253
    %v3312 = vpop.f32.mrf.mxu0
    %v3313 = vadd.f32 %v630, %v3312
    %3314 = vdwg.mxu0
    %3315 = vmatpush.msra.mxu0 %v473
    %3316 = vmatpush.msra.mxu0 %v469
    %3317 = vmatpush.msra.mxu0 %v465
    %3318 = vmatpush.msra.mxu0 %v461
    %3319 = vmatpush.msra.mxu0 %v457
    %3320 = vmatpush.msra.mxu0 %v453
    %3321 = vmatpush.msra.mxu0 %v449
    %3322 = vmatpush.msra.mxu0 %v445
    %3323 = vmatpush.msra.mxu0 %v441
    %3324 = vmatpush.msra.mxu0 %v437
    %3325 = vmatpush.msra.mxu0 %v433
    %3326 = vmatpush.msra.mxu0 %v429
    %3327 = vmatpush.msra.mxu0 %v425
    %3328 = vmatpush.msra.mxu0 %v421
    %3329 = vmatpush.msra.mxu0 %v417
    %3330 = vmatpush.msra.mxu0 %v413
    %3331 = vmatmul.f32.gmra.mxu0 %v3254
    %v3332 = vpop.f32.mrf.mxu0
    %v3333 = vadd.f32 %v3313, %v3332
    %3334 = vdwg.mxu0
    %3335 = vmatpush.msra.mxu0 %v410
    %3336 = vmatpush.msra.mxu0 %v406
    %3337 = vmatpush.msra.mxu0 %v402
    %3338 = vmatpush.msra.mxu0 %v398
    %3339 = vmatpush.msra.mxu0 %v394
    %3340 = vmatpush.msra.mxu0 %v390
    %3341 = vmatpush.msra.mxu0 %v386
    %3342 = vmatpush.msra.mxu0 %v382
    %3343 = vmatpush.msra.mxu0 %v378
    %3344 = vmatpush.msra.mxu0 %v374
    %3345 = vmatpush.msra.mxu0 %v370
    %3346 = vmatpush.msra.mxu0 %v366
    %3347 = vmatpush.msra.mxu0 %v362
    %3348 = vmatpush.msra.mxu0 %v358
    %3349 = vmatpush.msra.mxu0 %v354
    %3350 = vmatpush.msra.mxu0 %v350
    %3351 = vmatmul.f32.gmra.mxu0 %v3253
    %v3352 = vpop.f32.mrf.mxu0
    %v3353 = vadd.f32 %v631, %v3352
    %3354 = vdwg.mxu0
    %3355 = vmatpush.msra.mxu0 %v474
    %3356 = vmatpush.msra.mxu0 %v470
    %3357 = vmatpush.msra.mxu0 %v466
    %3358 = vmatpush.msra.mxu0 %v462
    %3359 = vmatpush.msra.mxu0 %v458
    %3360 = vmatpush.msra.mxu0 %v454
    %3361 = vmatpush.msra.mxu0 %v450
    %3362 = vmatpush.msra.mxu0 %v446
    %3363 = vmatpush.msra.mxu0 %v442
    %3364 = vmatpush.msra.mxu0 %v438
    %3365 = vmatpush.msra.mxu0 %v434
    %3366 = vmatpush.msra.mxu0 %v430
    %3367 = vmatpush.msra.mxu0 %v426
    %3368 = vmatpush.msra.mxu0 %v422
    %3369 = vmatpush.msra.mxu0 %v418
    %3370 = vmatpush.msra.mxu0 %v414
    %3371 = vmatmul.f32.gmra.mxu0 %v3254
    %v3372 = vpop.f32.mrf.mxu0
    %v3373 = vadd.f32 %v3353, %v3372
    %3374 = vdwg.mxu0
    %3375 = vmatpush.msra.mxu0 %v411
    %3376 = vmatpush.msra.mxu0 %v407
    %3377 = vmatpush.msra.mxu0 %v403
    %3378 = vmatpush.msra.mxu0 %v399
    %3379 = vmatpush.msra.mxu0 %v395
    %3380 = vmatpush.msra.mxu0 %v391
    %3381 = vmatpush.msra.mxu0 %v387
    %3382 = vmatpush.msra.mxu0 %v383
    %3383 = vmatpush.msra.mxu0 %v379
    %3384 = vmatpush.msra.mxu0 %v375
    %3385 = vmatpush.msra.mxu0 %v371
    %3386 = vmatpush.msra.mxu0 %v367
    %3387 = vmatpush.msra.mxu0 %v363
    %3388 = vmatpush.msra.mxu0 %v359
    %3389 = vmatpush.msra.mxu0 %v355
    %3390 = vmatpush.msra.mxu0 %v351
    %3391 = vmatmul.f32.gmra.mxu0 %v3253
    %v3392 = vpop.f32.mrf.mxu0
    %v3393 = vadd.f32 %v632, %v3392
    %3394 = vdwg.mxu0
    %3395 = vmatpush.msra.mxu0 %v475
    %3396 = vmatpush.msra.mxu0 %v471
    %3397 = vmatpush.msra.mxu0 %v467
    %3398 = vmatpush.msra.mxu0 %v463
    %3399 = vmatpush.msra.mxu0 %v459
    %3400 = vmatpush.msra.mxu0 %v455
    %3401 = vmatpush.msra.mxu0 %v451
    %3402 = vmatpush.msra.mxu0 %v447
    %3403 = vmatpush.msra.mxu0 %v443
    %3404 = vmatpush.msra.mxu0 %v439
    %3405 = vmatpush.msra.mxu0 %v435
    %3406 = vmatpush.msra.mxu0 %v431
    %3407 = vmatpush.msra.mxu0 %v427
    %3408 = vmatpush.msra.mxu0 %v423
    %3409 = vmatpush.msra.mxu0 %v419
    %3410 = vmatpush.msra.mxu0 %v415
    %3411 = vmatmul.f32.gmra.mxu0 %v3254
    %v3412 = vpop.f32.mrf.mxu0
    %v3413 = vadd.f32 %v3393, %v3412
    %3414 = vdwg.mxu0
    %v3415 = vxor.u32 %v3293, 2147483648
    %v3416 = vmul.f32 %v3415, 1.442695
    %v3417 = vpow.pop %v3416
    %v3418 = vadd.f32 %v3417, 1.0
    %v3419 = vrcp.pop %v3418
    %v3420 = vmul.f32 %v3418, %v3419
    %v3421 = vsub.f32 1.0, %v3420
    %v3422 = vmul.f32 %v3419, %v3421
    %v3423 = vadd.f32 %v3419, %v3422
    %vm3424 = vweird.f32 %v3418
    %vm3425 = vweird.f32 %v3419
    %vm3426 = vmor %vm3424, %vm3425
    %v3427 = vsel %vm3426, %v3419, %v3423
    %v3428 = vand.u32 2147483647, %v3418
    %vm3429 = vcmp.eq.f32.partialorder %v3428, 8.507059e+37
    %v3430 = vand.u32 %v3418, 2147483648
    %v3431 = vor.u32 1.1754944e-38, %v3430
    %v3432 = vsel %vm3429, %v3431, %v3427
    %v3433 = vmul.f32 1.0, %v3432
    %v3434 = vxor.u32 %v3333, 2147483648
    %v3435 = vmul.f32 %v3434, 1.442695
    %v3436 = vpow.pop %v3435
    %v3437 = vadd.f32 %v3436, 1.0
    %v3438 = vrcp.pop %v3437
    %v3439 = vmul.f32 %v3437, %v3438
    %v3440 = vsub.f32 1.0, %v3439
    %v3441 = vmul.f32 %v3438, %v3440
    %v3442 = vadd.f32 %v3438, %v3441
    %vm3443 = vweird.f32 %v3437
    %vm3444 = vweird.f32 %v3438
    %vm3445 = vmor %vm3443, %vm3444
    %v3446 = vsel %vm3445, %v3438, %v3442
    %v3447 = vand.u32 2147483647, %v3437
    %vm3448 = vcmp.eq.f32.partialorder %v3447, 8.507059e+37
    %v3449 = vand.u32 %v3437, 2147483648
    %v3450 = vor.u32 1.1754944e-38, %v3449
    %v3451 = vsel %vm3448, %v3450, %v3446
    %v3452 = vmul.f32 1.0, %v3451
    %v3453 = vtanh.pop %v3373
    %v3454 = vxor.u32 %v3413, 2147483648
    %v3455 = vmul.f32 %v3454, 1.442695
    %v3456 = vpow.pop %v3455
    %v3457 = vadd.f32 %v3456, 1.0
    %v3458 = vrcp.pop %v3457
    %v3459 = vmul.f32 %v3457, %v3458
    %v3460 = vsub.f32 1.0, %v3459
    %v3461 = vmul.f32 %v3458, %v3460
    %v3462 = vadd.f32 %v3458, %v3461
    %vm3463 = vweird.f32 %v3457
    %vm3464 = vweird.f32 %v3458
    %vm3465 = vmor %vm3463, %vm3464
    %v3466 = vsel %vm3465, %v3458, %v3462
    %v3467 = vand.u32 2147483647, %v3457
    %vm3468 = vcmp.eq.f32.partialorder %v3467, 8.507059e+37
    %v3469 = vand.u32 %v3457, 2147483648
    %v3470 = vor.u32 1.1754944e-38, %v3469
    %v3471 = vsel %vm3468, %v3470, %v3466
    %v3472 = vmul.f32 1.0, %v3471
    %v3473 = vmul.f32 %v3452, %v3101
    %v3474 = vmul.f32 %v3433, %v3453
    %v3475 = vadd.f32 %v3473, %v3474
    %v3476 = vtanh.pop %v3475
    %v3477 = vmul.f32 %v3472, %v3476
    %3478 = vst [vmem:[#allocation2 + $0x8] sm:$0xff] %v3477
    %3479 = vst [vmem:[#allocation8] sm:$0xff] %v3477
    // Predicated region
    $region34: #{tpu_custom_call.1} parent=1 // pred_check
      _
    $region35: #{tpu_custom_call.1} parent=1 // pred_check_branch
      %3481 = sbr.rel (0) target = $region37
    $region36: #{tpu_custom_call.1} parent=1 // pred_region
      %3483 = vsyncadd [#allocation5], 0
      %s3485 = sshll.u32 [#allocation8], 4
      %s3486 = int_to_ptr.vmem [resolvable:$true] %s3485
      %s3487 = sshll.u32 %s6, 4
      %s3488 = int_to_ptr.hbm [resolvable:$true] %s3487
      %3490 = dma.vmem_to_hbm [thread:$0]  %s3486, 128, %s3488, [#allocation5]
    $region37: #{tpu_custom_call.1} parent=1 // pred_fallthru
      _
    // Predicated region
    $region38: #{tpu_custom_call.1} parent=1 // pred_check
      _
    $region39: #{tpu_custom_call.1} parent=1 // pred_check_branch
      %3492 = sbr.rel (0) target = $region41
    $region40: #{tpu_custom_call.1} parent=1 // pred_region
      %3494 = dma.done [#allocation5], 128
    $region41: #{tpu_custom_call.1} parent=1 // pred_fallthru
      _
    %3495 = vsyncpa [#allocation4], 1
    %3496 = vsyncpa [#allocation7], 1
    %3497 = vsyncpa [#allocation5], 1

</llo_original>
